<compile_context>
chip_gen: v7x
topology: tpu7x:2x2x1
jax: 0.10.0
libtpu: 0.0.40
codegen_flags: <defaults>
</compile_context>

<pallas_src>
import jax
import jax.numpy as jnp
from jax.experimental import pallas as pl
from jax.experimental.pallas import tpu as pltpu

# ----------------------------- config --------------------------------------
B = 2                      # batch
C_IN = 3                   # input channels
IMG = 32                   # image height/width
PATCH = 16                 # patch size
NP = (IMG // PATCH) ** 2   # number of patches (4)
N = NP + 1                 # real tokens incl. CLS (5)
N_PAD = 8                  # token count padded to a sublane multiple
BN = B * N_PAD             # rows processed per kernel invocation (16)
D = 256                    # embed dim (2 x 128 lanes)
HEADS = 2
HEAD_DIM = D // HEADS      # 128 (lane-aligned head slices)
MLP_H = 4 * D              # 1024
DEPTH = 2
SCALE = HEAD_DIM ** -0.5
LN_EPS = 1e-6
PATCH_DIM = C_IN * PATCH * PATCH  # 768


# --------------------------- in-kernel helpers ------------------------------
def _layernorm(v, w, b):
    mu = jnp.mean(v, axis=-1, keepdims=True)
    var = jnp.mean(jnp.square(v - mu), axis=-1, keepdims=True)
    return (v - mu) * jax.lax.rsqrt(var + LN_EPS) * w + b


def _gelu_tanh(x):
    # tanh-approx GELU; evaluated in x's dtype (bf16 at the call site).
    c = 0.7978845608028654  # sqrt(2/pi)
    return 0.5 * x * (1.0 + jnp.tanh(c * (x + 0.044715 * x * x * x)))


# ------------------------------ fused kernel --------------------------------
def vit_fused_kernel(patches_ref, pw_ref, tb_ref,
                     ln1w_ref, ln1b_ref, qkvw_ref, qkvb_ref,
                     projw_ref, projb_ref, ln2w_ref, ln2b_ref,
                     fc1w_ref, fc1b_ref, fc2w_ref, fc2b_ref,
                     nw_ref, nb_ref, o_ref, x_scr):
    layer = pl.program_id(0)

    # ---- layer 0: patch embed + CLS slot + positional embedding ----
    # patches_ref rows: [cls-slot(zeros), 4 patches, 3 pad rows] per batch.
    # tb_ref already holds cls+pos for row 0, patch_bias+pos for patch rows,
    # zeros for pad rows, so one matmul + add builds the padded token matrix.
    @pl.when(layer == 0)
    def _():
        tok = jnp.dot(patches_ref[...], pw_ref[...],
                      preferred_element_type=jnp.float32)
        x_scr[...] = tok + tb_ref[...]

    x = x_scr[...]                                        # (BN, D) f32

    # ---------------- attention branch (pre-norm) ----------------
    h = _layernorm(x, ln1w_ref[0], ln1b_ref[0])
    # attention scale is pre-folded into the Q columns of qkv_w / qkv_b
    qkv = jnp.dot(h.astype(jnp.bfloat16), qkvw_ref[0],
                  preferred_element_type=jnp.float32) + qkvb_ref[0]  # (BN, 3D)

    q = qkv[:, 0 * D:1 * D].reshape(B, N_PAD, D)
    k = qkv[:, 1 * D:2 * D].reshape(B, N_PAD, D)
    v = qkv[:, 2 * D:3 * D].reshape(B, N_PAD, D)

    # fold heads into the leading batch dim: lane-aligned 128-wide slices and a
    # cheap axis-0 concat -> (B*HEADS, N_PAD, HEAD_DIM), single batched einsums
    def split_heads(t):
        return jnp.concatenate(
            [t[:, :, hi * HEAD_DIM:(hi + 1) * HEAD_DIM] for hi in range(HEADS)],
            axis=0).astype(jnp.bfloat16)

    qh, kh, vh = split_heads(q), split_heads(k), split_heads(v)

    # mask padded key columns (token index >= N) so nothing attends to pad
    col = jax.lax.broadcasted_iota(jnp.int32, (1, 1, N_PAD), 2)
    key_bias = jnp.where(col < N, 0.0, -1e30)

    s = jnp.einsum("bqd,bkd->bqk", qh, kh,
                   preferred_element_type=jnp.float32) + key_bias
    s = s - jnp.max(s, axis=-1, keepdims=True)
    p = jnp.exp(s)
    p = p * pl.reciprocal(jnp.sum(p, axis=-1, keepdims=True), approx=True)
    o = jnp.einsum("bqk,bkd->bqd", p.astype(jnp.bfloat16), vh,
                   preferred_element_type=jnp.float32)    # (B*H, Np, HD) f32

    # heads back into the two 128-lane halves -> ONE (BN,D)@(D,D) projection
    o_merged = jnp.concatenate(
        [o[hi * B:(hi + 1) * B].reshape(BN, HEAD_DIM) for hi in range(HEADS)],
        axis=-1).astype(jnp.bfloat16)                     # (BN, D) bf16
    attn = jnp.dot(o_merged, projw_ref[0],
                   preferred_element_type=jnp.float32) + projb_ref[0]
    x = x + attn

    # ---------------- MLP branch (pre-norm) ----------------
    h2 = _layernorm(x, ln2w_ref[0], ln2b_ref[0])
    h2 = jnp.dot(h2.astype(jnp.bfloat16), fc1w_ref[0],
                 preferred_element_type=jnp.float32) + fc1b_ref[0]
    h2 = _gelu_tanh(h2.astype(jnp.bfloat16))              # bf16 EUP/VPU path
    h2 = jnp.dot(h2, fc2w_ref[0],
                 preferred_element_type=jnp.float32) + fc2b_ref[0]
    x = x + h2
    x_scr[...] = x

    # ---- last layer: final LayerNorm on the CLS row only, write output ----
    @pl.when(layer == DEPTH - 1)
    def _():
        cls = x.reshape(B, N_PAD, D)[:, 0, :]             # (B, D)
        o_ref[...] = _layernorm(cls, nw_ref[...], nb_ref[...])


def vit_forward_fused(patches_flat, token_bias, p):
    def c2(shape):                 # constant (fetched once) full-array block
        return pl.BlockSpec(shape, lambda l: (0, 0))

    def per_layer(full_shape):     # stream one layer's weights per grid step
        return pl.BlockSpec((1,) + tuple(full_shape[1:]),
                            lambda l: (l, 0, 0))

    in_specs = [
        c2((BN, PATCH_DIM)),                    # patches (bf16)
        c2((PATCH_DIM, D)),                     # patch embed weight (bf16)
        c2((BN, D)),                            # token bias (cls/pos/bias, f32)
        per_layer((DEPTH, 1, D)), per_layer((DEPTH, 1, D)),          # ln1 w,b
        per_layer((DEPTH, D, 3 * D)), per_layer((DEPTH, 1, 3 * D)),  # qkv w,b
        per_layer((DEPTH, D, D)), per_layer((DEPTH, 1, D)),          # proj w,b
        per_layer((DEPTH, 1, D)), per_layer((DEPTH, 1, D)),          # ln2 w,b
        per_layer((DEPTH, D, MLP_H)), per_layer((DEPTH, 1, MLP_H)),  # fc1 w,b
        per_layer((DEPTH, MLP_H, D)), per_layer((DEPTH, 1, D)),      # fc2 w,b
        c2((1, D)), c2((1, D)),                 # final norm w,b
    ]
    return pl.pallas_call(
        vit_fused_kernel,
        out_shape=jax.ShapeDtypeStruct((B, D), jnp.float32),
        grid=(DEPTH,),
        in_specs=in_specs,
        out_specs=pl.BlockSpec((B, D), lambda l: (0, 0)),
        scratch_shapes=[pltpu.VMEM((BN, D), jnp.float32)],  # resident activations
        compiler_params=pltpu.CompilerParams(
            dimension_semantics=("arbitrary",),   # depth is sequential
            vmem_limit_bytes=16 * 1024 * 1024,    # right-sized (~4-5 MiB used)
        ),
    )(patches_flat, p["patch_w"], token_bias,
      p["ln1_w"], p["ln1_b"], p["qkv_w"], p["qkv_b"], p["proj_w"], p["proj_b"],
      p["ln2_w"], p["ln2_b"], p["fc1_w"], p["fc1_b"], p["fc2_w"], p["fc2_b"],
      p["norm_w"], p["norm_b"])


# ----------------------------- parameters -----------------------------------
def init_params(key):
    ks = jax.random.split(key, 16)
    it = iter(ks)

    def nrm(shape, std=0.02):
        return std * jax.random.normal(next(it), shape, dtype=jnp.float32)

    # patch embed: PyTorch conv weight (D, C, P, P) -> (C*P*P, D) matmul weight
    conv_w = nrm((D, C_IN, PATCH, PATCH))

    # qkv weight/bias with the attention scale pre-folded into the Q columns
    qkv_w = nrm((DEPTH, D, 3 * D))
    qkv_w = qkv_w.at[:, :, 0:D].multiply(SCALE)
    qkv_b = jnp.zeros((DEPTH, 1, 3 * D), jnp.float32)
    qkv_b = qkv_b.at[:, :, 0:D].multiply(SCALE)

    return dict(
        patch_w=conv_w.reshape(D, PATCH_DIM).T.astype(jnp.bfloat16),
        patch_b=jnp.zeros((D,), jnp.float32),
        cls=nrm((1, 1, D)),
        pos=nrm((1, N, D)),
        ln1_w=jnp.ones((DEPTH, 1, D), jnp.float32),
        ln1_b=jnp.zeros((DEPTH, 1, D), jnp.float32),
        qkv_w=qkv_w.astype(jnp.bfloat16),
        qkv_b=qkv_b,
        proj_w=nrm((DEPTH, D, D)).astype(jnp.bfloat16),
        proj_b=jnp.zeros((DEPTH, 1, D), jnp.float32),
        ln2_w=jnp.ones((DEPTH, 1, D), jnp.float32),
        ln2_b=jnp.zeros((DEPTH, 1, D), jnp.float32),
        fc1_w=nrm((DEPTH, D, MLP_H)).astype(jnp.bfloat16),
        fc1_b=jnp.zeros((DEPTH, 1, MLP_H), jnp.float32),
        fc2_w=nrm((DEPTH, MLP_H, D)).astype(jnp.bfloat16),
        fc2_b=jnp.zeros((DEPTH, 1, D), jnp.float32),
        norm_w=jnp.ones((1, D), jnp.float32),
        norm_b=jnp.zeros((1, D), jnp.float32),
    )


# ----------------------------- forward --------------------------------------
def vit_image_encoder(x_nchw, params):
    # patchify (tiny plain-JAX glue): NCHW -> (B, NP, C*P*P), conv-as-matmul order
    b, c, h, w = x_nchw.shape
    gh, gw = h // PATCH, w // PATCH
    patches = x_nchw.reshape(b, c, gh, PATCH, gw, PATCH)
    patches = patches.transpose(0, 2, 4, 1, 3, 5)          # (B, gh, gw, C, P, P)
    patches = patches.reshape(b, gh * gw, PATCH_DIM)

    # pad token rows to N_PAD: row 0 = CLS slot (zeros), rows 1..NP = patches,
    # remaining rows = zero padding; flatten batch into the row axis.
    patches_pad = jnp.zeros((b, N_PAD, PATCH_DIM), jnp.float32)
    patches_pad = patches_pad.at[:, 1:1 + NP, :].set(patches)
    patches_flat = patches_pad.reshape(b * N_PAD, PATCH_DIM).astype(jnp.bfloat16)

    # token bias: row 0 -> cls + pos[0]; patch rows -> patch_b + pos[i]; pad -> 0
    tb = jnp.zeros((N_PAD, D), jnp.float32)
    tb = tb.at[0, :].set(params["cls"][0, 0] + params["pos"][0, 0])
    tb = tb.at[1:1 + NP, :].set(params["patch_b"][None, :]
                                + params["pos"][0, 1:1 + NP])
    token_bias = jnp.tile(tb, (b, 1))                      # (B*N_PAD, D)

    return vit_forward_fused(patches_flat, token_bias, params)   # (B, D)


if __name__ == "__main__":
    key = jax.random.PRNGKey(0)
    k_x, k_p = jax.random.split(key)
    x = jax.random.normal(k_x, (B, C_IN, IMG, IMG), dtype=jnp.float32)  # NCHW
    params = init_params(k_p)

    out = jax.jit(vit_image_encoder)(x, params)
    out = jax.block_until_ready(out)
    assert out.shape == (B, D), out.shape
    assert bool(jnp.all(jnp.isfinite(out)))
    print("KERNEL_OK")
</pallas_src>

<mosaic_0001>
module attributes {stable_mosaic.version = 11 : i64} {
  func.func @vit_fused_kernel(%arg0: i32, %arg1: memref<16x768xbf16, #tpu.memory_space<vmem>>, %arg2: memref<768x256xbf16, #tpu.memory_space<vmem>>, %arg3: memref<16x256xf32, #tpu.memory_space<vmem>>, %arg4: memref<1x1x256xf32, #tpu.memory_space<vmem>>, %arg5: memref<1x1x256xf32, #tpu.memory_space<vmem>>, %arg6: memref<1x256x768xbf16, #tpu.memory_space<vmem>>, %arg7: memref<1x1x768xf32, #tpu.memory_space<vmem>>, %arg8: memref<1x256x256xbf16, #tpu.memory_space<vmem>>, %arg9: memref<1x1x256xf32, #tpu.memory_space<vmem>>, %arg10: memref<1x1x256xf32, #tpu.memory_space<vmem>>, %arg11: memref<1x1x256xf32, #tpu.memory_space<vmem>>, %arg12: memref<1x256x1024xbf16, #tpu.memory_space<vmem>>, %arg13: memref<1x1x1024xf32, #tpu.memory_space<vmem>>, %arg14: memref<1x1024x256xbf16, #tpu.memory_space<vmem>>, %arg15: memref<1x1x256xf32, #tpu.memory_space<vmem>>, %arg16: memref<1x256xf32, #tpu.memory_space<vmem>>, %arg17: memref<1x256xf32, #tpu.memory_space<vmem>>, %arg18: memref<2x256xf32, #tpu.memory_space<vmem>>, %arg19: memref<16x256xf32, #tpu.memory_space<vmem>>) attributes {dimension_semantics = [#tpu.dimension_semantics<arbitrary>], iteration_bounds = array<i64: 2>, scalar_prefetch = 0 : i64, scratch_operands = 1 : i64, tpu.core_type = #tpu.core_type<tc>, window_params = [{pipeline_mode = #tpu.pipeline_mode<synchronous>, transform_indices = @transform_0, window_bounds = array<i64: 16, 768>}, {pipeline_mode = #tpu.pipeline_mode<synchronous>, transform_indices = @transform_1, window_bounds = array<i64: 768, 256>}, {pipeline_mode = #tpu.pipeline_mode<synchronous>, transform_indices = @transform_2, window_bounds = array<i64: 16, 256>}, {transform_indices = @transform_3, window_bounds = array<i64: 1, 1, 256>}, {transform_indices = @transform_4, window_bounds = array<i64: 1, 1, 256>}, {transform_indices = @transform_5, window_bounds = array<i64: 1, 256, 768>}, {transform_indices = @transform_6, window_bounds = array<i64: 1, 1, 768>}, {transform_indices = @transform_7, window_bounds = array<i64: 1, 256, 256>}, {transform_indices = @transform_8, window_bounds = array<i64: 1, 1, 256>}, {transform_indices = @transform_9, window_bounds = array<i64: 1, 1, 256>}, {transform_indices = @transform_10, window_bounds = array<i64: 1, 1, 256>}, {transform_indices = @transform_11, window_bounds = array<i64: 1, 256, 1024>}, {transform_indices = @transform_12, window_bounds = array<i64: 1, 1, 1024>}, {transform_indices = @transform_13, window_bounds = array<i64: 1, 1024, 256>}, {transform_indices = @transform_14, window_bounds = array<i64: 1, 1, 256>}, {pipeline_mode = #tpu.pipeline_mode<synchronous>, transform_indices = @transform_15, window_bounds = array<i64: 1, 256>}, {pipeline_mode = #tpu.pipeline_mode<synchronous>, transform_indices = @transform_16, window_bounds = array<i64: 1, 256>}, {pipeline_mode = #tpu.pipeline_mode<synchronous>, transform_indices = @transform_17, window_bounds = array<i64: 2, 256>}]} {
    %c0_i32 = arith.constant 0 : i32
    %0 = arith.cmpi eq, %arg0, %c0_i32 : i32
    %1 = arith.extui %0 : i1 to i32
    %c0_i32_0 = arith.constant 0 : i32
    %2 = arith.cmpi ne, %1, %c0_i32_0 : i32
    scf.if %2 {
      %c0_64 = arith.constant 0 : index
      %c0_65 = arith.constant 0 : index
      %151 = vector.load %arg1[%c0_64, %c0_65] : memref<16x768xbf16, #tpu.memory_space<vmem>>, vector<16x768xbf16>
      %c0_66 = arith.constant 0 : index
      %c0_67 = arith.constant 0 : index
      %152 = vector.load %arg2[%c0_66, %c0_67] : memref<768x256xbf16, #tpu.memory_space<vmem>>, vector<768x256xbf16>
      %cst_68 = arith.constant dense<0.000000e+00> : vector<16x256xf32>
      %153 = tpu.matmul %151, %152, %cst_68 {dimension_numbers = #tpu.dot_dimension_numbers<[1], [0], [0], [1], [0, 0, 1, 1], [], []>} : vector<16x768xbf16>, vector<768x256xbf16>, vector<16x256xf32> -> vector<16x256xf32>
      %c0_69 = arith.constant 0 : index
      %c0_70 = arith.constant 0 : index
      %154 = vector.load %arg3[%c0_69, %c0_70] : memref<16x256xf32, #tpu.memory_space<vmem>>, vector<16x256xf32>
      %155 = arith.addf %153, %154 : vector<16x256xf32>
      %c0_71 = arith.constant 0 : index
      %c0_72 = arith.constant 0 : index
      %156 = vector.load %arg19[%c0_71, %c0_72] : memref<16x256xf32, #tpu.memory_space<vmem>>, vector<16x256xf32>
      tpu.vector_store %arg19[%c0_71, %c0_72], %155 {strides = array<i32>} : memref<16x256xf32, #tpu.memory_space<vmem>>, vector<16x256xf32>,
    } else {
    }
    %c0 = arith.constant 0 : index
    %c0_1 = arith.constant 0 : index
    %3 = vector.load %arg19[%c0, %c0_1] : memref<16x256xf32, #tpu.memory_space<vmem>>, vector<16x256xf32>
    %c0_2 = arith.constant 0 : index
    %c0_3 = arith.constant 0 : index
    %c0_4 = arith.constant 0 : index
    %4 = vector.load %arg4[%c0_2, %c0_3, %c0_4] : memref<1x1x256xf32, #tpu.memory_space<vmem>>, vector<1x1x256xf32>
    %5 = vector.shape_cast %4 : vector<1x1x256xf32> to vector<1x256xf32>
    %c0_5 = arith.constant 0 : index
    %c0_6 = arith.constant 0 : index
    %c0_7 = arith.constant 0 : index
    %6 = vector.load %arg5[%c0_5, %c0_6, %c0_7] : memref<1x1x256xf32, #tpu.memory_space<vmem>>, vector<1x1x256xf32>
    %7 = vector.shape_cast %6 : vector<1x1x256xf32> to vector<1x256xf32>
    %cst = arith.constant dense<0.000000e+00> : vector<16xf32>
    %8 = vector.multi_reduction <add>, %3, %cst [1] : vector<16x256xf32> to vector<16xf32>
    %9 = vector.shape_cast %8 : vector<16xf32> to vector<16x1xf32>
    %cst_8 = arith.constant 2.560000e+02 : f32
    %10 = vector.broadcast %cst_8 : f32 to vector<16x1xf32>
    %11 = arith.divf %9, %10 : vector<16x1xf32>
    %12 = vector.broadcast %11 : vector<16x1xf32> to vector<16x256xf32>
    %13 = arith.subf %3, %12 : vector<16x256xf32>
    %14 = arith.mulf %13, %13 : vector<16x256xf32>
    %cst_9 = arith.constant dense<0.000000e+00> : vector<16xf32>
    %15 = vector.multi_reduction <add>, %14, %cst_9 [1] : vector<16x256xf32> to vector<16xf32>
    %16 = vector.shape_cast %15 : vector<16xf32> to vector<16x1xf32>
    %cst_10 = arith.constant 2.560000e+02 : f32
    %17 = vector.broadcast %cst_10 : f32 to vector<16x1xf32>
    %18 = arith.divf %16, %17 : vector<16x1xf32>
    %19 = vector.broadcast %11 : vector<16x1xf32> to vector<16x256xf32>
    %20 = arith.subf %3, %19 : vector<16x256xf32>
    %cst_11 = arith.constant 9.99999997E-7 : f32
    %21 = vector.broadcast %cst_11 : f32 to vector<16x1xf32>
    %22 = arith.addf %18, %21 : vector<16x1xf32>
    %23 = math.rsqrt %22 : vector<16x1xf32>
    %24 = vector.broadcast %23 : vector<16x1xf32> to vector<16x256xf32>
    %25 = arith.mulf %20, %24 : vector<16x256xf32>
    %26 = vector.broadcast %5 : vector<1x256xf32> to vector<16x256xf32>
    %27 = arith.mulf %25, %26 : vector<16x256xf32>
    %28 = vector.broadcast %7 : vector<1x256xf32> to vector<16x256xf32>
    %29 = arith.addf %27, %28 : vector<16x256xf32>
    %30 = arith.truncf %29 : vector<16x256xf32> to vector<16x256xbf16>
    %c0_12 = arith.constant 0 : index
    %c0_13 = arith.constant 0 : index
    %c0_14 = arith.constant 0 : index
    %31 = vector.load %arg6[%c0_12, %c0_13, %c0_14] : memref<1x256x768xbf16, #tpu.memory_space<vmem>>, vector<1x256x768xbf16>
    %32 = vector.shape_cast %31 : vector<1x256x768xbf16> to vector<256x768xbf16>
    %cst_15 = arith.constant dense<0.000000e+00> : vector<16x768xf32>
    %33 = tpu.matmul %30, %32, %cst_15 {dimension_numbers = #tpu.dot_dimension_numbers<[1], [0], [0], [1], [0, 0, 1, 1], [], []>} : vector<16x256xbf16>, vector<256x768xbf16>, vector<16x768xf32> -> vector<16x768xf32>
    %c0_16 = arith.constant 0 : index
    %c0_17 = arith.constant 0 : index
    %c0_18 = arith.constant 0 : index
    %34 = vector.load %arg7[%c0_16, %c0_17, %c0_18] : memref<1x1x768xf32, #tpu.memory_space<vmem>>, vector<1x1x768xf32>
    %35 = vector.shape_cast %34 : vector<1x1x768xf32> to vector<1x768xf32>
    %36 = vector.broadcast %35 : vector<1x768xf32> to vector<16x768xf32>
    %37 = arith.addf %33, %36 : vector<16x768xf32>
    %38 = vector.extract_strided_slice %37 {offsets = [0, 0], sizes = [16, 256], strides = [1, 1]} : vector<16x768xf32> to vector<16x256xf32>
    %39 = vector.shape_cast %38 : vector<16x256xf32> to vector<2x8x256xf32>
    %40 = vector.extract_strided_slice %37 {offsets = [0, 256], sizes = [16, 256], strides = [1, 1]} : vector<16x768xf32> to vector<16x256xf32>
    %41 = vector.shape_cast %40 : vector<16x256xf32> to vector<2x8x256xf32>
    %42 = vector.extract_strided_slice %37 {offsets = [0, 512], sizes = [16, 256], strides = [1, 1]} : vector<16x768xf32> to vector<16x256xf32>
    %43 = vector.shape_cast %42 : vector<16x256xf32> to vector<2x8x256xf32>
    %44 = vector.extract_strided_slice %39 {offsets = [0, 0, 0], sizes = [2, 8, 128], strides = [1, 1, 1]} : vector<2x8x256xf32> to vector<2x8x128xf32>
    %45 = vector.extract_strided_slice %39 {offsets = [0, 0, 128], sizes = [2, 8, 128], strides = [1, 1, 1]} : vector<2x8x256xf32> to vector<2x8x128xf32>
    %46 = tpu.concatenate %44, %45 in 0 : vector<2x8x128xf32>, vector<2x8x128xf32> -> vector<4x8x128xf32>
    %47 = arith.truncf %46 : vector<4x8x128xf32> to vector<4x8x128xbf16>
    %48 = vector.extract_strided_slice %41 {offsets = [0, 0, 0], sizes = [2, 8, 128], strides = [1, 1, 1]} : vector<2x8x256xf32> to vector<2x8x128xf32>
    %49 = vector.extract_strided_slice %41 {offsets = [0, 0, 128], sizes = [2, 8, 128], strides = [1, 1, 1]} : vector<2x8x256xf32> to vector<2x8x128xf32>
    %50 = tpu.concatenate %48, %49 in 0 : vector<2x8x128xf32>, vector<2x8x128xf32> -> vector<4x8x128xf32>
    %51 = arith.truncf %50 : vector<4x8x128xf32> to vector<4x8x128xbf16>
    %52 = vector.extract_strided_slice %43 {offsets = [0, 0, 0], sizes = [2, 8, 128], strides = [1, 1, 1]} : vector<2x8x256xf32> to vector<2x8x128xf32>
    %53 = vector.extract_strided_slice %43 {offsets = [0, 0, 128], sizes = [2, 8, 128], strides = [1, 1, 1]} : vector<2x8x256xf32> to vector<2x8x128xf32>
    %54 = tpu.concatenate %52, %53 in 0 : vector<2x8x128xf32>, vector<2x8x128xf32> -> vector<4x8x128xf32>
    %55 = arith.truncf %54 : vector<4x8x128xf32> to vector<4x8x128xbf16>
    %56 = tpu.iota {dimensions = array<i32: 2>} : vector<1x1x8xi32>
    %c5_i32 = arith.constant 5 : i32
    %57 = vector.broadcast %c5_i32 : i32 to vector<1x1x8xi32>
    %58 = arith.cmpi slt, %56, %57 : vector<1x1x8xi32>
    %cst_19 = arith.constant 0.000000e+00 : f32
    %cst_20 = arith.constant -1.000000e+30 : f32
    %59 = vector.broadcast %cst_19 : f32 to vector<1x1x8xf32>
    %60 = vector.broadcast %cst_20 : f32 to vector<1x1x8xf32>
    %61 = arith.select %58, %59, %60 : vector<1x1x8xi1>, vector<1x1x8xf32>
    "tpu.trace_start"() <{level = 10 : i32, message = "bqd,bkd->bqk"}> : () -> ()
    %cst_21 = arith.constant dense<0.000000e+00> : vector<4x8x8xf32>
    %62 = tpu.matmul %47, %51, %cst_21 {dimension_numbers = #tpu.dot_dimension_numbers<[2], [2], [1], [1], [0, 0, 0, 1, 1, 1], [0], [0]>} : vector<4x8x128xbf16>, vector<4x8x128xbf16>, vector<4x8x8xf32> -> vector<4x8x8xf32>
    "tpu.trace_stop"() : () -> ()
    %63 = vector.broadcast %61 : vector<1x1x8xf32> to vector<4x8x8xf32>
    %64 = arith.addf %62, %63 : vector<4x8x8xf32>
    %cst_22 = arith.constant dense<0xFF800000> : vector<4x8xf32>
    %65 = vector.multi_reduction <maximumf>, %64, %cst_22 [2] : vector<4x8x8xf32> to vector<4x8xf32>
    %66 = vector.shape_cast %65 : vector<4x8xf32> to vector<4x8x1xf32>
    %67 = vector.broadcast %66 : vector<4x8x1xf32> to vector<4x8x8xf32>
    %68 = arith.subf %64, %67 : vector<4x8x8xf32>
    %69 = math.exp %68 : vector<4x8x8xf32>
    %cst_23 = arith.constant dense<0.000000e+00> : vector<4x8xf32>
    %70 = vector.multi_reduction <add>, %69, %cst_23 [2] : vector<4x8x8xf32> to vector<4x8xf32>
    %71 = vector.shape_cast %70 : vector<4x8xf32> to vector<4x8x1xf32>
    %72 = tpu.reciprocal %71 {approx = true} : vector<4x8x1xf32> -> vector<4x8x1xf32>
    %73 = vector.broadcast %72 : vector<4x8x1xf32> to vector<4x8x8xf32>
    %74 = arith.mulf %69, %73 : vector<4x8x8xf32>
    %75 = arith.truncf %74 : vector<4x8x8xf32> to vector<4x8x8xbf16>
    "tpu.trace_start"() <{level = 10 : i32, message = "bqk,bkd->bqd"}> : () -> ()
    %cst_24 = arith.constant dense<0.000000e+00> : vector<4x8x128xf32>
    %76 = tpu.matmul %75, %55, %cst_24 {dimension_numbers = #tpu.dot_dimension_numbers<[2], [1], [1], [2], [0, 0, 0, 1, 1, 2], [0], [0]>} : vector<4x8x8xbf16>, vector<4x8x128xbf16>, vector<4x8x128xf32> -> vector<4x8x128xf32>
    "tpu.trace_stop"() : () -> ()
    %77 = vector.extract_strided_slice %76 {offsets = [0, 0, 0], sizes = [2, 8, 128], strides = [1, 1, 1]} : vector<4x8x128xf32> to vector<2x8x128xf32>
    %78 = vector.shape_cast %77 : vector<2x8x128xf32> to vector<16x128xf32>
    %79 = vector.extract_strided_slice %76 {offsets = [2, 0, 0], sizes = [2, 8, 128], strides = [1, 1, 1]} : vector<4x8x128xf32> to vector<2x8x128xf32>
    %80 = vector.shape_cast %79 : vector<2x8x128xf32> to vector<16x128xf32>
    %81 = tpu.concatenate %78, %80 in 1 : vector<16x128xf32>, vector<16x128xf32> -> vector<16x256xf32>
    %82 = arith.truncf %81 : vector<16x256xf32> to vector<16x256xbf16>
    %c0_25 = arith.constant 0 : index
    %c0_26 = arith.constant 0 : index
    %c0_27 = arith.constant 0 : index
    %83 = vector.load %arg8[%c0_25, %c0_26, %c0_27] : memref<1x256x256xbf16, #tpu.memory_space<vmem>>, vector<1x256x256xbf16>
    %84 = vector.shape_cast %83 : vector<1x256x256xbf16> to vector<256x256xbf16>
    %cst_28 = arith.constant dense<0.000000e+00> : vector<16x256xf32>
    %85 = tpu.matmul %82, %84, %cst_28 {dimension_numbers = #tpu.dot_dimension_numbers<[1], [0], [0], [1], [0, 0, 1, 1], [], []>} : vector<16x256xbf16>, vector<256x256xbf16>, vector<16x256xf32> -> vector<16x256xf32>
    %c0_29 = arith.constant 0 : index
    %c0_30 = arith.constant 0 : index
    %c0_31 = arith.constant 0 : index
    %86 = vector.load %arg9[%c0_29, %c0_30, %c0_31] : memref<1x1x256xf32, #tpu.memory_space<vmem>>, vector<1x1x256xf32>
    %87 = vector.shape_cast %86 : vector<1x1x256xf32> to vector<1x256xf32>
    %88 = vector.broadcast %87 : vector<1x256xf32> to vector<16x256xf32>
    %89 = arith.addf %85, %88 : vector<16x256xf32>
    %90 = arith.addf %3, %89 : vector<16x256xf32>
    %c0_32 = arith.constant 0 : index
    %c0_33 = arith.constant 0 : index
    %c0_34 = arith.constant 0 : index
    %91 = vector.load %arg10[%c0_32, %c0_33, %c0_34] : memref<1x1x256xf32, #tpu.memory_space<vmem>>, vector<1x1x256xf32>
    %92 = vector.shape_cast %91 : vector<1x1x256xf32> to vector<1x256xf32>
    %c0_35 = arith.constant 0 : index
    %c0_36 = arith.constant 0 : index
    %c0_37 = arith.constant 0 : index
    %93 = vector.load %arg11[%c0_35, %c0_36, %c0_37] : memref<1x1x256xf32, #tpu.memory_space<vmem>>, vector<1x1x256xf32>
    %94 = vector.shape_cast %93 : vector<1x1x256xf32> to vector<1x256xf32>
    %cst_38 = arith.constant dense<0.000000e+00> : vector<16xf32>
    %95 = vector.multi_reduction <add>, %90, %cst_38 [1] : vector<16x256xf32> to vector<16xf32>
    %96 = vector.shape_cast %95 : vector<16xf32> to vector<16x1xf32>
    %cst_39 = arith.constant 2.560000e+02 : f32
    %97 = vector.broadcast %cst_39 : f32 to vector<16x1xf32>
    %98 = arith.divf %96, %97 : vector<16x1xf32>
    %99 = vector.broadcast %98 : vector<16x1xf32> to vector<16x256xf32>
    %100 = arith.subf %90, %99 : vector<16x256xf32>
    %101 = arith.mulf %100, %100 : vector<16x256xf32>
    %cst_40 = arith.constant dense<0.000000e+00> : vector<16xf32>
    %102 = vector.multi_reduction <add>, %101, %cst_40 [1] : vector<16x256xf32> to vector<16xf32>
    %103 = vector.shape_cast %102 : vector<16xf32> to vector<16x1xf32>
    %cst_41 = arith.constant 2.560000e+02 : f32
    %104 = vector.broadcast %cst_41 : f32 to vector<16x1xf32>
    %105 = arith.divf %103, %104 : vector<16x1xf32>
    %106 = vector.broadcast %98 : vector<16x1xf32> to vector<16x256xf32>
    %107 = arith.subf %90, %106 : vector<16x256xf32>
    %cst_42 = arith.constant 9.99999997E-7 : f32
    %108 = vector.broadcast %cst_42 : f32 to vector<16x1xf32>
    %109 = arith.addf %105, %108 : vector<16x1xf32>
    %110 = math.rsqrt %109 : vector<16x1xf32>
    %111 = vector.broadcast %110 : vector<16x1xf32> to vector<16x256xf32>
    %112 = arith.mulf %107, %111 : vector<16x256xf32>
    %113 = vector.broadcast %92 : vector<1x256xf32> to vector<16x256xf32>
    %114 = arith.mulf %112, %113 : vector<16x256xf32>
    %115 = vector.broadcast %94 : vector<1x256xf32> to vector<16x256xf32>
    %116 = arith.addf %114, %115 : vector<16x256xf32>
    %117 = arith.truncf %116 : vector<16x256xf32> to vector<16x256xbf16>
    %c0_43 = arith.constant 0 : index
    %c0_44 = arith.constant 0 : index
    %c0_45 = arith.constant 0 : index
    %118 = vector.load %arg12[%c0_43, %c0_44, %c0_45] : memref<1x256x1024xbf16, #tpu.memory_space<vmem>>, vector<1x256x1024xbf16>
    %119 = vector.shape_cast %118 : vector<1x256x1024xbf16> to vector<256x1024xbf16>
    %cst_46 = arith.constant dense<0.000000e+00> : vector<16x1024xf32>
    %120 = tpu.matmul %117, %119, %cst_46 {dimension_numbers = #tpu.dot_dimension_numbers<[1], [0], [0], [1], [0, 0, 1, 1], [], []>} : vector<16x256xbf16>, vector<256x1024xbf16>, vector<16x1024xf32> -> vector<16x1024xf32>
    %c0_47 = arith.constant 0 : index
    %c0_48 = arith.constant 0 : index
    %c0_49 = arith.constant 0 : index
    %121 = vector.load %arg13[%c0_47, %c0_48, %c0_49] : memref<1x1x1024xf32, #tpu.memory_space<vmem>>, vector<1x1x1024xf32>
    %122 = vector.shape_cast %121 : vector<1x1x1024xf32> to vector<1x1024xf32>
    %123 = vector.broadcast %122 : vector<1x1024xf32> to vector<16x1024xf32>
    %124 = arith.addf %120, %123 : vector<16x1024xf32>
    %125 = arith.truncf %124 : vector<16x1024xf32> to vector<16x1024xbf16>
    %cst_50 = arith.constant 5.000000e-01 : bf16
    %126 = vector.broadcast %cst_50 : bf16 to vector<16x1024xbf16>
    %127 = arith.mulf %126, %125 : vector<16x1024xbf16>
    %cst_51 = arith.constant 4.467770e-02 : bf16
    %128 = vector.broadcast %cst_51 : bf16 to vector<16x1024xbf16>
    %129 = arith.mulf %128, %125 : vector<16x1024xbf16>
    %130 = arith.mulf %129, %125 : vector<16x1024xbf16>
    %131 = arith.mulf %130, %125 : vector<16x1024xbf16>
    %132 = arith.addf %125, %131 : vector<16x1024xbf16>
    %cst_52 = arith.constant 7.968750e-01 : bf16
    %133 = vector.broadcast %cst_52 : bf16 to vector<16x1024xbf16>
    %134 = arith.mulf %133, %132 : vector<16x1024xbf16>
    %135 = math.tanh %134 : vector<16x1024xbf16>
    %cst_53 = arith.constant 1.000000e+00 : bf16
    %136 = vector.broadcast %cst_53 : bf16 to vector<16x1024xbf16>
    %137 = arith.addf %136, %135 : vector<16x1024xbf16>
    %138 = arith.mulf %127, %137 : vector<16x1024xbf16>
    %c0_54 = arith.constant 0 : index
    %c0_55 = arith.constant 0 : index
    %c0_56 = arith.constant 0 : index
    %139 = vector.load %arg14[%c0_54, %c0_55, %c0_56] : memref<1x1024x256xbf16, #tpu.memory_space<vmem>>, vector<1x1024x256xbf16>
    %140 = vector.shape_cast %139 : vector<1x1024x256xbf16> to vector<1024x256xbf16>
    %cst_57 = arith.constant dense<0.000000e+00> : vector<16x256xf32>
    %141 = tpu.matmul %138, %140, %cst_57 {dimension_numbers = #tpu.dot_dimension_numbers<[1], [0], [0], [1], [0, 0, 1, 1], [], []>} : vector<16x1024xbf16>, vector<1024x256xbf16>, vector<16x256xf32> -> vector<16x256xf32>
    %c0_58 = arith.constant 0 : index
    %c0_59 = arith.constant 0 : index
    %c0_60 = arith.constant 0 : index
    %142 = vector.load %arg15[%c0_58, %c0_59, %c0_60] : memref<1x1x256xf32, #tpu.memory_space<vmem>>, vector<1x1x256xf32>
    %143 = vector.shape_cast %142 : vector<1x1x256xf32> to vector<1x256xf32>
    %144 = vector.broadcast %143 : vector<1x256xf32> to vector<16x256xf32>
    %145 = arith.addf %141, %144 : vector<16x256xf32>
    %146 = arith.addf %90, %145 : vector<16x256xf32>
    %c0_61 = arith.constant 0 : index
    %c0_62 = arith.constant 0 : index
    %147 = vector.load %arg19[%c0_61, %c0_62] : memref<16x256xf32, #tpu.memory_space<vmem>>, vector<16x256xf32>
    tpu.vector_store %arg19[%c0_61, %c0_62], %146 {strides = array<i32>} : memref<16x256xf32, #tpu.memory_space<vmem>>, vector<16x256xf32>,
    %c1_i32 = arith.constant 1 : i32
    %148 = arith.cmpi eq, %arg0, %c1_i32 : i32
    %149 = arith.extui %148 : i1 to i32
    %c0_i32_63 = arith.constant 0 : i32
    %150 = arith.cmpi ne, %149, %c0_i32_63 : i32
    scf.if %150 {
      %151 = vector.shape_cast %146 : vector<16x256xf32> to vector<2x8x256xf32>
      %152 = vector.extract_strided_slice %151 {offsets = [0, 0, 0], sizes = [2, 1, 256], strides = [1, 1, 1]} : vector<2x8x256xf32> to vector<2x1x256xf32>
      %153 = vector.shape_cast %152 : vector<2x1x256xf32> to vector<2x256xf32>
      %c0_64 = arith.constant 0 : index
      %c0_65 = arith.constant 0 : index
      %154 = vector.load %arg16[%c0_64, %c0_65] : memref<1x256xf32, #tpu.memory_space<vmem>>, vector<1x256xf32>
      %c0_66 = arith.constant 0 : index
      %c0_67 = arith.constant 0 : index
      %155 = vector.load %arg17[%c0_66, %c0_67] : memref<1x256xf32, #tpu.memory_space<vmem>>, vector<1x256xf32>
      %cst_68 = arith.constant dense<0.000000e+00> : vector<2xf32>
      %156 = vector.multi_reduction <add>, %153, %cst_68 [1] : vector<2x256xf32> to vector<2xf32>
      %157 = vector.shape_cast %156 : vector<2xf32> to vector<2x1xf32>
      %cst_69 = arith.constant 2.560000e+02 : f32
      %158 = vector.broadcast %cst_69 : f32 to vector<2x1xf32>
      %159 = arith.divf %157, %158 : vector<2x1xf32>
      %160 = vector.broadcast %159 : vector<2x1xf32> to vector<2x256xf32>
      %161 = arith.subf %153, %160 : vector<2x256xf32>
      %162 = arith.mulf %161, %161 : vector<2x256xf32>
      %cst_70 = arith.constant dense<0.000000e+00> : vector<2xf32>
      %163 = vector.multi_reduction <add>, %162, %cst_70 [1] : vector<2x256xf32> to vector<2xf32>
      %164 = vector.shape_cast %163 : vector<2xf32> to vector<2x1xf32>
      %cst_71 = arith.constant 2.560000e+02 : f32
      %165 = vector.broadcast %cst_71 : f32 to vector<2x1xf32>
      %166 = arith.divf %164, %165 : vector<2x1xf32>
      %167 = vector.broadcast %159 : vector<2x1xf32> to vector<2x256xf32>
      %168 = arith.subf %153, %167 : vector<2x256xf32>
      %cst_72 = arith.constant 9.99999997E-7 : f32
      %169 = vector.broadcast %cst_72 : f32 to vector<2x1xf32>
      %170 = arith.addf %166, %169 : vector<2x1xf32>
      %171 = math.rsqrt %170 : vector<2x1xf32>
      %172 = vector.broadcast %171 : vector<2x1xf32> to vector<2x256xf32>
      %173 = arith.mulf %168, %172 : vector<2x256xf32>
      %174 = vector.broadcast %154 : vector<1x256xf32> to vector<2x256xf32>
      %175 = arith.mulf %173, %174 : vector<2x256xf32>
      %176 = vector.broadcast %155 : vector<1x256xf32> to vector<2x256xf32>
      %177 = arith.addf %175, %176 : vector<2x256xf32>
      %c0_73 = arith.constant 0 : index
      %c0_74 = arith.constant 0 : index
      %178 = vector.load %arg18[%c0_73, %c0_74] : memref<2x256xf32, #tpu.memory_space<vmem>>, vector<2x256xf32>
      tpu.vector_store %arg18[%c0_73, %c0_74], %177 {strides = array<i32>} : memref<2x256xf32, #tpu.memory_space<vmem>>, vector<2x256xf32>,
    } else {
    }
    return
  }
  func.func @transform_0(%arg0: i32) -> (i32, i32) {
    %c0_i32 = arith.constant 0 : i32
    %c0_i32_0 = arith.constant 0 : i32
    %c0_i32_1 = arith.constant 0 : i32
    return %c0_i32, %c0_i32_0 : i32, i32
  }
  func.func @transform_1(%arg0: i32) -> (i32, i32) {
    %c0_i32 = arith.constant 0 : i32
    %c0_i32_0 = arith.constant 0 : i32
    %c0_i32_1 = arith.constant 0 : i32
    return %c0_i32, %c0_i32_0 : i32, i32
  }
  func.func @transform_2(%arg0: i32) -> (i32, i32) {
    %c0_i32 = arith.constant 0 : i32
    %c0_i32_0 = arith.constant 0 : i32
    %c0_i32_1 = arith.constant 0 : i32
    return %c0_i32, %c0_i32_0 : i32, i32
  }
  func.func @transform_3(%arg0: i32) -> (i32, i32, i32) {
    %c0_i32 = arith.constant 0 : i32
    %c0_i32_0 = arith.constant 0 : i32
    %c0_i32_1 = arith.constant 0 : i32
    return %arg0, %c0_i32, %c0_i32_0 : i32, i32, i32
  }
  func.func @transform_4(%arg0: i32) -> (i32, i32, i32) {
    %c0_i32 = arith.constant 0 : i32
    %c0_i32_0 = arith.constant 0 : i32
    %c0_i32_1 = arith.constant 0 : i32
    return %arg0, %c0_i32, %c0_i32_0 : i32, i32, i32
  }
  func.func @transform_5(%arg0: i32) -> (i32, i32, i32) {
    %c0_i32 = arith.constant 0 : i32
    %c0_i32_0 = arith.constant 0 : i32
    %c0_i32_1 = arith.constant 0 : i32
    return %arg0, %c0_i32, %c0_i32_0 : i32, i32, i32
  }
  func.func @transform_6(%arg0: i32) -> (i32, i32, i32) {
    %c0_i32 = arith.constant 0 : i32
    %c0_i32_0 = arith.constant 0 : i32
    %c0_i32_1 = arith.constant 0 : i32
    return %arg0, %c0_i32, %c0_i32_0 : i32, i32, i32
  }
  func.func @transform_7(%arg0: i32) -> (i32, i32, i32) {
    %c0_i32 = arith.constant 0 : i32
    %c0_i32_0 = arith.constant 0 : i32
    %c0_i32_1 = arith.constant 0 : i32
    return %arg0, %c0_i32, %c0_i32_0 : i32, i32, i32
  }
  func.func @transform_8(%arg0: i32) -> (i32, i32, i32) {
    %c0_i32 = arith.constant 0 : i32
    %c0_i32_0 = arith.constant 0 : i32
    %c0_i32_1 = arith.constant 0 : i32
    return %arg0, %c0_i32, %c0_i32_0 : i32, i32, i32
  }
  func.func @transform_9(%arg0: i32) -> (i32, i32, i32) {
    %c0_i32 = arith.constant 0 : i32
    %c0_i32_0 = arith.constant 0 : i32
    %c0_i32_1 = arith.constant 0 : i32
    return %arg0, %c0_i32, %c0_i32_0 : i32, i32, i32
  }
  func.func @transform_10(%arg0: i32) -> (i32, i32, i32) {
    %c0_i32 = arith.constant 0 : i32
    %c0_i32_0 = arith.constant 0 : i32
    %c0_i32_1 = arith.constant 0 : i32
    return %arg0, %c0_i32, %c0_i32_0 : i32, i32, i32
  }
  func.func @transform_11(%arg0: i32) -> (i32, i32, i32) {
    %c0_i32 = arith.constant 0 : i32
    %c0_i32_0 = arith.constant 0 : i32
    %c0_i32_1 = arith.constant 0 : i32
    return %arg0, %c0_i32, %c0_i32_0 : i32, i32, i32
  }
  func.func @transform_12(%arg0: i32) -> (i32, i32, i32) {
    %c0_i32 = arith.constant 0 : i32
    %c0_i32_0 = arith.constant 0 : i32
    %c0_i32_1 = arith.constant 0 : i32
    return %arg0, %c0_i32, %c0_i32_0 : i32, i32, i32
  }
  func.func @transform_13(%arg0: i32) -> (i32, i32, i32) {
    %c0_i32 = arith.constant 0 : i32
    %c0_i32_0 = arith.constant 0 : i32
    %c0_i32_1 = arith.constant 0 : i32
    return %arg0, %c0_i32, %c0_i32_0 : i32, i32, i32
  }
  func.func @transform_14(%arg0: i32) -> (i32, i32, i32) {
    %c0_i32 = arith.constant 0 : i32
    %c0_i32_0 = arith.constant 0 : i32
    %c0_i32_1 = arith.constant 0 : i32
    return %arg0, %c0_i32, %c0_i32_0 : i32, i32, i32
  }
  func.func @transform_15(%arg0: i32) -> (i32, i32) {
    %c0_i32 = arith.constant 0 : i32
    %c0_i32_0 = arith.constant 0 : i32
    %c0_i32_1 = arith.constant 0 : i32
    return %c0_i32, %c0_i32_0 : i32, i32
  }
  func.func @transform_16(%arg0: i32) -> (i32, i32) {
    %c0_i32 = arith.constant 0 : i32
    %c0_i32_0 = arith.constant 0 : i32
    %c0_i32_1 = arith.constant 0 : i32
    return %c0_i32, %c0_i32_0 : i32, i32
  }
  func.func @transform_17(%arg0: i32) -> (i32, i32) {
    %c0_i32 = arith.constant 0 : i32
    %c0_i32_0 = arith.constant 0 : i32
    %c0_i32_1 = arith.constant 0 : i32
    return %c0_i32, %c0_i32_0 : i32, i32
  }
}

</mosaic_0001>

<llo_original>
// kernel: vit_image_encoder.1
$region0: #{vit_image_encoder.1}
  #allocation0 [shape = 'u32[]', space=smem, size = 0x4, offset = 0x4, fixed_abs, tag = 'smem constant byte address 0x4 - core index']
  #allocation1 [shape = 'u32[144,128]{1,0:T(1,128)}', space=vmem, size = 0x12000, scoped, tag = 'internal scratch']
  #allocation2 [shape = 'f32[16,256]{1,0:T(8,128)}', space=vmem, size = 0x4000, scoped, tag = 'scratch operand']
  %s0 = inlined_call_operand.vmem [shape: bf16[16,768], index: 0, kind: input, shape index: {}]
  %s1 = inlined_call_operand.vmem [shape: bf16[768,256], index: 1, kind: input, shape index: {}]
  %s2 = inlined_call_operand.vmem [shape: f32[16,256], index: 2, kind: input, shape index: {}]
  %s3 = inlined_call_operand.vmem [shape: f32[2,1,256], index: 3, kind: input, shape index: {}]
  %s4 = inlined_call_operand.vmem [shape: f32[2,1,256], index: 4, kind: input, shape index: {}]
  %s5 = inlined_call_operand.hbm [shape: bf16[2,256,768], index: 5, kind: input, shape index: {}]
  %s6 = inlined_call_operand.vmem [shape: f32[2,1,768], index: 6, kind: input, shape index: {}]
  %s7 = inlined_call_operand.vmem [shape: bf16[2,256,256], index: 7, kind: input, shape index: {}]
  %s8 = inlined_call_operand.vmem [shape: f32[2,1,256], index: 8, kind: input, shape index: {}]
  %s9 = inlined_call_operand.vmem [shape: f32[2,1,256], index: 9, kind: input, shape index: {}]
  %s10 = inlined_call_operand.vmem [shape: f32[2,1,256], index: 10, kind: input, shape index: {}]
  %s11 = inlined_call_operand.hbm [shape: bf16[2,256,1024], index: 11, kind: input, shape index: {}]
  %s12 = inlined_call_operand.vmem [shape: f32[2,1,1024], index: 12, kind: input, shape index: {}]
  %s13 = inlined_call_operand.hbm [shape: bf16[2,1024,256], index: 13, kind: input, shape index: {}]
  %s14 = inlined_call_operand.vmem [shape: f32[2,1,256], index: 14, kind: input, shape index: {}]
  %s15 = inlined_call_operand.vmem [shape: f32[1,256], index: 15, kind: input, shape index: {}]
  %s16 = inlined_call_operand.vmem [shape: f32[1,256], index: 16, kind: input, shape index: {}]
  %s17 = inlined_call_operand.hbm [shape: f32[2,256], index: 17, kind: output, shape index: {}]
  %s18 = sld [smem:[#allocation0]]
  $region121: #{vit_image_encoder.1} parent=0
    _
  %s20 = ssub.s32 1, %s18
  %s21 = scalar_select 0, %s20, %s18
  $region1: #{vit_image_encoder.1} parent=0
    #allocation3 [shape = 'u8[786432]{0}', space=vmem, size = 0xc0000, scoped, tag = 'input window, operand 5']
    #allocation4 [shape = 's32[2]{0}', space=sflag, size = 0x8, scoped, tag = 'scoped memory for vit_image_encoder.1']
    #allocation5 [shape = 's32[2]{0}', space=sflag, size = 0x8, scoped, tag = 'scoped memory for vit_image_encoder.1']
    #allocation6 [shape = 'u8[1048576]{0}', space=vmem, size = 0x100000, scoped, tag = 'input window, operand 11']
    #allocation7 [shape = 's32[2]{0}', space=sflag, size = 0x8, scoped, tag = 'scoped memory for vit_image_encoder.1']
    #allocation8 [shape = 'u8[1048576]{0}', space=vmem, size = 0x100000, scoped, tag = 'input window, operand 13']
    #allocation9 [shape = 'u8[2048]{0}', space=vmem, size = 0x800, scoped, tag = 'output window, operand 0, single buffered']
    %22 = vsyncpa [#allocation4], 0
    %s23 = scalar_lea.sflag [#allocation4], 1
    %24 = vsyncpa %s23, 0
    %25 = vsyncpa [#allocation7], 0
    %s26 = scalar_lea.sflag [#allocation7], 1
    %27 = vsyncpa %s26, 0
    %28 = vsyncpa [#allocation5], 0
    loop: start=0, step=1, limit=4
    $region2: #{vit_image_encoder.1} parent=1 // loop_pre_header
      _
    $region3: #{vit_image_encoder.1} parent=1 // loop_header
      %s30 = sphi 0, %s34
      %p31 = scmp.ge.s32.totalorder %s30, 4
      %s38 = sphi 0, %s38
      %s40 = sphi 0, %s38
      %s41 = sphi 0, %s40
      %s55 = sphi 0, %s41
      %s59 = sphi 0, %s59
      %s61 = sphi 0, %s59
      %s62 = sphi 0, %s61
      %s76 = sphi 0, %s62
      %s80 = sphi 0, %s80
      %s82 = sphi 0, %s80
      %s83 = sphi 0, %s82
      %s97 = sphi 0, %s83
      %s103 = sphi 0, %s105
      %s106 = sphi 0, %s103
      %s107 = sphi 0, %s106
      %s123 = sphi 0, %s107
      %s129 = sphi 0, %s131
      %s132 = sphi 0, %s129
      %s133 = sphi 0, %s132
      %s149 = sphi 0, %s133
      %s155 = sphi 0, %s157
      %s158 = sphi 0, %s155
      %s159 = sphi 0, %s158
      %s175 = sphi 0, %s159
      %s181 = sphi 0, %s183
      %s184 = sphi 0, %s181
      %s185 = sphi 0, %s184
      %s201 = sphi 0, %s185
      %s207 = sphi 0, %s209
      %s210 = sphi 0, %s207
      %s211 = sphi 0, %s210
      %s227 = sphi 0, %s211
      %s233 = sphi 0, %s235
      %s236 = sphi 0, %s233
      %s237 = sphi 0, %s236
      %s253 = sphi 0, %s237
      %s259 = sphi 0, %s261
      %s262 = sphi 0, %s259
      %s263 = sphi 0, %s262
      %s279 = sphi 0, %s263
      %s285 = sphi 0, %s287
      %s288 = sphi 0, %s285
      %s289 = sphi 0, %s288
      %s305 = sphi 0, %s289
      %s311 = sphi 0, %s313
      %s314 = sphi 0, %s311
      %s315 = sphi 0, %s314
      %s331 = sphi 0, %s315
      %s337 = sphi 0, %s339
      %s340 = sphi 0, %s337
      %s341 = sphi 0, %s340
      %s357 = sphi 0, %s341
      %s363 = sphi 0, %s365
      %s366 = sphi 0, %s363
      %s367 = sphi 0, %s366
      %s383 = sphi 0, %s367
      %s389 = sphi 0, %s391
      %s392 = sphi 0, %s389
      %s393 = sphi 0, %s392
      %s409 = sphi 0, %s393
      %s413 = sphi 0, %s413
      %s415 = sphi 0, %s413
      %s416 = sphi 0, %s415
      %s430 = sphi 0, %s416
      %s434 = sphi 0, %s434
      %s436 = sphi 0, %s434
      %s437 = sphi 0, %s436
      %s451 = sphi 0, %s437
      %s455 = sphi 0, %s455
      %s457 = sphi 0, %s455
      %s458 = sphi 0, %s457
      %s472 = sphi 0, %s458
    $region4: #{vit_image_encoder.1} parent=1 // loop_header_branch
      %33 = sbr.rel (%p31) target = $region8
    $region5: #{vit_image_encoder.1} parent=1 // loop_body
      %s35 = ssub.s32 %s30, 1
      %s36 = ssub.s32 %s30, 2
      %s37 = sadd.s32 %s30, 1
      %s39 = sadd.s32 %s38, 1
      %p42 = scmp.eq.s32.totalorder %s30, 1
      %p43 = scmp.ne.s32.totalorder %s38, %s40
      %p44 = scmp.eq.s32.totalorder %s30, 0
      %p45 = por %p43, %p44
      %p46 = scmp.ne.s32.totalorder %s38, %s40
      %p47 = scmp.eq.s32.totalorder %s35, 1
      %p48 = por %p46, %p47
      %p49 = scmp.ne.s32.totalorder %s40, %s41
      %p50 = scmp.eq.s32.totalorder %s35, 0
      %p51 = por %p49, %p50
      %p52 = scmp.ne.s32.totalorder %s40, %s41
      %p53 = scmp.eq.s32.totalorder %s36, 1
      %p54 = por %p52, %p53
      %p56 = scmp.ne.s32.totalorder %s41, %s55
      %p57 = scmp.eq.s32.totalorder %s36, 0
      %p58 = por %p56, %p57
      %s60 = sadd.s32 %s59, 1
      %p63 = scmp.eq.s32.totalorder %s30, 1
      %p64 = scmp.ne.s32.totalorder %s59, %s61
      %p65 = scmp.eq.s32.totalorder %s30, 0
      %p66 = por %p64, %p65
      %p67 = scmp.ne.s32.totalorder %s59, %s61
      %p68 = scmp.eq.s32.totalorder %s35, 1
      %p69 = por %p67, %p68
      %p70 = scmp.ne.s32.totalorder %s61, %s62
      %p71 = scmp.eq.s32.totalorder %s35, 0
      %p72 = por %p70, %p71
      %p73 = scmp.ne.s32.totalorder %s61, %s62
      %p74 = scmp.eq.s32.totalorder %s36, 1
      %p75 = por %p73, %p74
      %p77 = scmp.ne.s32.totalorder %s62, %s76
      %p78 = scmp.eq.s32.totalorder %s36, 0
      %p79 = por %p77, %p78
      %s81 = sadd.s32 %s80, 1
      %p84 = scmp.eq.s32.totalorder %s30, 1
      %p85 = scmp.ne.s32.totalorder %s80, %s82
      %p86 = scmp.eq.s32.totalorder %s30, 0
      %p87 = por %p85, %p86
      %p88 = scmp.ne.s32.totalorder %s80, %s82
      %p89 = scmp.eq.s32.totalorder %s35, 1
      %p90 = por %p88, %p89
      %p91 = scmp.ne.s32.totalorder %s82, %s83
      %p92 = scmp.eq.s32.totalorder %s35, 0
      %p93 = por %p91, %p92
      %p94 = scmp.ne.s32.totalorder %s82, %s83
      %p95 = scmp.eq.s32.totalorder %s36, 1
      %p96 = por %p94, %p95
      %p98 = scmp.ne.s32.totalorder %s83, %s97
      %p99 = scmp.eq.s32.totalorder %s36, 0
      %p100 = por %p98, %p99
      %s101 = ssub.s32 %s30, %s37
      %p102 = scmp.eq.s32.totalorder %s101, 0
      %s104 = sadd.s32 %s103, 1
      %s105 = scalar_select %p102, %s103, %s104
      %p108 = pneg %p102
      %p109 = scmp.eq.s32.totalorder %s30, 1
      %p110 = por %p108, %p109
      %p111 = scmp.ne.s32.totalorder %s103, %s106
      %p112 = scmp.eq.s32.totalorder %s30, 0
      %p113 = por %p111, %p112
      %p114 = scmp.ne.s32.totalorder %s103, %s106
      %p115 = scmp.eq.s32.totalorder %s35, 1
      %p116 = por %p114, %p115
      %p117 = scmp.ne.s32.totalorder %s106, %s107
      %p118 = scmp.eq.s32.totalorder %s35, 0
      %p119 = por %p117, %p118
      %p120 = scmp.ne.s32.totalorder %s106, %s107
      %p121 = scmp.eq.s32.totalorder %s36, 1
      %p122 = por %p120, %p121
      %p124 = scmp.ne.s32.totalorder %s107, %s123
      %p125 = scmp.eq.s32.totalorder %s36, 0
      %p126 = por %p124, %p125
      %s127 = ssub.s32 %s30, %s37
      %p128 = scmp.eq.s32.totalorder %s127, 0
      %s130 = sadd.s32 %s129, 1
      %s131 = scalar_select %p128, %s129, %s130
      %p134 = pneg %p128
      %p135 = scmp.eq.s32.totalorder %s30, 1
      %p136 = por %p134, %p135
      %p137 = scmp.ne.s32.totalorder %s129, %s132
      %p138 = scmp.eq.s32.totalorder %s30, 0
      %p139 = por %p137, %p138
      %p140 = scmp.ne.s32.totalorder %s129, %s132
      %p141 = scmp.eq.s32.totalorder %s35, 1
      %p142 = por %p140, %p141
      %p143 = scmp.ne.s32.totalorder %s132, %s133
      %p144 = scmp.eq.s32.totalorder %s35, 0
      %p145 = por %p143, %p144
      %p146 = scmp.ne.s32.totalorder %s132, %s133
      %p147 = scmp.eq.s32.totalorder %s36, 1
      %p148 = por %p146, %p147
      %p150 = scmp.ne.s32.totalorder %s133, %s149
      %p151 = scmp.eq.s32.totalorder %s36, 0
      %p152 = por %p150, %p151
      %s153 = ssub.s32 %s30, %s37
      %p154 = scmp.eq.s32.totalorder %s153, 0
      %s156 = sadd.s32 %s155, 1
      %s157 = scalar_select %p154, %s155, %s156
      %p160 = pneg %p154
      %p161 = scmp.eq.s32.totalorder %s30, 1
      %p162 = por %p160, %p161
      %p163 = scmp.ne.s32.totalorder %s155, %s158
      %p164 = scmp.eq.s32.totalorder %s30, 0
      %p165 = por %p163, %p164
      %p166 = scmp.ne.s32.totalorder %s155, %s158
      %p167 = scmp.eq.s32.totalorder %s35, 1
      %p168 = por %p166, %p167
      %p169 = scmp.ne.s32.totalorder %s158, %s159
      %p170 = scmp.eq.s32.totalorder %s35, 0
      %p171 = por %p169, %p170
      %p172 = scmp.ne.s32.totalorder %s158, %s159
      %p173 = scmp.eq.s32.totalorder %s36, 1
      %p174 = por %p172, %p173
      %p176 = scmp.ne.s32.totalorder %s159, %s175
      %p177 = scmp.eq.s32.totalorder %s36, 0
      %p178 = por %p176, %p177
      %s179 = ssub.s32 %s30, %s37
      %p180 = scmp.eq.s32.totalorder %s179, 0
      %s182 = sadd.s32 %s181, 1
      %s183 = scalar_select %p180, %s181, %s182
      %p186 = pneg %p180
      %p187 = scmp.eq.s32.totalorder %s30, 1
      %p188 = por %p186, %p187
      %p189 = scmp.ne.s32.totalorder %s181, %s184
      %p190 = scmp.eq.s32.totalorder %s30, 0
      %p191 = por %p189, %p190
      %p192 = scmp.ne.s32.totalorder %s181, %s184
      %p193 = scmp.eq.s32.totalorder %s35, 1
      %p194 = por %p192, %p193
      %p195 = scmp.ne.s32.totalorder %s184, %s185
      %p196 = scmp.eq.s32.totalorder %s35, 0
      %p197 = por %p195, %p196
      %p198 = scmp.ne.s32.totalorder %s184, %s185
      %p199 = scmp.eq.s32.totalorder %s36, 1
      %p200 = por %p198, %p199
      %p202 = scmp.ne.s32.totalorder %s185, %s201
      %p203 = scmp.eq.s32.totalorder %s36, 0
      %p204 = por %p202, %p203
      %s205 = ssub.s32 %s30, %s37
      %p206 = scmp.eq.s32.totalorder %s205, 0
      %s208 = sadd.s32 %s207, 1
      %s209 = scalar_select %p206, %s207, %s208
      %p212 = pneg %p206
      %p213 = scmp.eq.s32.totalorder %s30, 1
      %p214 = por %p212, %p213
      %p215 = scmp.ne.s32.totalorder %s207, %s210
      %p216 = scmp.eq.s32.totalorder %s30, 0
      %p217 = por %p215, %p216
      %p218 = scmp.ne.s32.totalorder %s207, %s210
      %p219 = scmp.eq.s32.totalorder %s35, 1
      %p220 = por %p218, %p219
      %p221 = scmp.ne.s32.totalorder %s210, %s211
      %p222 = scmp.eq.s32.totalorder %s35, 0
      %p223 = por %p221, %p222
      %p224 = scmp.ne.s32.totalorder %s210, %s211
      %p225 = scmp.eq.s32.totalorder %s36, 1
      %p226 = por %p224, %p225
      %p228 = scmp.ne.s32.totalorder %s211, %s227
      %p229 = scmp.eq.s32.totalorder %s36, 0
      %p230 = por %p228, %p229
      %s231 = ssub.s32 %s30, %s37
      %p232 = scmp.eq.s32.totalorder %s231, 0
      %s234 = sadd.s32 %s233, 1
      %s235 = scalar_select %p232, %s233, %s234
      %p238 = pneg %p232
      %p239 = scmp.eq.s32.totalorder %s30, 1
      %p240 = por %p238, %p239
      %p241 = scmp.ne.s32.totalorder %s233, %s236
      %p242 = scmp.eq.s32.totalorder %s30, 0
      %p243 = por %p241, %p242
      %p244 = scmp.ne.s32.totalorder %s233, %s236
      %p245 = scmp.eq.s32.totalorder %s35, 1
      %p246 = por %p244, %p245
      %p247 = scmp.ne.s32.totalorder %s236, %s237
      %p248 = scmp.eq.s32.totalorder %s35, 0
      %p249 = por %p247, %p248
      %p250 = scmp.ne.s32.totalorder %s236, %s237
      %p251 = scmp.eq.s32.totalorder %s36, 1
      %p252 = por %p250, %p251
      %p254 = scmp.ne.s32.totalorder %s237, %s253
      %p255 = scmp.eq.s32.totalorder %s36, 0
      %p256 = por %p254, %p255
      %s257 = ssub.s32 %s30, %s37
      %p258 = scmp.eq.s32.totalorder %s257, 0
      %s260 = sadd.s32 %s259, 1
      %s261 = scalar_select %p258, %s259, %s260
      %p264 = pneg %p258
      %p265 = scmp.eq.s32.totalorder %s30, 1
      %p266 = por %p264, %p265
      %p267 = scmp.ne.s32.totalorder %s259, %s262
      %p268 = scmp.eq.s32.totalorder %s30, 0
      %p269 = por %p267, %p268
      %p270 = scmp.ne.s32.totalorder %s259, %s262
      %p271 = scmp.eq.s32.totalorder %s35, 1
      %p272 = por %p270, %p271
      %p273 = scmp.ne.s32.totalorder %s262, %s263
      %p274 = scmp.eq.s32.totalorder %s35, 0
      %p275 = por %p273, %p274
      %p276 = scmp.ne.s32.totalorder %s262, %s263
      %p277 = scmp.eq.s32.totalorder %s36, 1
      %p278 = por %p276, %p277
      %p280 = scmp.ne.s32.totalorder %s263, %s279
      %p281 = scmp.eq.s32.totalorder %s36, 0
      %p282 = por %p280, %p281
      %s283 = ssub.s32 %s30, %s37
      %p284 = scmp.eq.s32.totalorder %s283, 0
      %s286 = sadd.s32 %s285, 1
      %s287 = scalar_select %p284, %s285, %s286
      %p290 = pneg %p284
      %p291 = scmp.eq.s32.totalorder %s30, 1
      %p292 = por %p290, %p291
      %p293 = scmp.ne.s32.totalorder %s285, %s288
      %p294 = scmp.eq.s32.totalorder %s30, 0
      %p295 = por %p293, %p294
      %p296 = scmp.ne.s32.totalorder %s285, %s288
      %p297 = scmp.eq.s32.totalorder %s35, 1
      %p298 = por %p296, %p297
      %p299 = scmp.ne.s32.totalorder %s288, %s289
      %p300 = scmp.eq.s32.totalorder %s35, 0
      %p301 = por %p299, %p300
      %p302 = scmp.ne.s32.totalorder %s288, %s289
      %p303 = scmp.eq.s32.totalorder %s36, 1
      %p304 = por %p302, %p303
      %p306 = scmp.ne.s32.totalorder %s289, %s305
      %p307 = scmp.eq.s32.totalorder %s36, 0
      %p308 = por %p306, %p307
      %s309 = ssub.s32 %s30, %s37
      %p310 = scmp.eq.s32.totalorder %s309, 0
      %s312 = sadd.s32 %s311, 1
      %s313 = scalar_select %p310, %s311, %s312
      %p316 = pneg %p310
      %p317 = scmp.eq.s32.totalorder %s30, 1
      %p318 = por %p316, %p317
      %p319 = scmp.ne.s32.totalorder %s311, %s314
      %p320 = scmp.eq.s32.totalorder %s30, 0
      %p321 = por %p319, %p320
      %p322 = scmp.ne.s32.totalorder %s311, %s314
      %p323 = scmp.eq.s32.totalorder %s35, 1
      %p324 = por %p322, %p323
      %p325 = scmp.ne.s32.totalorder %s314, %s315
      %p326 = scmp.eq.s32.totalorder %s35, 0
      %p327 = por %p325, %p326
      %p328 = scmp.ne.s32.totalorder %s314, %s315
      %p329 = scmp.eq.s32.totalorder %s36, 1
      %p330 = por %p328, %p329
      %p332 = scmp.ne.s32.totalorder %s315, %s331
      %p333 = scmp.eq.s32.totalorder %s36, 0
      %p334 = por %p332, %p333
      %s335 = ssub.s32 %s30, %s37
      %p336 = scmp.eq.s32.totalorder %s335, 0
      %s338 = sadd.s32 %s337, 1
      %s339 = scalar_select %p336, %s337, %s338
      %p342 = pneg %p336
      %p343 = scmp.eq.s32.totalorder %s30, 1
      %p344 = por %p342, %p343
      %p345 = scmp.ne.s32.totalorder %s337, %s340
      %p346 = scmp.eq.s32.totalorder %s30, 0
      %p347 = por %p345, %p346
      %p348 = scmp.ne.s32.totalorder %s337, %s340
      %p349 = scmp.eq.s32.totalorder %s35, 1
      %p350 = por %p348, %p349
      %p351 = scmp.ne.s32.totalorder %s340, %s341
      %p352 = scmp.eq.s32.totalorder %s35, 0
      %p353 = por %p351, %p352
      %p354 = scmp.ne.s32.totalorder %s340, %s341
      %p355 = scmp.eq.s32.totalorder %s36, 1
      %p356 = por %p354, %p355
      %p358 = scmp.ne.s32.totalorder %s341, %s357
      %p359 = scmp.eq.s32.totalorder %s36, 0
      %p360 = por %p358, %p359
      %s361 = ssub.s32 %s30, %s37
      %p362 = scmp.eq.s32.totalorder %s361, 0
      %s364 = sadd.s32 %s363, 1
      %s365 = scalar_select %p362, %s363, %s364
      %p368 = pneg %p362
      %p369 = scmp.eq.s32.totalorder %s30, 1
      %p370 = por %p368, %p369
      %p371 = scmp.ne.s32.totalorder %s363, %s366
      %p372 = scmp.eq.s32.totalorder %s30, 0
      %p373 = por %p371, %p372
      %p374 = scmp.ne.s32.totalorder %s363, %s366
      %p375 = scmp.eq.s32.totalorder %s35, 1
      %p376 = por %p374, %p375
      %p377 = scmp.ne.s32.totalorder %s366, %s367
      %p378 = scmp.eq.s32.totalorder %s35, 0
      %p379 = por %p377, %p378
      %p380 = scmp.ne.s32.totalorder %s366, %s367
      %p381 = scmp.eq.s32.totalorder %s36, 1
      %p382 = por %p380, %p381
      %p384 = scmp.ne.s32.totalorder %s367, %s383
      %p385 = scmp.eq.s32.totalorder %s36, 0
      %p386 = por %p384, %p385
      %s387 = ssub.s32 %s30, %s37
      %p388 = scmp.eq.s32.totalorder %s387, 0
      %s390 = sadd.s32 %s389, 1
      %s391 = scalar_select %p388, %s389, %s390
      %p394 = pneg %p388
      %p395 = scmp.eq.s32.totalorder %s30, 1
      %p396 = por %p394, %p395
      %p397 = scmp.ne.s32.totalorder %s389, %s392
      %p398 = scmp.eq.s32.totalorder %s30, 0
      %p399 = por %p397, %p398
      %p400 = scmp.ne.s32.totalorder %s389, %s392
      %p401 = scmp.eq.s32.totalorder %s35, 1
      %p402 = por %p400, %p401
      %p403 = scmp.ne.s32.totalorder %s392, %s393
      %p404 = scmp.eq.s32.totalorder %s35, 0
      %p405 = por %p403, %p404
      %p406 = scmp.ne.s32.totalorder %s392, %s393
      %p407 = scmp.eq.s32.totalorder %s36, 1
      %p408 = por %p406, %p407
      %p410 = scmp.ne.s32.totalorder %s393, %s409
      %p411 = scmp.eq.s32.totalorder %s36, 0
      %p412 = por %p410, %p411
      %s414 = sadd.s32 %s413, 1
      %p417 = scmp.eq.s32.totalorder %s30, 1
      %p418 = scmp.ne.s32.totalorder %s413, %s415
      %p419 = scmp.eq.s32.totalorder %s30, 0
      %p420 = por %p418, %p419
      %p421 = scmp.ne.s32.totalorder %s413, %s415
      %p422 = scmp.eq.s32.totalorder %s35, 1
      %p423 = por %p421, %p422
      %p424 = scmp.ne.s32.totalorder %s415, %s416
      %p425 = scmp.eq.s32.totalorder %s35, 0
      %p426 = por %p424, %p425
      %p427 = scmp.ne.s32.totalorder %s415, %s416
      %p428 = scmp.eq.s32.totalorder %s36, 1
      %p429 = por %p427, %p428
      %p431 = scmp.ne.s32.totalorder %s416, %s430
      %p432 = scmp.eq.s32.totalorder %s36, 0
      %p433 = por %p431, %p432
      %s435 = sadd.s32 %s434, 1
      %p438 = scmp.eq.s32.totalorder %s30, 1
      %p439 = scmp.ne.s32.totalorder %s434, %s436
      %p440 = scmp.eq.s32.totalorder %s30, 0
      %p441 = por %p439, %p440
      %p442 = scmp.ne.s32.totalorder %s434, %s436
      %p443 = scmp.eq.s32.totalorder %s35, 1
      %p444 = por %p442, %p443
      %p445 = scmp.ne.s32.totalorder %s436, %s437
      %p446 = scmp.eq.s32.totalorder %s35, 0
      %p447 = por %p445, %p446
      %p448 = scmp.ne.s32.totalorder %s436, %s437
      %p449 = scmp.eq.s32.totalorder %s36, 1
      %p450 = por %p448, %p449
      %p452 = scmp.ne.s32.totalorder %s437, %s451
      %p453 = scmp.eq.s32.totalorder %s36, 0
      %p454 = por %p452, %p453
      %s456 = sadd.s32 %s455, 1
      %p459 = scmp.eq.s32.totalorder %s30, 1
      %p460 = scmp.ne.s32.totalorder %s455, %s457
      %p461 = scmp.eq.s32.totalorder %s30, 0
      %p462 = por %p460, %p461
      %p463 = scmp.ne.s32.totalorder %s455, %s457
      %p464 = scmp.eq.s32.totalorder %s35, 1
      %p465 = por %p463, %p464
      %p466 = scmp.ne.s32.totalorder %s457, %s458
      %p467 = scmp.eq.s32.totalorder %s35, 0
      %p468 = por %p466, %p467
      %p469 = scmp.ne.s32.totalorder %s457, %s458
      %p470 = scmp.eq.s32.totalorder %s36, 1
      %p471 = por %p469, %p470
      %p473 = scmp.ne.s32.totalorder %s458, %s472
      %p474 = scmp.eq.s32.totalorder %s36, 0
      %p475 = por %p473, %p474
      %p476 = scmp.le.s32.totalorder 1, %s30
      %p477 = scmp.lt.s32.totalorder %s30, 3
      %p478 = pnand %p476, %p477
      %p479 = pneg %p478
      // Predicated region
      $region9: #{vit_image_encoder.1} parent=5 // pred_check
        _
      $region10: #{vit_image_encoder.1} parent=5 // pred_check_branch
        %481 = sbr.rel (%p478) target = $region12
      $region11: #{vit_image_encoder.1} parent=5 // pred_region
        %s482 = ssub.s32 %s30, 1
        // Predicated region
        $region13: #{vit_image_encoder.1} parent=11 // pred_check
          %p483 = pneg %p51
        $region14: #{vit_image_encoder.1} parent=11 // pred_check_branch
          %485 = sbr.rel (%p483) target = $region16
        $region15: #{vit_image_encoder.1} parent=11 // pred_region
          _
        $region16: #{vit_image_encoder.1} parent=11 // pred_fallthru
          _
        // Predicated region
        $region17: #{vit_image_encoder.1} parent=11 // pred_check
          %p486 = pneg %p72
        $region18: #{vit_image_encoder.1} parent=11 // pred_check_branch
          %488 = sbr.rel (%p486) target = $region20
        $region19: #{vit_image_encoder.1} parent=11 // pred_region
          _
        $region20: #{vit_image_encoder.1} parent=11 // pred_fallthru
          _
        // Predicated region
        $region21: #{vit_image_encoder.1} parent=11 // pred_check
          %p489 = pneg %p93
        $region22: #{vit_image_encoder.1} parent=11 // pred_check_branch
          %491 = sbr.rel (%p489) target = $region24
        $region23: #{vit_image_encoder.1} parent=11 // pred_region
          _
        $region24: #{vit_image_encoder.1} parent=11 // pred_fallthru
          _
        // Predicated region
        $region25: #{vit_image_encoder.1} parent=11 // pred_check
          %p492 = pneg %p426
        $region26: #{vit_image_encoder.1} parent=11 // pred_check_branch
          %494 = sbr.rel (%p492) target = $region28
        $region27: #{vit_image_encoder.1} parent=11 // pred_region
          _
        $region28: #{vit_image_encoder.1} parent=11 // pred_fallthru
          _
        // Predicated region
        $region29: #{vit_image_encoder.1} parent=11 // pred_check
          %p495 = pneg %p447
        $region30: #{vit_image_encoder.1} parent=11 // pred_check_branch
          %497 = sbr.rel (%p495) target = $region32
        $region31: #{vit_image_encoder.1} parent=11 // pred_region
          _
        $region32: #{vit_image_encoder.1} parent=11 // pred_fallthru
          _
      $region12: #{vit_image_encoder.1} parent=5 // pred_fallthru
        _
      %p498 = scmp.lt.s32.totalorder %s30, 2
      // Predicated region
      $region33: #{vit_image_encoder.1} parent=5 // pred_check
        %p499 = pneg %p498
      $region34: #{vit_image_encoder.1} parent=5 // pred_check_branch
        %501 = sbr.rel (%p499) target = $region36
      $region35: #{vit_image_encoder.1} parent=5 // pred_region
        // Predicated region
        $region37: #{vit_image_encoder.1} parent=35 // pred_check
          %p502 = pneg %p113
        $region38: #{vit_image_encoder.1} parent=35 // pred_check_branch
          %504 = sbr.rel (%p502) target = $region40
        $region39: #{vit_image_encoder.1} parent=35 // pred_region
          %p505 = scmp.lt.s32.totalorder %s30, 1
          %s506 = scalar_select %p505, %s30, 1
          %s507 = smul.addr %s506, 2
          %s508 = scalar_lea.vmem %s3, %s507
        $region40: #{vit_image_encoder.1} parent=35 // pred_fallthru
          _
        // Predicated region
        $region41: #{vit_image_encoder.1} parent=35 // pred_check
          %p509 = pneg %p139
        $region42: #{vit_image_encoder.1} parent=35 // pred_check_branch
          %511 = sbr.rel (%p509) target = $region44
        $region43: #{vit_image_encoder.1} parent=35 // pred_region
          %p512 = scmp.lt.s32.totalorder %s30, 1
          %s513 = scalar_select %p512, %s30, 1
          %s514 = smul.addr %s513, 2
          %s515 = scalar_lea.vmem %s4, %s514
        $region44: #{vit_image_encoder.1} parent=35 // pred_fallthru
          _
        // Predicated region
        $region45: #{vit_image_encoder.1} parent=35 // pred_check
          %p516 = pneg %p165
        $region46: #{vit_image_encoder.1} parent=35 // pred_check_branch
          %518 = sbr.rel (%p516) target = $region48
        $region47: #{vit_image_encoder.1} parent=35 // pred_region
          %s519 = sand.u32 %s155, 1
          %s520 = scalar_lea.sflag [#allocation4], %s519
          %s521 = sand.u32 %s155, 1
          %s522 = smul.addr %s521, 768
          %s523 = scalar_lea.vmem [#allocation3], %s522
          %s525 = ssub.s32 12288, 12288
          %526 = vsyncadd %s520, %s525
          %s527 = smul.addr %s30, 192
          %s528 = smul.addr %s527, 64
          %s529 = scalar_lea.hbm %s5, %s528
          %s530 = sshll.u32 %s523, 4
          %s531 = int_to_ptr.vmem [resolvable:$true] %s530
          %536 = dma.hbm_to_vmem [thread:$0]  %s529, 12288, %s531, %s520, 384, 384, 24
        $region48: #{vit_image_encoder.1} parent=35 // pred_fallthru
          _
        // Predicated region
        $region49: #{vit_image_encoder.1} parent=35 // pred_check
          %p537 = pneg %p191
        $region50: #{vit_image_encoder.1} parent=35 // pred_check_branch
          %539 = sbr.rel (%p537) target = $region52
        $region51: #{vit_image_encoder.1} parent=35 // pred_region
          %p540 = scmp.lt.s32.totalorder %s30, 1
          %s541 = scalar_select %p540, %s30, 1
          %s542 = smul.addr %s541, 6
          %s543 = scalar_lea.vmem %s6, %s542
        $region52: #{vit_image_encoder.1} parent=35 // pred_fallthru
          _
        // Predicated region
        $region53: #{vit_image_encoder.1} parent=35 // pred_check
          %p544 = pneg %p217
        $region54: #{vit_image_encoder.1} parent=35 // pred_check_branch
          %546 = sbr.rel (%p544) target = $region56
        $region55: #{vit_image_encoder.1} parent=35 // pred_region
          %p547 = scmp.lt.s32.totalorder %s30, 1
          %s548 = scalar_select %p547, %s30, 1
          %s549 = smul.addr %s548, 64
          %s550 = smul.addr %s549, 4
          %s551 = scalar_lea.vmem %s7, %s550
        $region56: #{vit_image_encoder.1} parent=35 // pred_fallthru
          _
        // Predicated region
        $region57: #{vit_image_encoder.1} parent=35 // pred_check
          %p552 = pneg %p243
        $region58: #{vit_image_encoder.1} parent=35 // pred_check_branch
          %554 = sbr.rel (%p552) target = $region60
        $region59: #{vit_image_encoder.1} parent=35 // pred_region
          %p555 = scmp.lt.s32.totalorder %s30, 1
          %s556 = scalar_select %p555, %s30, 1
          %s557 = smul.addr %s556, 2
          %s558 = scalar_lea.vmem %s8, %s557
        $region60: #{vit_image_encoder.1} parent=35 // pred_fallthru
          _
        // Predicated region
        $region61: #{vit_image_encoder.1} parent=35 // pred_check
          %p559 = pneg %p269
        $region62: #{vit_image_encoder.1} parent=35 // pred_check_branch
          %561 = sbr.rel (%p559) target = $region64
        $region63: #{vit_image_encoder.1} parent=35 // pred_region
          %p562 = scmp.lt.s32.totalorder %s30, 1
          %s563 = scalar_select %p562, %s30, 1
          %s564 = smul.addr %s563, 2
          %s565 = scalar_lea.vmem %s9, %s564
        $region64: #{vit_image_encoder.1} parent=35 // pred_fallthru
          _
        // Predicated region
        $region65: #{vit_image_encoder.1} parent=35 // pred_check
          %p566 = pneg %p295
        $region66: #{vit_image_encoder.1} parent=35 // pred_check_branch
          %568 = sbr.rel (%p566) target = $region68
        $region67: #{vit_image_encoder.1} parent=35 // pred_region
          %p569 = scmp.lt.s32.totalorder %s30, 1
          %s570 = scalar_select %p569, %s30, 1
          %s571 = smul.addr %s570, 2
          %s572 = scalar_lea.vmem %s10, %s571
        $region68: #{vit_image_encoder.1} parent=35 // pred_fallthru
          _
        // Predicated region
        $region69: #{vit_image_encoder.1} parent=35 // pred_check
          %p573 = pneg %p321
        $region70: #{vit_image_encoder.1} parent=35 // pred_check_branch
          %575 = sbr.rel (%p573) target = $region72
        $region71: #{vit_image_encoder.1} parent=35 // pred_region
          %s576 = sand.u32 %s30, 1
          %s577 = scalar_lea.sflag [#allocation7], %s576
          %s578 = sand.u32 %s311, 1
          %s579 = smul.addr %s578, 1024
          %s580 = scalar_lea.vmem [#allocation6], %s579
          %s582 = ssub.s32 16384, 16384
          %583 = vsyncadd %s577, %s582
          %s584 = smul.addr %s30, 256
          %s585 = smul.addr %s584, 64
          %s586 = scalar_lea.hbm %s11, %s585
          %s587 = sshll.u32 %s580, 4
          %s588 = int_to_ptr.vmem [resolvable:$true] %s587
          %593 = dma.hbm_to_vmem [thread:$0]  %s586, 16384, %s588, %s577, 512, 512, 32
        $region72: #{vit_image_encoder.1} parent=35 // pred_fallthru
          _
        // Predicated region
        $region73: #{vit_image_encoder.1} parent=35 // pred_check
          %p594 = pneg %p347
        $region74: #{vit_image_encoder.1} parent=35 // pred_check_branch
          %596 = sbr.rel (%p594) target = $region76
        $region75: #{vit_image_encoder.1} parent=35 // pred_region
          %p597 = scmp.lt.s32.totalorder %s30, 1
          %s598 = scalar_select %p597, %s30, 1
          %s599 = smul.addr %s598, 8
          %s600 = scalar_lea.vmem %s12, %s599
        $region76: #{vit_image_encoder.1} parent=35 // pred_fallthru
          _
        // Predicated region
        $region77: #{vit_image_encoder.1} parent=35 // pred_check
          %p601 = pneg %p373
        $region78: #{vit_image_encoder.1} parent=35 // pred_check_branch
          %603 = sbr.rel (%p601) target = $region80
        $region79: #{vit_image_encoder.1} parent=35 // pred_region
          %s604 = sand.u32 %s30, 1
          %s605 = scalar_lea.sflag [#allocation7], %s604
          %s606 = sand.u32 %s363, 1
          %s607 = smul.addr %s606, 1024
          %s608 = scalar_lea.vmem [#allocation8], %s607
          %s610 = ssub.s32 16384, 16384
          %611 = vsyncadd %s605, %s610
          %s612 = smul.addr %s30, 256
          %s613 = smul.addr %s612, 64
          %s614 = scalar_lea.hbm %s13, %s613
          %s615 = sshll.u32 %s608, 4
          %s616 = int_to_ptr.vmem [resolvable:$true] %s615
          %621 = dma.hbm_to_vmem [thread:$0]  %s614, 16384, %s616, %s605, 128, 128, 8
        $region80: #{vit_image_encoder.1} parent=35 // pred_fallthru
          _
        // Predicated region
        $region81: #{vit_image_encoder.1} parent=35 // pred_check
          %p622 = pneg %p399
        $region82: #{vit_image_encoder.1} parent=35 // pred_check_branch
          %624 = sbr.rel (%p622) target = $region84
        $region83: #{vit_image_encoder.1} parent=35 // pred_region
          %p625 = scmp.lt.s32.totalorder %s30, 1
          %s626 = scalar_select %p625, %s30, 1
          %s627 = smul.addr %s626, 2
          %s628 = scalar_lea.vmem %s14, %s627
        $region84: #{vit_image_encoder.1} parent=35 // pred_fallthru
          _
      $region36: #{vit_image_encoder.1} parent=5 // pred_fallthru
        _
      %p629 = scmp.le.s32.totalorder 1, %s30
      %p630 = scmp.lt.s32.totalorder %s30, 3
      %p631 = pnand %p629, %p630
      %p632 = pneg %p631
      // Predicated region
      $region85: #{vit_image_encoder.1} parent=5 // pred_check
        _
      $region86: #{vit_image_encoder.1} parent=5 // pred_check_branch
        %634 = sbr.rel (%p631) target = $region88
      $region87: #{vit_image_encoder.1} parent=5 // pred_region
        %s635 = ssub.s32 %s30, 1
        %s636 = sand.u32 %s158, 1
        %s637 = scalar_lea.sflag [#allocation4], %s636
        %s638 = sand.u32 %s158, 1
        %s639 = smul.addr %s638, 768
        %s640 = scalar_lea.vmem [#allocation3], %s639
        // Predicated region
        $region89: #{vit_image_encoder.1} parent=87 // pred_check
          %p641 = pneg %p171
        $region90: #{vit_image_encoder.1} parent=87 // pred_check_branch
          %643 = sbr.rel (%p641) target = $region92
        $region91: #{vit_image_encoder.1} parent=87 // pred_region
          %644 = dma.done %s637, 12288
        $region92: #{vit_image_encoder.1} parent=87 // pred_fallthru
          _
        %s645 = sand.u32 %s35, 1
        %s646 = scalar_lea.sflag [#allocation7], %s645
        %s647 = sand.u32 %s314, 1
        %s648 = smul.addr %s647, 1024
        %s649 = scalar_lea.vmem [#allocation6], %s648
        // Predicated region
        $region93: #{vit_image_encoder.1} parent=87 // pred_check
          %p650 = pneg %p327
        $region94: #{vit_image_encoder.1} parent=87 // pred_check_branch
          %652 = sbr.rel (%p650) target = $region96
        $region95: #{vit_image_encoder.1} parent=87 // pred_region
          %653 = dma.done %s646, 16384
        $region96: #{vit_image_encoder.1} parent=87 // pred_fallthru
          _
        %s654 = sand.u32 %s35, 1
        %s655 = scalar_lea.sflag [#allocation7], %s654
        %s656 = sand.u32 %s366, 1
        %s657 = smul.addr %s656, 1024
        %s658 = scalar_lea.vmem [#allocation8], %s657
        // Predicated region
        $region97: #{vit_image_encoder.1} parent=87 // pred_check
          %p659 = pneg %p379
        $region98: #{vit_image_encoder.1} parent=87 // pred_check_branch
          %661 = sbr.rel (%p659) target = $region100
        $region99: #{vit_image_encoder.1} parent=87 // pred_region
          %662 = dma.done %s655, 16384
        $region100: #{vit_image_encoder.1} parent=87 // pred_fallthru
          _
        %p663 = pneg %p51
        %p664 = pneg %p48
        %p665 = pneg %p72
        %p666 = pneg %p69
        %p667 = pneg %p93
        %p668 = pneg %p90
        %p669 = scmp.lt.s32.totalorder %s35, 1
        %s670 = scalar_select %p669, %s35, 1
        %s671 = smul.addr %s670, 2
        %s672 = scalar_lea.vmem %s3, %s671
        %p673 = pneg %p119
        %p674 = pneg %p116
        %p675 = scmp.lt.s32.totalorder %s35, 1
        %s676 = scalar_select %p675, %s35, 1
        %s677 = smul.addr %s676, 2
        %s678 = scalar_lea.vmem %s4, %s677
        %p679 = pneg %p145
        %p680 = pneg %p142
        %s681 = sand.u32 %s158, 1
        %s682 = scalar_lea.sflag [#allocation4], %s681
        %s683 = sand.u32 %s158, 1
        %s684 = smul.addr %s683, 768
        %s685 = scalar_lea.vmem [#allocation3], %s684
        %p686 = pneg %p171
        %p687 = pneg %p168
        %p688 = scmp.lt.s32.totalorder %s35, 1
        %s689 = scalar_select %p688, %s35, 1
        %s690 = smul.addr %s689, 6
        %s691 = scalar_lea.vmem %s6, %s690
        %p692 = pneg %p197
        %p693 = pneg %p194
        %p694 = scmp.lt.s32.totalorder %s35, 1
        %s695 = scalar_select %p694, %s35, 1
        %s696 = smul.addr %s695, 64
        %s697 = smul.addr %s696, 4
        %s698 = scalar_lea.vmem %s7, %s697
        %p699 = pneg %p223
        %p700 = pneg %p220
        %p701 = scmp.lt.s32.totalorder %s35, 1
        %s702 = scalar_select %p701, %s35, 1
        %s703 = smul.addr %s702, 2
        %s704 = scalar_lea.vmem %s8, %s703
        %p705 = pneg %p249
        %p706 = pneg %p246
        %p707 = scmp.lt.s32.totalorder %s35, 1
        %s708 = scalar_select %p707, %s35, 1
        %s709 = smul.addr %s708, 2
        %s710 = scalar_lea.vmem %s9, %s709
        %p711 = pneg %p275
        %p712 = pneg %p272
        %p713 = scmp.lt.s32.totalorder %s35, 1
        %s714 = scalar_select %p713, %s35, 1
        %s715 = smul.addr %s714, 2
        %s716 = scalar_lea.vmem %s10, %s715
        %p717 = pneg %p301
        %p718 = pneg %p298
        %s719 = sand.u32 %s35, 1
        %s720 = scalar_lea.sflag [#allocation7], %s719
        %s721 = sand.u32 %s314, 1
        %s722 = smul.addr %s721, 1024
        %s723 = scalar_lea.vmem [#allocation6], %s722
        %p724 = pneg %p327
        %p725 = pneg %p324
        %p726 = scmp.lt.s32.totalorder %s35, 1
        %s727 = scalar_select %p726, %s35, 1
        %s728 = smul.addr %s727, 8
        %s729 = scalar_lea.vmem %s12, %s728
        %p730 = pneg %p353
        %p731 = pneg %p350
        %s732 = sand.u32 %s35, 1
        %s733 = scalar_lea.sflag [#allocation7], %s732
        %s734 = sand.u32 %s366, 1
        %s735 = smul.addr %s734, 1024
        %s736 = scalar_lea.vmem [#allocation8], %s735
        %p737 = pneg %p379
        %p738 = pneg %p376
        %p739 = scmp.lt.s32.totalorder %s35, 1
        %s740 = scalar_select %p739, %s35, 1
        %s741 = smul.addr %s740, 2
        %s742 = scalar_lea.vmem %s14, %s741
        %p743 = pneg %p405
        %p744 = pneg %p402
        %p745 = pneg %p426
        %p746 = pneg %p423
        %p747 = pneg %p447
        %p748 = pneg %p444
        %p749 = pneg %p468
        %p750 = pneg %p465
        %p751 = scmp.lt.s32.totalorder %s35, 1
        %s752 = scalar_select %p751, %s35, 1
        %s753 = smul.addr %s752, 2
        %s754 = scalar_lea.vmem %s3, %s753
        %p755 = scmp.lt.s32.totalorder %s35, 1
        %s756 = scalar_select %p755, %s35, 1
        %s757 = smul.addr %s756, 2
        %s758 = scalar_lea.vmem %s4, %s757
        %p759 = scmp.lt.s32.totalorder %s35, 1
        %s760 = scalar_select %p759, %s35, 1
        %s761 = smul.addr %s760, 6
        %s762 = scalar_lea.vmem %s6, %s761
        %p763 = scmp.lt.s32.totalorder %s35, 1
        %s764 = scalar_select %p763, %s35, 1
        %s765 = smul.addr %s764, 64
        %s766 = smul.addr %s765, 4
        %s767 = scalar_lea.vmem %s7, %s766
        %p768 = scmp.lt.s32.totalorder %s35, 1
        %s769 = scalar_select %p768, %s35, 1
        %s770 = smul.addr %s769, 2
        %s771 = scalar_lea.vmem %s8, %s770
        %p772 = scmp.lt.s32.totalorder %s35, 1
        %s773 = scalar_select %p772, %s35, 1
        %s774 = smul.addr %s773, 2
        %s775 = scalar_lea.vmem %s9, %s774
        %p776 = scmp.lt.s32.totalorder %s35, 1
        %s777 = scalar_select %p776, %s35, 1
        %s778 = smul.addr %s777, 2
        %s779 = scalar_lea.vmem %s10, %s778
        %p780 = scmp.lt.s32.totalorder %s35, 1
        %s781 = scalar_select %p780, %s35, 1
        %s782 = smul.addr %s781, 8
        %s783 = scalar_lea.vmem %s12, %s782
        %p784 = scmp.lt.s32.totalorder %s35, 1
        %s785 = scalar_select %p784, %s35, 1
        %s786 = smul.addr %s785, 2
        %s787 = scalar_lea.vmem %s14, %s786
        %p793 = scmp.eq.s32.totalorder %s35, 0
        // Predicated region
        $region101: #{vit_image_encoder.1} parent=87 // pred_check
          %p794 = pneg %p793
        $region102: #{vit_image_encoder.1} parent=87 // pred_check_branch
          %796 = sbr.rel (%p794) target = $region104
        $region103: #{vit_image_encoder.1} parent=87 // pred_region
          %v797 = vld [vmem:[%s0] sm:$0xff]
          %v798 = vld [vmem:[%s0 + $0x8] sm:$0xff]
          %v799 = vld [vmem:[%s0 + $0x10] sm:$0xff]
          %v800 = vld [vmem:[%s0 + $0x18] sm:$0xff]
          %v801 = vld [vmem:[%s0 + $0x20] sm:$0xff]
          %v802 = vld [vmem:[%s0 + $0x28] sm:$0xff]
          %v803 = vld [vmem:[%s1] sm:$0xff]
          %v804 = vld [vmem:[%s1 + $0x8] sm:$0xff]
          %v805 = vld [vmem:[%s1 + $0x10] sm:$0xff]
          %v806 = vld [vmem:[%s1 + $0x18] sm:$0xff]
          %v807 = vld [vmem:[%s1 + $0x20] sm:$0xff]
          %v808 = vld [vmem:[%s1 + $0x28] sm:$0xff]
          %v809 = vld [vmem:[%s1 + $0x30] sm:$0xff]
          %v810 = vld [vmem:[%s1 + $0x38] sm:$0xff]
          %v811 = vld [vmem:[%s1 + $0x40] sm:$0xff]
          %v812 = vld [vmem:[%s1 + $0x48] sm:$0xff]
          %v813 = vld [vmem:[%s1 + $0x50] sm:$0xff]
          %v814 = vld [vmem:[%s1 + $0x58] sm:$0xff]
          %v815 = vld [vmem:[%s1 + $0x60] sm:$0xff]
          %v816 = vld [vmem:[%s1 + $0x68] sm:$0xff]
          %v817 = vld [vmem:[%s1 + $0x70] sm:$0xff]
          %v818 = vld [vmem:[%s1 + $0x78] sm:$0xff]
          %v819 = vld [vmem:[%s1 + $0x80] sm:$0xff]
          %v820 = vld [vmem:[%s1 + $0x88] sm:$0xff]
          %v821 = vld [vmem:[%s1 + $0x90] sm:$0xff]
          %v822 = vld [vmem:[%s1 + $0x98] sm:$0xff]
          %v823 = vld [vmem:[%s1 + $0xa0] sm:$0xff]
          %v824 = vld [vmem:[%s1 + $0xa8] sm:$0xff]
          %v825 = vld [vmem:[%s1 + $0xb0] sm:$0xff]
          %v826 = vld [vmem:[%s1 + $0xb8] sm:$0xff]
          %v827 = vld [vmem:[%s1 + $0xc0] sm:$0xff]
          %v828 = vld [vmem:[%s1 + $0xc8] sm:$0xff]
          %v829 = vld [vmem:[%s1 + $0xd0] sm:$0xff]
          %v830 = vld [vmem:[%s1 + $0xd8] sm:$0xff]
          %v831 = vld [vmem:[%s1 + $0xe0] sm:$0xff]
          %v832 = vld [vmem:[%s1 + $0xe8] sm:$0xff]
          %v833 = vld [vmem:[%s1 + $0xf0] sm:$0xff]
          %v834 = vld [vmem:[%s1 + $0xf8] sm:$0xff]
          %v835 = vld [vmem:[%s1 + $0x100] sm:$0xff]
          %v836 = vld [vmem:[%s1 + $0x108] sm:$0xff]
          %v837 = vld [vmem:[%s1 + $0x110] sm:$0xff]
          %v838 = vld [vmem:[%s1 + $0x118] sm:$0xff]
          %v839 = vld [vmem:[%s1 + $0x120] sm:$0xff]
          %v840 = vld [vmem:[%s1 + $0x128] sm:$0xff]
          %v841 = vld [vmem:[%s1 + $0x130] sm:$0xff]
          %v842 = vld [vmem:[%s1 + $0x138] sm:$0xff]
          %v843 = vld [vmem:[%s1 + $0x140] sm:$0xff]
          %v844 = vld [vmem:[%s1 + $0x148] sm:$0xff]
          %v845 = vld [vmem:[%s1 + $0x150] sm:$0xff]
          %v846 = vld [vmem:[%s1 + $0x158] sm:$0xff]
          %v847 = vld [vmem:[%s1 + $0x160] sm:$0xff]
          %v848 = vld [vmem:[%s1 + $0x168] sm:$0xff]
          %v849 = vld [vmem:[%s1 + $0x170] sm:$0xff]
          %v850 = vld [vmem:[%s1 + $0x178] sm:$0xff]
          %v851 = vld [vmem:[%s1 + $0x180] sm:$0xff]
          %v852 = vld [vmem:[%s1 + $0x188] sm:$0xff]
          %v853 = vld [vmem:[%s1 + $0x190] sm:$0xff]
          %v854 = vld [vmem:[%s1 + $0x198] sm:$0xff]
          %v855 = vld [vmem:[%s1 + $0x1a0] sm:$0xff]
          %v856 = vld [vmem:[%s1 + $0x1a8] sm:$0xff]
          %v857 = vld [vmem:[%s1 + $0x1b0] sm:$0xff]
          %v858 = vld [vmem:[%s1 + $0x1b8] sm:$0xff]
          %v859 = vld [vmem:[%s1 + $0x1c0] sm:$0xff]
          %v860 = vld [vmem:[%s1 + $0x1c8] sm:$0xff]
          %v861 = vld [vmem:[%s1 + $0x1d0] sm:$0xff]
          %v862 = vld [vmem:[%s1 + $0x1d8] sm:$0xff]
          %v863 = vld [vmem:[%s1 + $0x1e0] sm:$0xff]
          %v864 = vld [vmem:[%s1 + $0x1e8] sm:$0xff]
          %v865 = vld [vmem:[%s1 + $0x1f0] sm:$0xff]
          %v866 = vld [vmem:[%s1 + $0x1f8] sm:$0xff]
          %v867 = vld [vmem:[%s1 + $0x200] sm:$0xff]
          %v868 = vld [vmem:[%s1 + $0x208] sm:$0xff]
          %v869 = vld [vmem:[%s1 + $0x210] sm:$0xff]
          %v870 = vld [vmem:[%s1 + $0x218] sm:$0xff]
          %v871 = vld [vmem:[%s1 + $0x220] sm:$0xff]
          %v872 = vld [vmem:[%s1 + $0x228] sm:$0xff]
          %v873 = vld [vmem:[%s1 + $0x230] sm:$0xff]
          %v874 = vld [vmem:[%s1 + $0x238] sm:$0xff]
          %v875 = vld [vmem:[%s1 + $0x240] sm:$0xff]
          %v876 = vld [vmem:[%s1 + $0x248] sm:$0xff]
          %v877 = vld [vmem:[%s1 + $0x250] sm:$0xff]
          %v878 = vld [vmem:[%s1 + $0x258] sm:$0xff]
          %v879 = vld [vmem:[%s1 + $0x260] sm:$0xff]
          %v880 = vld [vmem:[%s1 + $0x268] sm:$0xff]
          %v881 = vld [vmem:[%s1 + $0x270] sm:$0xff]
          %v882 = vld [vmem:[%s1 + $0x278] sm:$0xff]
          %v883 = vld [vmem:[%s1 + $0x280] sm:$0xff]
          %v884 = vld [vmem:[%s1 + $0x288] sm:$0xff]
          %v885 = vld [vmem:[%s1 + $0x290] sm:$0xff]
          %v886 = vld [vmem:[%s1 + $0x298] sm:$0xff]
          %v887 = vld [vmem:[%s1 + $0x2a0] sm:$0xff]
          %v888 = vld [vmem:[%s1 + $0x2a8] sm:$0xff]
          %v889 = vld [vmem:[%s1 + $0x2b0] sm:$0xff]
          %v890 = vld [vmem:[%s1 + $0x2b8] sm:$0xff]
          %v891 = vld [vmem:[%s1 + $0x2c0] sm:$0xff]
          %v892 = vld [vmem:[%s1 + $0x2c8] sm:$0xff]
          %v893 = vld [vmem:[%s1 + $0x2d0] sm:$0xff]
          %v894 = vld [vmem:[%s1 + $0x2d8] sm:$0xff]
          %v895 = vld [vmem:[%s1 + $0x2e0] sm:$0xff]
          %v896 = vld [vmem:[%s1 + $0x2e8] sm:$0xff]
          %v897 = vld [vmem:[%s1 + $0x2f0] sm:$0xff]
          %v898 = vld [vmem:[%s1 + $0x2f8] sm:$0xff]
          %v899 = vld [vmem:[%s2] sm:$0xff]
          %v900 = vld [vmem:[%s2 + $0x8] sm:$0xff]
          %v901 = vld [vmem:[%s2 + $0x10] sm:$0xff]
          %v902 = vld [vmem:[%s2 + $0x18] sm:$0xff]
          %v909 = vunpack.c.l.b16 %v797
          %v910 = vunpack.c.h.b16 %v797
          %v911 = vunpack.c.l.b16 %v798
          %v912 = vunpack.c.h.b16 %v798
          %v913 = vunpack.c.l.b16 %v799
          %v914 = vunpack.c.h.b16 %v799
          %v915 = vunpack.c.l.b16 %v800
          %v916 = vunpack.c.h.b16 %v800
          %v917 = vunpack.c.l.b16 %v801
          %v918 = vunpack.c.h.b16 %v801
          %v919 = vunpack.c.l.b16 %v802
          %v920 = vunpack.c.h.b16 %v802
          %v921 = vpack.c.b16 %v915, %v909
          %v922 = vpack.c.b16 %v916, %v910
          %v923 = vpack.c.b16 %v917, %v911
          %v924 = vpack.c.b16 %v918, %v912
          %v925 = vpack.c.b16 %v919, %v913
          %v926 = vpack.c.b16 %v920, %v914
          %v1029 = vunpack.c.l.b16 %v803
          %v1030 = vunpack.c.h.b16 %v803
          %v1031 = vunpack.c.l.b16 %v804
          %v1032 = vunpack.c.h.b16 %v804
          %v1033 = vunpack.c.l.b16 %v805
          %v1034 = vunpack.c.h.b16 %v805
          %v1035 = vunpack.c.l.b16 %v806
          %v1036 = vunpack.c.h.b16 %v806
          %v1037 = vunpack.c.l.b16 %v807
          %v1038 = vunpack.c.h.b16 %v807
          %v1039 = vunpack.c.l.b16 %v808
          %v1040 = vunpack.c.h.b16 %v808
          %v1041 = vunpack.c.l.b16 %v809
          %v1042 = vunpack.c.h.b16 %v809
          %v1043 = vunpack.c.l.b16 %v810
          %v1044 = vunpack.c.h.b16 %v810
          %v1045 = vunpack.c.l.b16 %v811
          %v1046 = vunpack.c.h.b16 %v811
          %v1047 = vunpack.c.l.b16 %v812
          %v1048 = vunpack.c.h.b16 %v812
          %v1049 = vunpack.c.l.b16 %v813
          %v1050 = vunpack.c.h.b16 %v813
          %v1051 = vunpack.c.l.b16 %v814
          %v1052 = vunpack.c.h.b16 %v814
          %v1053 = vunpack.c.l.b16 %v815
          %v1054 = vunpack.c.h.b16 %v815
          %v1055 = vunpack.c.l.b16 %v816
          %v1056 = vunpack.c.h.b16 %v816
          %v1057 = vunpack.c.l.b16 %v817
          %v1058 = vunpack.c.h.b16 %v817
          %v1059 = vunpack.c.l.b16 %v818
          %v1060 = vunpack.c.h.b16 %v818
          %v1061 = vunpack.c.l.b16 %v819
          %v1062 = vunpack.c.h.b16 %v819
          %v1063 = vunpack.c.l.b16 %v820
          %v1064 = vunpack.c.h.b16 %v820
          %v1065 = vunpack.c.l.b16 %v821
          %v1066 = vunpack.c.h.b16 %v821
          %v1067 = vunpack.c.l.b16 %v822
          %v1068 = vunpack.c.h.b16 %v822
          %v1069 = vunpack.c.l.b16 %v823
          %v1070 = vunpack.c.h.b16 %v823
          %v1071 = vunpack.c.l.b16 %v824
          %v1072 = vunpack.c.h.b16 %v824
          %v1073 = vunpack.c.l.b16 %v825
          %v1074 = vunpack.c.h.b16 %v825
          %v1075 = vunpack.c.l.b16 %v826
          %v1076 = vunpack.c.h.b16 %v826
          %v1077 = vunpack.c.l.b16 %v827
          %v1078 = vunpack.c.h.b16 %v827
          %v1079 = vunpack.c.l.b16 %v828
          %v1080 = vunpack.c.h.b16 %v828
          %v1081 = vunpack.c.l.b16 %v829
          %v1082 = vunpack.c.h.b16 %v829
          %v1083 = vunpack.c.l.b16 %v830
          %v1084 = vunpack.c.h.b16 %v830
          %v1085 = vunpack.c.l.b16 %v831
          %v1086 = vunpack.c.h.b16 %v831
          %v1087 = vunpack.c.l.b16 %v832
          %v1088 = vunpack.c.h.b16 %v832
          %v1089 = vunpack.c.l.b16 %v833
          %v1090 = vunpack.c.h.b16 %v833
          %v1091 = vunpack.c.l.b16 %v834
          %v1092 = vunpack.c.h.b16 %v834
          %v1093 = vunpack.c.l.b16 %v835
          %v1094 = vunpack.c.h.b16 %v835
          %v1095 = vunpack.c.l.b16 %v836
          %v1096 = vunpack.c.h.b16 %v836
          %v1097 = vunpack.c.l.b16 %v837
          %v1098 = vunpack.c.h.b16 %v837
          %v1099 = vunpack.c.l.b16 %v838
          %v1100 = vunpack.c.h.b16 %v838
          %v1101 = vunpack.c.l.b16 %v839
          %v1102 = vunpack.c.h.b16 %v839
          %v1103 = vunpack.c.l.b16 %v840
          %v1104 = vunpack.c.h.b16 %v840
          %v1105 = vunpack.c.l.b16 %v841
          %v1106 = vunpack.c.h.b16 %v841
          %v1107 = vunpack.c.l.b16 %v842
          %v1108 = vunpack.c.h.b16 %v842
          %v1109 = vunpack.c.l.b16 %v843
          %v1110 = vunpack.c.h.b16 %v843
          %v1111 = vunpack.c.l.b16 %v844
          %v1112 = vunpack.c.h.b16 %v844
          %v1113 = vunpack.c.l.b16 %v845
          %v1114 = vunpack.c.h.b16 %v845
          %v1115 = vunpack.c.l.b16 %v846
          %v1116 = vunpack.c.h.b16 %v846
          %v1117 = vunpack.c.l.b16 %v847
          %v1118 = vunpack.c.h.b16 %v847
          %v1119 = vunpack.c.l.b16 %v848
          %v1120 = vunpack.c.h.b16 %v848
          %v1121 = vunpack.c.l.b16 %v849
          %v1122 = vunpack.c.h.b16 %v849
          %v1123 = vunpack.c.l.b16 %v850
          %v1124 = vunpack.c.h.b16 %v850
          %v1125 = vunpack.c.l.b16 %v851
          %v1126 = vunpack.c.h.b16 %v851
          %v1127 = vunpack.c.l.b16 %v852
          %v1128 = vunpack.c.h.b16 %v852
          %v1129 = vunpack.c.l.b16 %v853
          %v1130 = vunpack.c.h.b16 %v853
          %v1131 = vunpack.c.l.b16 %v854
          %v1132 = vunpack.c.h.b16 %v854
          %v1133 = vunpack.c.l.b16 %v855
          %v1134 = vunpack.c.h.b16 %v855
          %v1135 = vunpack.c.l.b16 %v856
          %v1136 = vunpack.c.h.b16 %v856
          %v1137 = vunpack.c.l.b16 %v857
          %v1138 = vunpack.c.h.b16 %v857
          %v1139 = vunpack.c.l.b16 %v858
          %v1140 = vunpack.c.h.b16 %v858
          %v1141 = vunpack.c.l.b16 %v859
          %v1142 = vunpack.c.h.b16 %v859
          %v1143 = vunpack.c.l.b16 %v860
          %v1144 = vunpack.c.h.b16 %v860
          %v1145 = vunpack.c.l.b16 %v861
          %v1146 = vunpack.c.h.b16 %v861
          %v1147 = vunpack.c.l.b16 %v862
          %v1148 = vunpack.c.h.b16 %v862
          %v1149 = vunpack.c.l.b16 %v863
          %v1150 = vunpack.c.h.b16 %v863
          %v1151 = vunpack.c.l.b16 %v864
          %v1152 = vunpack.c.h.b16 %v864
          %v1153 = vunpack.c.l.b16 %v865
          %v1154 = vunpack.c.h.b16 %v865
          %v1155 = vunpack.c.l.b16 %v866
          %v1156 = vunpack.c.h.b16 %v866
          %v1157 = vunpack.c.l.b16 %v867
          %v1158 = vunpack.c.h.b16 %v867
          %v1159 = vunpack.c.l.b16 %v868
          %v1160 = vunpack.c.h.b16 %v868
          %v1161 = vunpack.c.l.b16 %v869
          %v1162 = vunpack.c.h.b16 %v869
          %v1163 = vunpack.c.l.b16 %v870
          %v1164 = vunpack.c.h.b16 %v870
          %v1165 = vunpack.c.l.b16 %v871
          %v1166 = vunpack.c.h.b16 %v871
          %v1167 = vunpack.c.l.b16 %v872
          %v1168 = vunpack.c.h.b16 %v872
          %v1169 = vunpack.c.l.b16 %v873
          %v1170 = vunpack.c.h.b16 %v873
          %v1171 = vunpack.c.l.b16 %v874
          %v1172 = vunpack.c.h.b16 %v874
          %v1173 = vunpack.c.l.b16 %v875
          %v1174 = vunpack.c.h.b16 %v875
          %v1175 = vunpack.c.l.b16 %v876
          %v1176 = vunpack.c.h.b16 %v876
          %v1177 = vunpack.c.l.b16 %v877
          %v1178 = vunpack.c.h.b16 %v877
          %v1179 = vunpack.c.l.b16 %v878
          %v1180 = vunpack.c.h.b16 %v878
          %v1181 = vunpack.c.l.b16 %v879
          %v1182 = vunpack.c.h.b16 %v879
          %v1183 = vunpack.c.l.b16 %v880
          %v1184 = vunpack.c.h.b16 %v880
          %v1185 = vunpack.c.l.b16 %v881
          %v1186 = vunpack.c.h.b16 %v881
          %v1187 = vunpack.c.l.b16 %v882
          %v1188 = vunpack.c.h.b16 %v882
          %v1189 = vunpack.c.l.b16 %v883
          %v1190 = vunpack.c.h.b16 %v883
          %v1191 = vunpack.c.l.b16 %v884
          %v1192 = vunpack.c.h.b16 %v884
          %v1193 = vunpack.c.l.b16 %v885
          %v1194 = vunpack.c.h.b16 %v885
          %v1195 = vunpack.c.l.b16 %v886
          %v1196 = vunpack.c.h.b16 %v886
          %v1197 = vunpack.c.l.b16 %v887
          %v1198 = vunpack.c.h.b16 %v887
          %v1199 = vunpack.c.l.b16 %v888
          %v1200 = vunpack.c.h.b16 %v888
          %v1201 = vunpack.c.l.b16 %v889
          %v1202 = vunpack.c.h.b16 %v889
          %v1203 = vunpack.c.l.b16 %v890
          %v1204 = vunpack.c.h.b16 %v890
          %v1205 = vunpack.c.l.b16 %v891
          %v1206 = vunpack.c.h.b16 %v891
          %v1207 = vunpack.c.l.b16 %v892
          %v1208 = vunpack.c.h.b16 %v892
          %v1209 = vunpack.c.l.b16 %v893
          %v1210 = vunpack.c.h.b16 %v893
          %v1211 = vunpack.c.l.b16 %v894
          %v1212 = vunpack.c.h.b16 %v894
          %v1213 = vunpack.c.l.b16 %v895
          %v1214 = vunpack.c.h.b16 %v895
          %v1215 = vunpack.c.l.b16 %v896
          %v1216 = vunpack.c.h.b16 %v896
          %v1217 = vunpack.c.l.b16 %v897
          %v1218 = vunpack.c.h.b16 %v897
          %v1219 = vunpack.c.l.b16 %v898
          %v1220 = vunpack.c.h.b16 %v898
          %v1221 = vpack.c.b16 %v1031, %v1029
          %v1222 = vpack.c.b16 %v1032, %v1030
          %v1223 = vpack.c.b16 %v1035, %v1033
          %v1224 = vpack.c.b16 %v1036, %v1034
          %v1225 = vpack.c.b16 %v1039, %v1037
          %v1226 = vpack.c.b16 %v1040, %v1038
          %v1227 = vpack.c.b16 %v1043, %v1041
          %v1228 = vpack.c.b16 %v1044, %v1042
          %v1229 = vpack.c.b16 %v1047, %v1045
          %v1230 = vpack.c.b16 %v1048, %v1046
          %v1231 = vpack.c.b16 %v1051, %v1049
          %v1232 = vpack.c.b16 %v1052, %v1050
          %v1233 = vpack.c.b16 %v1055, %v1053
          %v1234 = vpack.c.b16 %v1056, %v1054
          %v1235 = vpack.c.b16 %v1059, %v1057
          %v1236 = vpack.c.b16 %v1060, %v1058
          %v1237 = vpack.c.b16 %v1063, %v1061
          %v1238 = vpack.c.b16 %v1064, %v1062
          %v1239 = vpack.c.b16 %v1067, %v1065
          %v1240 = vpack.c.b16 %v1068, %v1066
          %v1241 = vpack.c.b16 %v1071, %v1069
          %v1242 = vpack.c.b16 %v1072, %v1070
          %v1243 = vpack.c.b16 %v1075, %v1073
          %v1244 = vpack.c.b16 %v1076, %v1074
          %v1245 = vpack.c.b16 %v1079, %v1077
          %v1246 = vpack.c.b16 %v1080, %v1078
          %v1247 = vpack.c.b16 %v1083, %v1081
          %v1248 = vpack.c.b16 %v1084, %v1082
          %v1249 = vpack.c.b16 %v1087, %v1085
          %v1250 = vpack.c.b16 %v1088, %v1086
          %v1251 = vpack.c.b16 %v1091, %v1089
          %v1252 = vpack.c.b16 %v1092, %v1090
          %v1253 = vpack.c.b16 %v1095, %v1093
          %v1254 = vpack.c.b16 %v1096, %v1094
          %v1255 = vpack.c.b16 %v1099, %v1097
          %v1256 = vpack.c.b16 %v1100, %v1098
          %v1257 = vpack.c.b16 %v1103, %v1101
          %v1258 = vpack.c.b16 %v1104, %v1102
          %v1259 = vpack.c.b16 %v1107, %v1105
          %v1260 = vpack.c.b16 %v1108, %v1106
          %v1261 = vpack.c.b16 %v1111, %v1109
          %v1262 = vpack.c.b16 %v1112, %v1110
          %v1263 = vpack.c.b16 %v1115, %v1113
          %v1264 = vpack.c.b16 %v1116, %v1114
          %v1265 = vpack.c.b16 %v1119, %v1117
          %v1266 = vpack.c.b16 %v1120, %v1118
          %v1267 = vpack.c.b16 %v1123, %v1121
          %v1268 = vpack.c.b16 %v1124, %v1122
          %v1269 = vpack.c.b16 %v1127, %v1125
          %v1270 = vpack.c.b16 %v1128, %v1126
          %v1271 = vpack.c.b16 %v1131, %v1129
          %v1272 = vpack.c.b16 %v1132, %v1130
          %v1273 = vpack.c.b16 %v1135, %v1133
          %v1274 = vpack.c.b16 %v1136, %v1134
          %v1275 = vpack.c.b16 %v1139, %v1137
          %v1276 = vpack.c.b16 %v1140, %v1138
          %v1277 = vpack.c.b16 %v1143, %v1141
          %v1278 = vpack.c.b16 %v1144, %v1142
          %v1279 = vpack.c.b16 %v1147, %v1145
          %v1280 = vpack.c.b16 %v1148, %v1146
          %v1281 = vpack.c.b16 %v1151, %v1149
          %v1282 = vpack.c.b16 %v1152, %v1150
          %v1283 = vpack.c.b16 %v1155, %v1153
          %v1284 = vpack.c.b16 %v1156, %v1154
          %v1285 = vpack.c.b16 %v1159, %v1157
          %v1286 = vpack.c.b16 %v1160, %v1158
          %v1287 = vpack.c.b16 %v1163, %v1161
          %v1288 = vpack.c.b16 %v1164, %v1162
          %v1289 = vpack.c.b16 %v1167, %v1165
          %v1290 = vpack.c.b16 %v1168, %v1166
          %v1291 = vpack.c.b16 %v1171, %v1169
          %v1292 = vpack.c.b16 %v1172, %v1170
          %v1293 = vpack.c.b16 %v1175, %v1173
          %v1294 = vpack.c.b16 %v1176, %v1174
          %v1295 = vpack.c.b16 %v1179, %v1177
          %v1296 = vpack.c.b16 %v1180, %v1178
          %v1297 = vpack.c.b16 %v1183, %v1181
          %v1298 = vpack.c.b16 %v1184, %v1182
          %v1299 = vpack.c.b16 %v1187, %v1185
          %v1300 = vpack.c.b16 %v1188, %v1186
          %v1301 = vpack.c.b16 %v1191, %v1189
          %v1302 = vpack.c.b16 %v1192, %v1190
          %v1303 = vpack.c.b16 %v1195, %v1193
          %v1304 = vpack.c.b16 %v1196, %v1194
          %v1305 = vpack.c.b16 %v1199, %v1197
          %v1306 = vpack.c.b16 %v1200, %v1198
          %v1307 = vpack.c.b16 %v1203, %v1201
          %v1308 = vpack.c.b16 %v1204, %v1202
          %v1309 = vpack.c.b16 %v1207, %v1205
          %v1310 = vpack.c.b16 %v1208, %v1206
          %v1311 = vpack.c.b16 %v1211, %v1209
          %v1312 = vpack.c.b16 %v1212, %v1210
          %v1313 = vpack.c.b16 %v1215, %v1213
          %v1314 = vpack.c.b16 %v1216, %v1214
          %v1315 = vpack.c.b16 %v1219, %v1217
          %v1316 = vpack.c.b16 %v1220, %v1218
          %1413 = vmatprep.subr.bf16.mxu0 %v1222
          %1414 = vmatpush1.bf16.msra.mxu0 %v1221
          %1415 = vmatprep.subr.bf16.mxu0 %v1224
          %1416 = vmatpush1.bf16.msra.mxu0 %v1223
          %1417 = vmatprep.subr.bf16.mxu0 %v1226
          %1418 = vmatpush1.bf16.msra.mxu0 %v1225
          %1419 = vmatprep.subr.bf16.mxu0 %v1228
          %1420 = vmatpush1.bf16.msra.mxu0 %v1227
          %1421 = vmatprep.subr.bf16.mxu0 %v1230
          %1422 = vmatpush1.bf16.msra.mxu0 %v1229
          %1423 = vmatprep.subr.bf16.mxu0 %v1232
          %1424 = vmatpush1.bf16.msra.mxu0 %v1231
          %1425 = vmatprep.subr.bf16.mxu0 %v1234
          %1426 = vmatpush1.bf16.msra.mxu0 %v1233
          %1427 = vmatprep.subr.bf16.mxu0 %v1236
          %1428 = vmatpush1.bf16.msra.mxu0 %v1235
          %1429 = vmatprep.subr.bf16.mxu0 %v1238
          %1430 = vmatpush1.bf16.msra.mxu0 %v1237
          %1431 = vmatprep.subr.bf16.mxu0 %v1240
          %1432 = vmatpush1.bf16.msra.mxu0 %v1239
          %1433 = vmatprep.subr.bf16.mxu0 %v1242
          %1434 = vmatpush1.bf16.msra.mxu0 %v1241
          %1435 = vmatprep.subr.bf16.mxu0 %v1244
          %1436 = vmatpush1.bf16.msra.mxu0 %v1243
          %1437 = vmatprep.subr.bf16.mxu0 %v1246
          %1438 = vmatpush1.bf16.msra.mxu0 %v1245
          %1439 = vmatprep.subr.bf16.mxu0 %v1248
          %1440 = vmatpush1.bf16.msra.mxu0 %v1247
          %1441 = vmatprep.subr.bf16.mxu0 %v1250
          %1442 = vmatpush1.bf16.msra.mxu0 %v1249
          %1443 = vmatprep.subr.bf16.mxu0 %v1252
          %1444 = vmatpush1.bf16.msra.mxu0 %v1251
          %1445 = vmatprep.mubr.bf16.mxu0 %v922
          %1446 = vmatmul.mubr.bf16.gmra.mrb[0].mxu0 %v921
          %v1447 = vpop.f32.mrb[0].mxu0
          %v1448 = vadd.f32 %v899, %v1447
          %v1449 = vpop.f32.mrb[0].mxu0
          %v1450 = vadd.f32 %v900, %v1449
          %v1451 = vpop.f32.mrb[0].mxu0
          %v1452 = vadd.f32 %v901, %v1451
          %v1453 = vpop.f32.mrb[0].mxu0
          %v1454 = vadd.f32 %v902, %v1453
          %1455 = vdwg.mxu0
          %1456 = vmatprep.subr.bf16.mxu0 %v1254
          %1457 = vmatpush1.bf16.msra.mxu0 %v1253
          %1458 = vmatprep.subr.bf16.mxu0 %v1256
          %1459 = vmatpush1.bf16.msra.mxu0 %v1255
          %1460 = vmatprep.subr.bf16.mxu0 %v1258
          %1461 = vmatpush1.bf16.msra.mxu0 %v1257
          %1462 = vmatprep.subr.bf16.mxu0 %v1260
          %1463 = vmatpush1.bf16.msra.mxu0 %v1259
          %1464 = vmatprep.subr.bf16.mxu0 %v1262
          %1465 = vmatpush1.bf16.msra.mxu0 %v1261
          %1466 = vmatprep.subr.bf16.mxu0 %v1264
          %1467 = vmatpush1.bf16.msra.mxu0 %v1263
          %1468 = vmatprep.subr.bf16.mxu0 %v1266
          %1469 = vmatpush1.bf16.msra.mxu0 %v1265
          %1470 = vmatprep.subr.bf16.mxu0 %v1268
          %1471 = vmatpush1.bf16.msra.mxu0 %v1267
          %1472 = vmatprep.subr.bf16.mxu0 %v1270
          %1473 = vmatpush1.bf16.msra.mxu0 %v1269
          %1474 = vmatprep.subr.bf16.mxu0 %v1272
          %1475 = vmatpush1.bf16.msra.mxu0 %v1271
          %1476 = vmatprep.subr.bf16.mxu0 %v1274
          %1477 = vmatpush1.bf16.msra.mxu0 %v1273
          %1478 = vmatprep.subr.bf16.mxu0 %v1276
          %1479 = vmatpush1.bf16.msra.mxu0 %v1275
          %1480 = vmatprep.subr.bf16.mxu0 %v1278
          %1481 = vmatpush1.bf16.msra.mxu0 %v1277
          %1482 = vmatprep.subr.bf16.mxu0 %v1280
          %1483 = vmatpush1.bf16.msra.mxu0 %v1279
          %1484 = vmatprep.subr.bf16.mxu0 %v1282
          %1485 = vmatpush1.bf16.msra.mxu0 %v1281
          %1486 = vmatprep.subr.bf16.mxu0 %v1284
          %1487 = vmatpush1.bf16.msra.mxu0 %v1283
          %1488 = vmatprep.mubr.bf16.mxu0 %v924
          %1489 = vmatmul.mubr.bf16.gmra.mrb[0].mxu0 %v923
          %v1490 = vpop.f32.mrb[0].mxu0
          %v1491 = vadd.f32 %v1448, %v1490
          %v1492 = vpop.f32.mrb[0].mxu0
          %v1493 = vadd.f32 %v1450, %v1492
          %v1494 = vpop.f32.mrb[0].mxu0
          %v1495 = vadd.f32 %v1452, %v1494
          %v1496 = vpop.f32.mrb[0].mxu0
          %v1497 = vadd.f32 %v1454, %v1496
          %1498 = vdwg.mxu0
          %1499 = vmatprep.subr.bf16.mxu0 %v1286
          %1500 = vmatpush1.bf16.msra.mxu0 %v1285
          %1501 = vmatprep.subr.bf16.mxu0 %v1288
          %1502 = vmatpush1.bf16.msra.mxu0 %v1287
          %1503 = vmatprep.subr.bf16.mxu0 %v1290
          %1504 = vmatpush1.bf16.msra.mxu0 %v1289
          %1505 = vmatprep.subr.bf16.mxu0 %v1292
          %1506 = vmatpush1.bf16.msra.mxu0 %v1291
          %1507 = vmatprep.subr.bf16.mxu0 %v1294
          %1508 = vmatpush1.bf16.msra.mxu0 %v1293
          %1509 = vmatprep.subr.bf16.mxu0 %v1296
          %1510 = vmatpush1.bf16.msra.mxu0 %v1295
          %1511 = vmatprep.subr.bf16.mxu0 %v1298
          %1512 = vmatpush1.bf16.msra.mxu0 %v1297
          %1513 = vmatprep.subr.bf16.mxu0 %v1300
          %1514 = vmatpush1.bf16.msra.mxu0 %v1299
          %1515 = vmatprep.subr.bf16.mxu0 %v1302
          %1516 = vmatpush1.bf16.msra.mxu0 %v1301
          %1517 = vmatprep.subr.bf16.mxu0 %v1304
          %1518 = vmatpush1.bf16.msra.mxu0 %v1303
          %1519 = vmatprep.subr.bf16.mxu0 %v1306
          %1520 = vmatpush1.bf16.msra.mxu0 %v1305
          %1521 = vmatprep.subr.bf16.mxu0 %v1308
          %1522 = vmatpush1.bf16.msra.mxu0 %v1307
          %1523 = vmatprep.subr.bf16.mxu0 %v1310
          %1524 = vmatpush1.bf16.msra.mxu0 %v1309
          %1525 = vmatprep.subr.bf16.mxu0 %v1312
          %1526 = vmatpush1.bf16.msra.mxu0 %v1311
          %1527 = vmatprep.subr.bf16.mxu0 %v1314
          %1528 = vmatpush1.bf16.msra.mxu0 %v1313
          %1529 = vmatprep.subr.bf16.mxu0 %v1316
          %1530 = vmatpush1.bf16.msra.mxu0 %v1315
          %1531 = vmatprep.mubr.bf16.mxu0 %v926
          %1532 = vmatmul.mubr.bf16.gmra.mrb[0].mxu0 %v925
          %v1533 = vpop.f32.mrb[0].mxu0
          %v1534 = vadd.f32 %v1491, %v1533
          %v1535 = vpop.f32.mrb[0].mxu0
          %v1536 = vadd.f32 %v1493, %v1535
          %v1537 = vpop.f32.mrb[0].mxu0
          %v1538 = vadd.f32 %v1495, %v1537
          %v1539 = vpop.f32.mrb[0].mxu0
          %v1540 = vadd.f32 %v1497, %v1539
          %1541 = vdwg.mxu0
          %1542 = vst [vmem:[#allocation2] sm:$0xff] %v1534
          %1543 = vst [vmem:[#allocation2 + $0x8] sm:$0xff] %v1536
          %1544 = vst [vmem:[#allocation2 + $0x10] sm:$0xff] %v1538
          %1545 = vst [vmem:[#allocation2 + $0x18] sm:$0xff] %v1540
        $region104: #{vit_image_encoder.1} parent=87 // pred_fallthru
          _
        %v1546 = vld [vmem:[#allocation2] sm:$0xff]
        %v1547 = vld [vmem:[#allocation2 + $0x8] sm:$0xff]
        %v1548 = vld [vmem:[#allocation2 + $0x10] sm:$0xff]
        %v1549 = vld [vmem:[#allocation2 + $0x18] sm:$0xff]
        %v1550 = vld [vmem:[%s754] sm:$0x3]
        %v1551 = vld [vmem:[%s758] sm:$0x3]
        %v1552 = vadd.f32 %v1546, %v1547
        %1553 = vadd.xlane.f32.xlu0 %v1552
        %v1554 = vpop.xlane.xlu0 %1553
        %v1555 = vadd.f32 %v1548, %v1549
        %1556 = vadd.xlane.f32.xlu0 %v1555
        %v1557 = vpop.xlane.xlu0 %1556
        %v1558 = vrcp.pop 256.0
        %v1559 = vmul.f32 %v1554, %v1558
        %v1560 = vmul.f32 %v1557, %v1558
        %v1561 = vsub.f32 %v1546, %v1559
        %v1562 = vsub.f32 %v1547, %v1559
        %v1563 = vsub.f32 %v1548, %v1560
        %v1564 = vsub.f32 %v1549, %v1560
        %v1565 = vmul.f32 %v1561, %v1561
        %v1566 = vmul.f32 %v1562, %v1562
        %v1567 = vmul.f32 %v1563, %v1563
        %v1568 = vmul.f32 %v1564, %v1564
        %v1569 = vadd.f32 %v1565, %v1566
        %1570 = vadd.xlane.f32.xlu0 %v1569
        %v1571 = vpop.xlane.xlu0 %1570
        %v1572 = vadd.f32 %v1567, %v1568
        %1573 = vadd.xlane.f32.xlu0 %v1572
        %v1574 = vpop.xlane.xlu0 %1573
        %v1575 = vmul.f32 %v1571, %v1558
        %v1576 = vmul.f32 %v1574, %v1558
        %v1577 = vadd.f32 %v1575, 1e-06
        %v1578 = vadd.f32 %v1576, 1e-06
        %v1579 = vrsqrt.pop %v1577
        %v1580 = vrsqrt.pop %v1578
        %v1581 = vmul.f32 %v1561, %v1579
        %v1582 = vmul.f32 %v1562, %v1579
        %v1583 = vmul.f32 %v1563, %v1580
        %v1584 = vmul.f32 %v1564, %v1580
        %v1586 = vlaneseq
        %v1587 = vshrl.u32 %v1586, 7
        %v1588 = vsub.s32 0, %v1587
        %v1589 = vrot.slane %v1550, %v1588
        %v1590 = vlaneseq
        %v1591 = vshrl.u32 %v1590, 7
        %v1592 = vsub.s32 1, %v1591
        %v1593 = vrot.slane %v1550, %v1592
        %v1596 = vmul.f32 %v1581, %v1589
        %v1597 = vmul.f32 %v1582, %v1593
        %v1598 = vmul.f32 %v1583, %v1589
        %v1599 = vmul.f32 %v1584, %v1593
        %v1601 = vlaneseq
        %v1602 = vshrl.u32 %v1601, 7
        %v1603 = vsub.s32 0, %v1602
        %v1604 = vrot.slane %v1551, %v1603
        %v1605 = vlaneseq
        %v1606 = vshrl.u32 %v1605, 7
        %v1607 = vsub.s32 1, %v1606
        %v1608 = vrot.slane %v1551, %v1607
        %v1611 = vadd.f32 %v1596, %v1604
        %v1612 = vadd.f32 %v1597, %v1608
        %v1613 = vadd.f32 %v1598, %v1604
        %v1614 = vadd.f32 %v1599, %v1608
        %v1615 = vpack.c.bf16 %v1613, %v1611
        %v1616 = vpack.c.bf16 %v1614, %v1612
        %v1617 = vld [vmem:[%s640] sm:$0xff]
        %v1618 = vld [vmem:[%s640 + $0x8] sm:$0xff]
        %v1619 = vld [vmem:[%s640 + $0x10] sm:$0xff]
        %v1620 = vld [vmem:[%s640 + $0x18] sm:$0xff]
        %v1621 = vld [vmem:[%s640 + $0x20] sm:$0xff]
        %v1622 = vld [vmem:[%s640 + $0x28] sm:$0xff]
        %v1623 = vld [vmem:[%s640 + $0x30] sm:$0xff]
        %v1624 = vld [vmem:[%s640 + $0x38] sm:$0xff]
        %v1625 = vld [vmem:[%s640 + $0x40] sm:$0xff]
        %v1626 = vld [vmem:[%s640 + $0x48] sm:$0xff]
        %v1627 = vld [vmem:[%s640 + $0x50] sm:$0xff]
        %v1628 = vld [vmem:[%s640 + $0x58] sm:$0xff]
        %v1629 = vld [vmem:[%s640 + $0x60] sm:$0xff]
        %v1630 = vld [vmem:[%s640 + $0x68] sm:$0xff]
        %v1631 = vld [vmem:[%s640 + $0x70] sm:$0xff]
        %v1632 = vld [vmem:[%s640 + $0x78] sm:$0xff]
        %v1633 = vld [vmem:[%s640 + $0x80] sm:$0xff]
        %v1634 = vld [vmem:[%s640 + $0x88] sm:$0xff]
        %v1635 = vld [vmem:[%s640 + $0x90] sm:$0xff]
        %v1636 = vld [vmem:[%s640 + $0x98] sm:$0xff]
        %v1637 = vld [vmem:[%s640 + $0xa0] sm:$0xff]
        %v1638 = vld [vmem:[%s640 + $0xa8] sm:$0xff]
        %v1639 = vld [vmem:[%s640 + $0xb0] sm:$0xff]
        %v1640 = vld [vmem:[%s640 + $0xb8] sm:$0xff]
        %v1641 = vld [vmem:[%s640 + $0xc0] sm:$0xff]
        %v1642 = vld [vmem:[%s640 + $0xc8] sm:$0xff]
        %v1643 = vld [vmem:[%s640 + $0xd0] sm:$0xff]
        %v1644 = vld [vmem:[%s640 + $0xd8] sm:$0xff]
        %v1645 = vld [vmem:[%s640 + $0xe0] sm:$0xff]
        %v1646 = vld [vmem:[%s640 + $0xe8] sm:$0xff]
        %v1647 = vld [vmem:[%s640 + $0xf0] sm:$0xff]
        %v1648 = vld [vmem:[%s640 + $0xf8] sm:$0xff]
        %v1649 = vld [vmem:[%s640 + $0x100] sm:$0xff]
        %v1650 = vld [vmem:[%s640 + $0x108] sm:$0xff]
        %v1651 = vld [vmem:[%s640 + $0x110] sm:$0xff]
        %v1652 = vld [vmem:[%s640 + $0x118] sm:$0xff]
        %v1653 = vld [vmem:[%s640 + $0x120] sm:$0xff]
        %v1654 = vld [vmem:[%s640 + $0x128] sm:$0xff]
        %v1655 = vld [vmem:[%s640 + $0x130] sm:$0xff]
        %v1656 = vld [vmem:[%s640 + $0x138] sm:$0xff]
        %v1657 = vld [vmem:[%s640 + $0x140] sm:$0xff]
        %v1658 = vld [vmem:[%s640 + $0x148] sm:$0xff]
        %v1659 = vld [vmem:[%s640 + $0x150] sm:$0xff]
        %v1660 = vld [vmem:[%s640 + $0x158] sm:$0xff]
        %v1661 = vld [vmem:[%s640 + $0x160] sm:$0xff]
        %v1662 = vld [vmem:[%s640 + $0x168] sm:$0xff]
        %v1663 = vld [vmem:[%s640 + $0x170] sm:$0xff]
        %v1664 = vld [vmem:[%s640 + $0x178] sm:$0xff]
        %v1665 = vld [vmem:[%s640 + $0x180] sm:$0xff]
        %v1666 = vld [vmem:[%s640 + $0x188] sm:$0xff]
        %v1667 = vld [vmem:[%s640 + $0x190] sm:$0xff]
        %v1668 = vld [vmem:[%s640 + $0x198] sm:$0xff]
        %v1669 = vld [vmem:[%s640 + $0x1a0] sm:$0xff]
        %v1670 = vld [vmem:[%s640 + $0x1a8] sm:$0xff]
        %v1671 = vld [vmem:[%s640 + $0x1b0] sm:$0xff]
        %v1672 = vld [vmem:[%s640 + $0x1b8] sm:$0xff]
        %v1673 = vld [vmem:[%s640 + $0x1c0] sm:$0xff]
        %v1674 = vld [vmem:[%s640 + $0x1c8] sm:$0xff]
        %v1675 = vld [vmem:[%s640 + $0x1d0] sm:$0xff]
        %v1676 = vld [vmem:[%s640 + $0x1d8] sm:$0xff]
        %v1677 = vld [vmem:[%s640 + $0x1e0] sm:$0xff]
        %v1678 = vld [vmem:[%s640 + $0x1e8] sm:$0xff]
        %v1679 = vld [vmem:[%s640 + $0x1f0] sm:$0xff]
        %v1680 = vld [vmem:[%s640 + $0x1f8] sm:$0xff]
        %v1681 = vld [vmem:[%s640 + $0x200] sm:$0xff]
        %v1682 = vld [vmem:[%s640 + $0x208] sm:$0xff]
        %v1683 = vld [vmem:[%s640 + $0x210] sm:$0xff]
        %v1684 = vld [vmem:[%s640 + $0x218] sm:$0xff]
        %v1685 = vld [vmem:[%s640 + $0x220] sm:$0xff]
        %v1686 = vld [vmem:[%s640 + $0x228] sm:$0xff]
        %v1687 = vld [vmem:[%s640 + $0x230] sm:$0xff]
        %v1688 = vld [vmem:[%s640 + $0x238] sm:$0xff]
        %v1689 = vld [vmem:[%s640 + $0x240] sm:$0xff]
        %v1690 = vld [vmem:[%s640 + $0x248] sm:$0xff]
        %v1691 = vld [vmem:[%s640 + $0x250] sm:$0xff]
        %v1692 = vld [vmem:[%s640 + $0x258] sm:$0xff]
        %v1693 = vld [vmem:[%s640 + $0x260] sm:$0xff]
        %v1694 = vld [vmem:[%s640 + $0x268] sm:$0xff]
        %v1695 = vld [vmem:[%s640 + $0x270] sm:$0xff]
        %v1696 = vld [vmem:[%s640 + $0x278] sm:$0xff]
        %v1697 = vld [vmem:[%s640 + $0x280] sm:$0xff]
        %v1698 = vld [vmem:[%s640 + $0x288] sm:$0xff]
        %v1699 = vld [vmem:[%s640 + $0x290] sm:$0xff]
        %v1700 = vld [vmem:[%s640 + $0x298] sm:$0xff]
        %v1701 = vld [vmem:[%s640 + $0x2a0] sm:$0xff]
        %v1702 = vld [vmem:[%s640 + $0x2a8] sm:$0xff]
        %v1703 = vld [vmem:[%s640 + $0x2b0] sm:$0xff]
        %v1704 = vld [vmem:[%s640 + $0x2b8] sm:$0xff]
        %v1705 = vld [vmem:[%s640 + $0x2c0] sm:$0xff]
        %v1706 = vld [vmem:[%s640 + $0x2c8] sm:$0xff]
        %v1707 = vld [vmem:[%s640 + $0x2d0] sm:$0xff]
        %v1708 = vld [vmem:[%s640 + $0x2d8] sm:$0xff]
        %v1709 = vld [vmem:[%s640 + $0x2e0] sm:$0xff]
        %v1710 = vld [vmem:[%s640 + $0x2e8] sm:$0xff]
        %v1711 = vld [vmem:[%s640 + $0x2f0] sm:$0xff]
        %v1712 = vld [vmem:[%s640 + $0x2f8] sm:$0xff]
        %v1713 = vld [vmem:[%s762] sm:$0x3f]
        %v1715 = vlaneseq
        %v1716 = vshrl.u32 %v1715, 7
        %v1717 = vsub.s32 0, %v1716
        %v1718 = vrot.slane %v1713, %v1717
        %v1719 = vlaneseq
        %v1720 = vshrl.u32 %v1719, 7
        %v1721 = vsub.s32 1, %v1720
        %v1722 = vrot.slane %v1713, %v1721
        %v1723 = vlaneseq
        %v1724 = vshrl.u32 %v1723, 7
        %v1725 = vsub.s32 2, %v1724
        %v1726 = vrot.slane %v1713, %v1725
        %v1727 = vlaneseq
        %v1728 = vshrl.u32 %v1727, 7
        %v1729 = vsub.s32 3, %v1728
        %v1730 = vrot.slane %v1713, %v1729
        %v1731 = vlaneseq
        %v1732 = vshrl.u32 %v1731, 7
        %v1733 = vsub.s32 4, %v1732
        %v1734 = vrot.slane %v1713, %v1733
        %v1735 = vlaneseq
        %v1736 = vshrl.u32 %v1735, 7
        %v1737 = vsub.s32 5, %v1736
        %v1738 = vrot.slane %v1713, %v1737
        %v1841 = vunpack.c.l.b16 %v1617
        %v1842 = vunpack.c.h.b16 %v1617
        %v1843 = vunpack.c.l.b16 %v1618
        %v1844 = vunpack.c.h.b16 %v1618
        %v1845 = vunpack.c.l.b16 %v1619
        %v1846 = vunpack.c.h.b16 %v1619
        %v1847 = vunpack.c.l.b16 %v1620
        %v1848 = vunpack.c.h.b16 %v1620
        %v1849 = vunpack.c.l.b16 %v1621
        %v1850 = vunpack.c.h.b16 %v1621
        %v1851 = vunpack.c.l.b16 %v1622
        %v1852 = vunpack.c.h.b16 %v1622
        %v1853 = vunpack.c.l.b16 %v1623
        %v1854 = vunpack.c.h.b16 %v1623
        %v1855 = vunpack.c.l.b16 %v1624
        %v1856 = vunpack.c.h.b16 %v1624
        %v1857 = vunpack.c.l.b16 %v1625
        %v1858 = vunpack.c.h.b16 %v1625
        %v1859 = vunpack.c.l.b16 %v1626
        %v1860 = vunpack.c.h.b16 %v1626
        %v1861 = vunpack.c.l.b16 %v1627
        %v1862 = vunpack.c.h.b16 %v1627
        %v1863 = vunpack.c.l.b16 %v1628
        %v1864 = vunpack.c.h.b16 %v1628
        %v1865 = vunpack.c.l.b16 %v1629
        %v1866 = vunpack.c.h.b16 %v1629
        %v1867 = vunpack.c.l.b16 %v1630
        %v1868 = vunpack.c.h.b16 %v1630
        %v1869 = vunpack.c.l.b16 %v1631
        %v1870 = vunpack.c.h.b16 %v1631
        %v1871 = vunpack.c.l.b16 %v1632
        %v1872 = vunpack.c.h.b16 %v1632
        %v1873 = vunpack.c.l.b16 %v1633
        %v1874 = vunpack.c.h.b16 %v1633
        %v1875 = vunpack.c.l.b16 %v1634
        %v1876 = vunpack.c.h.b16 %v1634
        %v1877 = vunpack.c.l.b16 %v1635
        %v1878 = vunpack.c.h.b16 %v1635
        %v1879 = vunpack.c.l.b16 %v1636
        %v1880 = vunpack.c.h.b16 %v1636
        %v1881 = vunpack.c.l.b16 %v1637
        %v1882 = vunpack.c.h.b16 %v1637
        %v1883 = vunpack.c.l.b16 %v1638
        %v1884 = vunpack.c.h.b16 %v1638
        %v1885 = vunpack.c.l.b16 %v1639
        %v1886 = vunpack.c.h.b16 %v1639
        %v1887 = vunpack.c.l.b16 %v1640
        %v1888 = vunpack.c.h.b16 %v1640
        %v1889 = vunpack.c.l.b16 %v1641
        %v1890 = vunpack.c.h.b16 %v1641
        %v1891 = vunpack.c.l.b16 %v1642
        %v1892 = vunpack.c.h.b16 %v1642
        %v1893 = vunpack.c.l.b16 %v1643
        %v1894 = vunpack.c.h.b16 %v1643
        %v1895 = vunpack.c.l.b16 %v1644
        %v1896 = vunpack.c.h.b16 %v1644
        %v1897 = vunpack.c.l.b16 %v1645
        %v1898 = vunpack.c.h.b16 %v1645
        %v1899 = vunpack.c.l.b16 %v1646
        %v1900 = vunpack.c.h.b16 %v1646
        %v1901 = vunpack.c.l.b16 %v1647
        %v1902 = vunpack.c.h.b16 %v1647
        %v1903 = vunpack.c.l.b16 %v1648
        %v1904 = vunpack.c.h.b16 %v1648
        %v1905 = vunpack.c.l.b16 %v1649
        %v1906 = vunpack.c.h.b16 %v1649
        %v1907 = vunpack.c.l.b16 %v1650
        %v1908 = vunpack.c.h.b16 %v1650
        %v1909 = vunpack.c.l.b16 %v1651
        %v1910 = vunpack.c.h.b16 %v1651
        %v1911 = vunpack.c.l.b16 %v1652
        %v1912 = vunpack.c.h.b16 %v1652
        %v1913 = vunpack.c.l.b16 %v1653
        %v1914 = vunpack.c.h.b16 %v1653
        %v1915 = vunpack.c.l.b16 %v1654
        %v1916 = vunpack.c.h.b16 %v1654
        %v1917 = vunpack.c.l.b16 %v1655
        %v1918 = vunpack.c.h.b16 %v1655
        %v1919 = vunpack.c.l.b16 %v1656
        %v1920 = vunpack.c.h.b16 %v1656
        %v1921 = vunpack.c.l.b16 %v1657
        %v1922 = vunpack.c.h.b16 %v1657
        %v1923 = vunpack.c.l.b16 %v1658
        %v1924 = vunpack.c.h.b16 %v1658
        %v1925 = vunpack.c.l.b16 %v1659
        %v1926 = vunpack.c.h.b16 %v1659
        %v1927 = vunpack.c.l.b16 %v1660
        %v1928 = vunpack.c.h.b16 %v1660
        %v1929 = vunpack.c.l.b16 %v1661
        %v1930 = vunpack.c.h.b16 %v1661
        %v1931 = vunpack.c.l.b16 %v1662
        %v1932 = vunpack.c.h.b16 %v1662
        %v1933 = vunpack.c.l.b16 %v1663
        %v1934 = vunpack.c.h.b16 %v1663
        %v1935 = vunpack.c.l.b16 %v1664
        %v1936 = vunpack.c.h.b16 %v1664
        %v1937 = vunpack.c.l.b16 %v1665
        %v1938 = vunpack.c.h.b16 %v1665
        %v1939 = vunpack.c.l.b16 %v1666
        %v1940 = vunpack.c.h.b16 %v1666
        %v1941 = vunpack.c.l.b16 %v1667
        %v1942 = vunpack.c.h.b16 %v1667
        %v1943 = vunpack.c.l.b16 %v1668
        %v1944 = vunpack.c.h.b16 %v1668
        %v1945 = vunpack.c.l.b16 %v1669
        %v1946 = vunpack.c.h.b16 %v1669
        %v1947 = vunpack.c.l.b16 %v1670
        %v1948 = vunpack.c.h.b16 %v1670
        %v1949 = vunpack.c.l.b16 %v1671
        %v1950 = vunpack.c.h.b16 %v1671
        %v1951 = vunpack.c.l.b16 %v1672
        %v1952 = vunpack.c.h.b16 %v1672
        %v1953 = vunpack.c.l.b16 %v1673
        %v1954 = vunpack.c.h.b16 %v1673
        %v1955 = vunpack.c.l.b16 %v1674
        %v1956 = vunpack.c.h.b16 %v1674
        %v1957 = vunpack.c.l.b16 %v1675
        %v1958 = vunpack.c.h.b16 %v1675
        %v1959 = vunpack.c.l.b16 %v1676
        %v1960 = vunpack.c.h.b16 %v1676
        %v1961 = vunpack.c.l.b16 %v1677
        %v1962 = vunpack.c.h.b16 %v1677
        %v1963 = vunpack.c.l.b16 %v1678
        %v1964 = vunpack.c.h.b16 %v1678
        %v1965 = vunpack.c.l.b16 %v1679
        %v1966 = vunpack.c.h.b16 %v1679
        %v1967 = vunpack.c.l.b16 %v1680
        %v1968 = vunpack.c.h.b16 %v1680
        %v1969 = vunpack.c.l.b16 %v1681
        %v1970 = vunpack.c.h.b16 %v1681
        %v1971 = vunpack.c.l.b16 %v1682
        %v1972 = vunpack.c.h.b16 %v1682
        %v1973 = vunpack.c.l.b16 %v1683
        %v1974 = vunpack.c.h.b16 %v1683
        %v1975 = vunpack.c.l.b16 %v1684
        %v1976 = vunpack.c.h.b16 %v1684
        %v1977 = vunpack.c.l.b16 %v1685
        %v1978 = vunpack.c.h.b16 %v1685
        %v1979 = vunpack.c.l.b16 %v1686
        %v1980 = vunpack.c.h.b16 %v1686
        %v1981 = vunpack.c.l.b16 %v1687
        %v1982 = vunpack.c.h.b16 %v1687
        %v1983 = vunpack.c.l.b16 %v1688
        %v1984 = vunpack.c.h.b16 %v1688
        %v1985 = vunpack.c.l.b16 %v1689
        %v1986 = vunpack.c.h.b16 %v1689
        %v1987 = vunpack.c.l.b16 %v1690
        %v1988 = vunpack.c.h.b16 %v1690
        %v1989 = vunpack.c.l.b16 %v1691
        %v1990 = vunpack.c.h.b16 %v1691
        %v1991 = vunpack.c.l.b16 %v1692
        %v1992 = vunpack.c.h.b16 %v1692
        %v1993 = vunpack.c.l.b16 %v1693
        %v1994 = vunpack.c.h.b16 %v1693
        %v1995 = vunpack.c.l.b16 %v1694
        %v1996 = vunpack.c.h.b16 %v1694
        %v1997 = vunpack.c.l.b16 %v1695
        %v1998 = vunpack.c.h.b16 %v1695
        %v1999 = vunpack.c.l.b16 %v1696
        %v2000 = vunpack.c.h.b16 %v1696
        %v2001 = vunpack.c.l.b16 %v1697
        %v2002 = vunpack.c.h.b16 %v1697
        %v2003 = vunpack.c.l.b16 %v1698
        %v2004 = vunpack.c.h.b16 %v1698
        %v2005 = vunpack.c.l.b16 %v1699
        %v2006 = vunpack.c.h.b16 %v1699
        %v2007 = vunpack.c.l.b16 %v1700
        %v2008 = vunpack.c.h.b16 %v1700
        %v2009 = vunpack.c.l.b16 %v1701
        %v2010 = vunpack.c.h.b16 %v1701
        %v2011 = vunpack.c.l.b16 %v1702
        %v2012 = vunpack.c.h.b16 %v1702
        %v2013 = vunpack.c.l.b16 %v1703
        %v2014 = vunpack.c.h.b16 %v1703
        %v2015 = vunpack.c.l.b16 %v1704
        %v2016 = vunpack.c.h.b16 %v1704
        %v2017 = vunpack.c.l.b16 %v1705
        %v2018 = vunpack.c.h.b16 %v1705
        %v2019 = vunpack.c.l.b16 %v1706
        %v2020 = vunpack.c.h.b16 %v1706
        %v2021 = vunpack.c.l.b16 %v1707
        %v2022 = vunpack.c.h.b16 %v1707
        %v2023 = vunpack.c.l.b16 %v1708
        %v2024 = vunpack.c.h.b16 %v1708
        %v2025 = vunpack.c.l.b16 %v1709
        %v2026 = vunpack.c.h.b16 %v1709
        %v2027 = vunpack.c.l.b16 %v1710
        %v2028 = vunpack.c.h.b16 %v1710
        %v2029 = vunpack.c.l.b16 %v1711
        %v2030 = vunpack.c.h.b16 %v1711
        %v2031 = vunpack.c.l.b16 %v1712
        %v2032 = vunpack.c.h.b16 %v1712
        %v2033 = vpack.c.b16 %v1847, %v1841
        %v2034 = vpack.c.b16 %v1848, %v1842
        %v2035 = vpack.c.b16 %v1849, %v1843
        %v2036 = vpack.c.b16 %v1850, %v1844
        %v2037 = vpack.c.b16 %v1851, %v1845
        %v2038 = vpack.c.b16 %v1852, %v1846
        %v2039 = vpack.c.b16 %v1859, %v1853
        %v2040 = vpack.c.b16 %v1860, %v1854
        %v2041 = vpack.c.b16 %v1861, %v1855
        %v2042 = vpack.c.b16 %v1862, %v1856
        %v2043 = vpack.c.b16 %v1863, %v1857
        %v2044 = vpack.c.b16 %v1864, %v1858
        %v2045 = vpack.c.b16 %v1871, %v1865
        %v2046 = vpack.c.b16 %v1872, %v1866
        %v2047 = vpack.c.b16 %v1873, %v1867
        %v2048 = vpack.c.b16 %v1874, %v1868
        %v2049 = vpack.c.b16 %v1875, %v1869
        %v2050 = vpack.c.b16 %v1876, %v1870
        %v2051 = vpack.c.b16 %v1883, %v1877
        %v2052 = vpack.c.b16 %v1884, %v1878
        %v2053 = vpack.c.b16 %v1885, %v1879
        %v2054 = vpack.c.b16 %v1886, %v1880
        %v2055 = vpack.c.b16 %v1887, %v1881
        %v2056 = vpack.c.b16 %v1888, %v1882
        %v2057 = vpack.c.b16 %v1895, %v1889
        %v2058 = vpack.c.b16 %v1896, %v1890
        %v2059 = vpack.c.b16 %v1897, %v1891
        %v2060 = vpack.c.b16 %v1898, %v1892
        %v2061 = vpack.c.b16 %v1899, %v1893
        %v2062 = vpack.c.b16 %v1900, %v1894
        %v2063 = vpack.c.b16 %v1907, %v1901
        %v2064 = vpack.c.b16 %v1908, %v1902
        %v2065 = vpack.c.b16 %v1909, %v1903
        %v2066 = vpack.c.b16 %v1910, %v1904
        %v2067 = vpack.c.b16 %v1911, %v1905
        %v2068 = vpack.c.b16 %v1912, %v1906
        %v2069 = vpack.c.b16 %v1919, %v1913
        %v2070 = vpack.c.b16 %v1920, %v1914
        %v2071 = vpack.c.b16 %v1921, %v1915
        %v2072 = vpack.c.b16 %v1922, %v1916
        %v2073 = vpack.c.b16 %v1923, %v1917
        %v2074 = vpack.c.b16 %v1924, %v1918
        %v2075 = vpack.c.b16 %v1931, %v1925
        %v2076 = vpack.c.b16 %v1932, %v1926
        %v2077 = vpack.c.b16 %v1933, %v1927
        %v2078 = vpack.c.b16 %v1934, %v1928
        %v2079 = vpack.c.b16 %v1935, %v1929
        %v2080 = vpack.c.b16 %v1936, %v1930
        %v2081 = vpack.c.b16 %v1943, %v1937
        %v2082 = vpack.c.b16 %v1944, %v1938
        %v2083 = vpack.c.b16 %v1945, %v1939
        %v2084 = vpack.c.b16 %v1946, %v1940
        %v2085 = vpack.c.b16 %v1947, %v1941
        %v2086 = vpack.c.b16 %v1948, %v1942
        %v2087 = vpack.c.b16 %v1955, %v1949
        %v2088 = vpack.c.b16 %v1956, %v1950
        %v2089 = vpack.c.b16 %v1957, %v1951
        %v2090 = vpack.c.b16 %v1958, %v1952
        %v2091 = vpack.c.b16 %v1959, %v1953
        %v2092 = vpack.c.b16 %v1960, %v1954
        %v2093 = vpack.c.b16 %v1967, %v1961
        %v2094 = vpack.c.b16 %v1968, %v1962
        %v2095 = vpack.c.b16 %v1969, %v1963
        %v2096 = vpack.c.b16 %v1970, %v1964
        %v2097 = vpack.c.b16 %v1971, %v1965
        %v2098 = vpack.c.b16 %v1972, %v1966
        %v2099 = vpack.c.b16 %v1979, %v1973
        %v2100 = vpack.c.b16 %v1980, %v1974
        %v2101 = vpack.c.b16 %v1981, %v1975
        %v2102 = vpack.c.b16 %v1982, %v1976
        %v2103 = vpack.c.b16 %v1983, %v1977
        %v2104 = vpack.c.b16 %v1984, %v1978
        %v2105 = vpack.c.b16 %v1991, %v1985
        %v2106 = vpack.c.b16 %v1992, %v1986
        %v2107 = vpack.c.b16 %v1993, %v1987
        %v2108 = vpack.c.b16 %v1994, %v1988
        %v2109 = vpack.c.b16 %v1995, %v1989
        %v2110 = vpack.c.b16 %v1996, %v1990
        %v2111 = vpack.c.b16 %v2003, %v1997
        %v2112 = vpack.c.b16 %v2004, %v1998
        %v2113 = vpack.c.b16 %v2005, %v1999
        %v2114 = vpack.c.b16 %v2006, %v2000
        %v2115 = vpack.c.b16 %v2007, %v2001
        %v2116 = vpack.c.b16 %v2008, %v2002
        %v2117 = vpack.c.b16 %v2015, %v2009
        %v2118 = vpack.c.b16 %v2016, %v2010
        %v2119 = vpack.c.b16 %v2017, %v2011
        %v2120 = vpack.c.b16 %v2018, %v2012
        %v2121 = vpack.c.b16 %v2019, %v2013
        %v2122 = vpack.c.b16 %v2020, %v2014
        %v2123 = vpack.c.b16 %v2027, %v2021
        %v2124 = vpack.c.b16 %v2028, %v2022
        %v2125 = vpack.c.b16 %v2029, %v2023
        %v2126 = vpack.c.b16 %v2030, %v2024
        %v2127 = vpack.c.b16 %v2031, %v2025
        %v2128 = vpack.c.b16 %v2032, %v2026
        %2225 = vmatprep.subr.bf16.mxu0 %v2034
        %2226 = vmatpush1.bf16.msra.mxu0 %v2033
        %2227 = vmatprep.subr.bf16.mxu0 %v2040
        %2228 = vmatpush1.bf16.msra.mxu0 %v2039
        %2229 = vmatprep.subr.bf16.mxu0 %v2046
        %2230 = vmatpush1.bf16.msra.mxu0 %v2045
        %2231 = vmatprep.subr.bf16.mxu0 %v2052
        %2232 = vmatpush1.bf16.msra.mxu0 %v2051
        %2233 = vmatprep.subr.bf16.mxu0 %v2058
        %2234 = vmatpush1.bf16.msra.mxu0 %v2057
        %2235 = vmatprep.subr.bf16.mxu0 %v2064
        %2236 = vmatpush1.bf16.msra.mxu0 %v2063
        %2237 = vmatprep.subr.bf16.mxu0 %v2070
        %2238 = vmatpush1.bf16.msra.mxu0 %v2069
        %2239 = vmatprep.subr.bf16.mxu0 %v2076
        %2240 = vmatpush1.bf16.msra.mxu0 %v2075
        %2241 = vmatprep.subr.bf16.mxu0 %v2082
        %2242 = vmatpush1.bf16.msra.mxu0 %v2081
        %2243 = vmatprep.subr.bf16.mxu0 %v2088
        %2244 = vmatpush1.bf16.msra.mxu0 %v2087
        %2245 = vmatprep.subr.bf16.mxu0 %v2094
        %2246 = vmatpush1.bf16.msra.mxu0 %v2093
        %2247 = vmatprep.subr.bf16.mxu0 %v2100
        %2248 = vmatpush1.bf16.msra.mxu0 %v2099
        %2249 = vmatprep.subr.bf16.mxu0 %v2106
        %2250 = vmatpush1.bf16.msra.mxu0 %v2105
        %2251 = vmatprep.subr.bf16.mxu0 %v2112
        %2252 = vmatpush1.bf16.msra.mxu0 %v2111
        %2253 = vmatprep.subr.bf16.mxu0 %v2118
        %2254 = vmatpush1.bf16.msra.mxu0 %v2117
        %2255 = vmatprep.subr.bf16.mxu0 %v2124
        %2256 = vmatpush1.bf16.msra.mxu0 %v2123
        %2257 = vmatprep.mubr.bf16.mxu0 %v1616
        %2258 = vmatmul.mubr.bf16.gmra.mrb[0].mxu0 %v1615
        %v2259 = vpop.f32.mrb[0].mxu0
        %v2260 = vadd.f32 %v1718, %v2259
        %v2261 = vpop.f32.mrb[0].mxu0
        %v2262 = vadd.f32 %v1722, %v2261
        %v2263 = vpop.f32.mrb[0].mxu0
        %v2264 = vadd.f32 %v1718, %v2263
        %v2265 = vpop.f32.mrb[0].mxu0
        %v2266 = vadd.f32 %v1722, %v2265
        %2267 = vdwg.mxu0
        %2268 = vmatprep.subr.bf16.mxu0 %v2036
        %2269 = vmatpush1.bf16.msra.mxu0 %v2035
        %2270 = vmatprep.subr.bf16.mxu0 %v2042
        %2271 = vmatpush1.bf16.msra.mxu0 %v2041
        %2272 = vmatprep.subr.bf16.mxu0 %v2048
        %2273 = vmatpush1.bf16.msra.mxu0 %v2047
        %2274 = vmatprep.subr.bf16.mxu0 %v2054
        %2275 = vmatpush1.bf16.msra.mxu0 %v2053
        %2276 = vmatprep.subr.bf16.mxu0 %v2060
        %2277 = vmatpush1.bf16.msra.mxu0 %v2059
        %2278 = vmatprep.subr.bf16.mxu0 %v2066
        %2279 = vmatpush1.bf16.msra.mxu0 %v2065
        %2280 = vmatprep.subr.bf16.mxu0 %v2072
        %2281 = vmatpush1.bf16.msra.mxu0 %v2071
        %2282 = vmatprep.subr.bf16.mxu0 %v2078
        %2283 = vmatpush1.bf16.msra.mxu0 %v2077
        %2284 = vmatprep.subr.bf16.mxu0 %v2084
        %2285 = vmatpush1.bf16.msra.mxu0 %v2083
        %2286 = vmatprep.subr.bf16.mxu0 %v2090
        %2287 = vmatpush1.bf16.msra.mxu0 %v2089
        %2288 = vmatprep.subr.bf16.mxu0 %v2096
        %2289 = vmatpush1.bf16.msra.mxu0 %v2095
        %2290 = vmatprep.subr.bf16.mxu0 %v2102
        %2291 = vmatpush1.bf16.msra.mxu0 %v2101
        %2292 = vmatprep.subr.bf16.mxu0 %v2108
        %2293 = vmatpush1.bf16.msra.mxu0 %v2107
        %2294 = vmatprep.subr.bf16.mxu0 %v2114
        %2295 = vmatpush1.bf16.msra.mxu0 %v2113
        %2296 = vmatprep.subr.bf16.mxu0 %v2120
        %2297 = vmatpush1.bf16.msra.mxu0 %v2119
        %2298 = vmatprep.subr.bf16.mxu0 %v2126
        %2299 = vmatpush1.bf16.msra.mxu0 %v2125
        %2300 = vmatprep.mubr.bf16.mxu0 %v1616
        %2301 = vmatmul.mubr.bf16.gmra.mrb[0].mxu0 %v1615
        %v2302 = vpop.f32.mrb[0].mxu0
        %v2303 = vadd.f32 %v1726, %v2302
        %v2304 = vpop.f32.mrb[0].mxu0
        %v2305 = vadd.f32 %v1730, %v2304
        %v2306 = vpop.f32.mrb[0].mxu0
        %v2307 = vadd.f32 %v1726, %v2306
        %v2308 = vpop.f32.mrb[0].mxu0
        %v2309 = vadd.f32 %v1730, %v2308
        %2310 = vdwg.mxu0
        %2311 = vmatprep.subr.bf16.mxu0 %v2038
        %2312 = vmatpush1.bf16.msra.mxu0 %v2037
        %2313 = vmatprep.subr.bf16.mxu0 %v2044
        %2314 = vmatpush1.bf16.msra.mxu0 %v2043
        %2315 = vmatprep.subr.bf16.mxu0 %v2050
        %2316 = vmatpush1.bf16.msra.mxu0 %v2049
        %2317 = vmatprep.subr.bf16.mxu0 %v2056
        %2318 = vmatpush1.bf16.msra.mxu0 %v2055
        %2319 = vmatprep.subr.bf16.mxu0 %v2062
        %2320 = vmatpush1.bf16.msra.mxu0 %v2061
        %2321 = vmatprep.subr.bf16.mxu0 %v2068
        %2322 = vmatpush1.bf16.msra.mxu0 %v2067
        %2323 = vmatprep.subr.bf16.mxu0 %v2074
        %2324 = vmatpush1.bf16.msra.mxu0 %v2073
        %2325 = vmatprep.subr.bf16.mxu0 %v2080
        %2326 = vmatpush1.bf16.msra.mxu0 %v2079
        %2327 = vmatprep.subr.bf16.mxu0 %v2086
        %2328 = vmatpush1.bf16.msra.mxu0 %v2085
        %2329 = vmatprep.subr.bf16.mxu0 %v2092
        %2330 = vmatpush1.bf16.msra.mxu0 %v2091
        %2331 = vmatprep.subr.bf16.mxu0 %v2098
        %2332 = vmatpush1.bf16.msra.mxu0 %v2097
        %2333 = vmatprep.subr.bf16.mxu0 %v2104
        %2334 = vmatpush1.bf16.msra.mxu0 %v2103
        %2335 = vmatprep.subr.bf16.mxu0 %v2110
        %2336 = vmatpush1.bf16.msra.mxu0 %v2109
        %2337 = vmatprep.subr.bf16.mxu0 %v2116
        %2338 = vmatpush1.bf16.msra.mxu0 %v2115
        %2339 = vmatprep.subr.bf16.mxu0 %v2122
        %2340 = vmatpush1.bf16.msra.mxu0 %v2121
        %2341 = vmatprep.subr.bf16.mxu0 %v2128
        %2342 = vmatpush1.bf16.msra.mxu0 %v2127
        %2343 = vmatprep.mubr.bf16.mxu0 %v1616
        %2344 = vmatmul.mubr.bf16.gmra.mrb[0].mxu0 %v1615
        %v2345 = vpop.f32.mrb[0].mxu0
        %v2346 = vadd.f32 %v1734, %v2345
        %v2347 = vpop.f32.mrb[0].mxu0
        %v2348 = vadd.f32 %v1738, %v2347
        %v2349 = vpop.f32.mrb[0].mxu0
        %v2350 = vadd.f32 %v1734, %v2349
        %v2351 = vpop.f32.mrb[0].mxu0
        %v2352 = vadd.f32 %v1738, %v2351
        %2353 = vdwg.mxu0
        %v2354 = vpack.c.bf16 %v2260, %v2260
        %v2355 = vpack.c.bf16 %v2264, %v2264
        %v2356 = vpack.c.bf16 %v2262, %v2262
        %v2357 = vpack.c.bf16 %v2266, %v2266
        %v2358 = vpack.c.bf16 %v2303, %v2303
        %v2359 = vpack.c.bf16 %v2307, %v2307
        %v2360 = vpack.c.bf16 %v2305, %v2305
        %v2361 = vpack.c.bf16 %v2309, %v2309
        %v2362 = vpack.c.bf16 %v2346, %v2346
        %v2363 = vpack.c.bf16 %v2350, %v2350
        %v2364 = vpack.c.bf16 %v2348, %v2348
        %v2365 = vpack.c.bf16 %v2352, %v2352
        %v2366 = vlaneseq
        %v2367 = vand.u32 %v2366, 127
        %vm2368 = vcmp.lt.s32.totalorder %v2367, 5
        %v2369 = vsel %vm2368, 0.0, -1e+30
        %2370 = vmatprep.subr.bf16.mxu0 0
        %2371 = vmatpush1.bf16.xpose.msra.mxu0 %v2358
        %2372 = vmatprep.subr.bf16.mxu0 0
        %2373 = vmatpush1.bf16.xpose.msra.mxu0 0
        %2374 = vmatprep.subr.bf16.mxu0 0
        %2375 = vmatpush1.bf16.xpose.msra.mxu0 0
        %2376 = vmatprep.subr.bf16.mxu0 0
        %2377 = vmatpush1.bf16.xpose.msra.mxu0 0
        %2378 = vmatprep.subr.bf16.mxu0 0
        %2379 = vmatpush1.bf16.xpose.msra.mxu0 0
        %2380 = vmatprep.subr.bf16.mxu0 0
        %2381 = vmatpush1.bf16.xpose.msra.mxu0 0
        %2382 = vmatprep.subr.bf16.mxu0 0
        %2383 = vmatpush1.bf16.xpose.msra.mxu0 0
        %2384 = vmatprep.subr.bf16.mxu0 0
        %2385 = vmatpush1.bf16.xpose.msra.mxu0 0
        %2386 = vmatprep.subr.bf16.mxu0 0
        %2387 = vmatpush1.bf16.xpose.msra.mxu0 0
        %2388 = vmatprep.subr.bf16.mxu0 0
        %2389 = vmatpush1.bf16.xpose.msra.mxu0 0
        %2390 = vmatprep.subr.bf16.mxu0 0
        %2391 = vmatpush1.bf16.xpose.msra.mxu0 0
        %2392 = vmatprep.subr.bf16.mxu0 0
        %2393 = vmatpush1.bf16.xpose.msra.mxu0 0
        %2394 = vmatprep.subr.bf16.mxu0 0
        %2395 = vmatpush1.bf16.xpose.msra.mxu0 0
        %2396 = vmatprep.subr.bf16.mxu0 0
        %2397 = vmatpush1.bf16.xpose.msra.mxu0 0
        %2398 = vmatprep.subr.bf16.mxu0 0
        %2399 = vmatpush1.bf16.xpose.msra.mxu0 0
        %2400 = vmatprep.subr.bf16.mxu0 0
        %2401 = vmatpush1.bf16.xpose.msra.mxu0 0
        %2402 = vmatprep.mubr.bf16.mxu0 0
        %2403 = vmatmul.mubr.bf16.gmra.mrb[0].mxu0 %v2354
        %v2404 = vpop.f32.mrb[0].mxu0
        %v2405 = vadd.f32 %v2369, %v2404
        %v2406 = vpop.f32.mrb[0].mxu0
        %v2407 = vpop.f32.mrb[0].mxu0
        %v2408 = vpop.f32.mrb[0].mxu0
        %2409 = vdwg.mxu0
        %2410 = vmatprep.subr.bf16.mxu0 0
        %2411 = vmatpush1.bf16.xpose.msra.mxu0 %v2359
        %2412 = vmatprep.subr.bf16.mxu0 0
        %2413 = vmatpush1.bf16.xpose.msra.mxu0 0
        %2414 = vmatprep.subr.bf16.mxu0 0
        %2415 = vmatpush1.bf16.xpose.msra.mxu0 0
        %2416 = vmatprep.subr.bf16.mxu0 0
        %2417 = vmatpush1.bf16.xpose.msra.mxu0 0
        %2418 = vmatprep.subr.bf16.mxu0 0
        %2419 = vmatpush1.bf16.xpose.msra.mxu0 0
        %2420 = vmatprep.subr.bf16.mxu0 0
        %2421 = vmatpush1.bf16.xpose.msra.mxu0 0
        %2422 = vmatprep.subr.bf16.mxu0 0
        %2423 = vmatpush1.bf16.xpose.msra.mxu0 0
        %2424 = vmatprep.subr.bf16.mxu0 0
        %2425 = vmatpush1.bf16.xpose.msra.mxu0 0
        %2426 = vmatprep.subr.bf16.mxu0 0
        %2427 = vmatpush1.bf16.xpose.msra.mxu0 0
        %2428 = vmatprep.subr.bf16.mxu0 0
        %2429 = vmatpush1.bf16.xpose.msra.mxu0 0
        %2430 = vmatprep.subr.bf16.mxu0 0
        %2431 = vmatpush1.bf16.xpose.msra.mxu0 0
        %2432 = vmatprep.subr.bf16.mxu0 0
        %2433 = vmatpush1.bf16.xpose.msra.mxu0 0
        %2434 = vmatprep.subr.bf16.mxu0 0
        %2435 = vmatpush1.bf16.xpose.msra.mxu0 0
        %2436 = vmatprep.subr.bf16.mxu0 0
        %2437 = vmatpush1.bf16.xpose.msra.mxu0 0
        %2438 = vmatprep.subr.bf16.mxu0 0
        %2439 = vmatpush1.bf16.xpose.msra.mxu0 0
        %2440 = vmatprep.subr.bf16.mxu0 0
        %2441 = vmatpush1.bf16.xpose.msra.mxu0 0
        %2442 = vmatprep.mubr.bf16.mxu0 0
        %2443 = vmatmul.mubr.bf16.gmra.mrb[0].mxu0 %v2355
        %v2444 = vpop.f32.mrb[0].mxu0
        %v2445 = vadd.f32 %v2369, %v2444
        %v2446 = vpop.f32.mrb[0].mxu0
        %v2447 = vpop.f32.mrb[0].mxu0
        %v2448 = vpop.f32.mrb[0].mxu0
        %2449 = vdwg.mxu0
        %2450 = vmatprep.subr.bf16.mxu0 0
        %2451 = vmatpush1.bf16.xpose.msra.mxu0 %v2360
        %2452 = vmatprep.subr.bf16.mxu0 0
        %2453 = vmatpush1.bf16.xpose.msra.mxu0 0
        %2454 = vmatprep.subr.bf16.mxu0 0
        %2455 = vmatpush1.bf16.xpose.msra.mxu0 0
        %2456 = vmatprep.subr.bf16.mxu0 0
        %2457 = vmatpush1.bf16.xpose.msra.mxu0 0
        %2458 = vmatprep.subr.bf16.mxu0 0
        %2459 = vmatpush1.bf16.xpose.msra.mxu0 0
        %2460 = vmatprep.subr.bf16.mxu0 0
        %2461 = vmatpush1.bf16.xpose.msra.mxu0 0
        %2462 = vmatprep.subr.bf16.mxu0 0
        %2463 = vmatpush1.bf16.xpose.msra.mxu0 0
        %2464 = vmatprep.subr.bf16.mxu0 0
        %2465 = vmatpush1.bf16.xpose.msra.mxu0 0
        %2466 = vmatprep.subr.bf16.mxu0 0
        %2467 = vmatpush1.bf16.xpose.msra.mxu0 0
        %2468 = vmatprep.subr.bf16.mxu0 0
        %2469 = vmatpush1.bf16.xpose.msra.mxu0 0
        %2470 = vmatprep.subr.bf16.mxu0 0
        %2471 = vmatpush1.bf16.xpose.msra.mxu0 0
        %2472 = vmatprep.subr.bf16.mxu0 0
        %2473 = vmatpush1.bf16.xpose.msra.mxu0 0
        %2474 = vmatprep.subr.bf16.mxu0 0
        %2475 = vmatpush1.bf16.xpose.msra.mxu0 0
        %2476 = vmatprep.subr.bf16.mxu0 0
        %2477 = vmatpush1.bf16.xpose.msra.mxu0 0
        %2478 = vmatprep.subr.bf16.mxu0 0
        %2479 = vmatpush1.bf16.xpose.msra.mxu0 0
        %2480 = vmatprep.subr.bf16.mxu0 0
        %2481 = vmatpush1.bf16.xpose.msra.mxu0 0
        %2482 = vmatprep.mubr.bf16.mxu0 0
        %2483 = vmatmul.mubr.bf16.gmra.mrb[0].mxu0 %v2356
        %v2484 = vpop.f32.mrb[0].mxu0
        %v2485 = vadd.f32 %v2369, %v2484
        %v2486 = vpop.f32.mrb[0].mxu0
        %v2487 = vpop.f32.mrb[0].mxu0
        %v2488 = vpop.f32.mrb[0].mxu0
        %2489 = vdwg.mxu0
        %2490 = vmatprep.subr.bf16.mxu0 0
        %2491 = vmatpush1.bf16.xpose.msra.mxu0 %v2361
        %2492 = vmatprep.subr.bf16.mxu0 0
        %2493 = vmatpush1.bf16.xpose.msra.mxu0 0
        %2494 = vmatprep.subr.bf16.mxu0 0
        %2495 = vmatpush1.bf16.xpose.msra.mxu0 0
        %2496 = vmatprep.subr.bf16.mxu0 0
        %2497 = vmatpush1.bf16.xpose.msra.mxu0 0
        %2498 = vmatprep.subr.bf16.mxu0 0
        %2499 = vmatpush1.bf16.xpose.msra.mxu0 0
        %2500 = vmatprep.subr.bf16.mxu0 0
        %2501 = vmatpush1.bf16.xpose.msra.mxu0 0
        %2502 = vmatprep.subr.bf16.mxu0 0
        %2503 = vmatpush1.bf16.xpose.msra.mxu0 0
        %2504 = vmatprep.subr.bf16.mxu0 0
        %2505 = vmatpush1.bf16.xpose.msra.mxu0 0
        %2506 = vmatprep.subr.bf16.mxu0 0
        %2507 = vmatpush1.bf16.xpose.msra.mxu0 0
        %2508 = vmatprep.subr.bf16.mxu0 0
        %2509 = vmatpush1.bf16.xpose.msra.mxu0 0
        %2510 = vmatprep.subr.bf16.mxu0 0
        %2511 = vmatpush1.bf16.xpose.msra.mxu0 0
        %2512 = vmatprep.subr.bf16.mxu0 0
        %2513 = vmatpush1.bf16.xpose.msra.mxu0 0
        %2514 = vmatprep.subr.bf16.mxu0 0
        %2515 = vmatpush1.bf16.xpose.msra.mxu0 0
        %2516 = vmatprep.subr.bf16.mxu0 0
        %2517 = vmatpush1.bf16.xpose.msra.mxu0 0
        %2518 = vmatprep.subr.bf16.mxu0 0
        %2519 = vmatpush1.bf16.xpose.msra.mxu0 0
        %2520 = vmatprep.subr.bf16.mxu0 0
        %2521 = vmatpush1.bf16.xpose.msra.mxu0 0
        %2522 = vmatprep.mubr.bf16.mxu0 0
        %2523 = vmatmul.mubr.bf16.gmra.mrb[0].mxu0 %v2357
        %v2524 = vpop.f32.mrb[0].mxu0
        %v2525 = vadd.f32 %v2369, %v2524
        %v2526 = vpop.f32.mrb[0].mxu0
        %v2527 = vpop.f32.mrb[0].mxu0
        %v2528 = vpop.f32.mrb[0].mxu0
        %2529 = vdwg.mxu0
        %vm2530 = vcmask 64512
        %v2531 = vsel %vm2530, %v2405, -inf
        %2532 = vmax.xlane.f32.xlu0 %v2531
        %v2533 = vpop.xlane.xlu0 %2532
        %v2534 = vsel %vm2530, %v2445, -inf
        %2535 = vmax.xlane.f32.xlu0 %v2534
        %v2536 = vpop.xlane.xlu0 %2535
        %v2537 = vsel %vm2530, %v2485, -inf
        %2538 = vmax.xlane.f32.xlu0 %v2537
        %v2539 = vpop.xlane.xlu0 %2538
        %v2540 = vsel %vm2530, %v2525, -inf
        %2541 = vmax.xlane.f32.xlu0 %v2540
        %v2542 = vpop.xlane.xlu0 %2541
        %v2543 = vsub.f32 %v2405, %v2533
        %v2544 = vsub.f32 %v2445, %v2536
        %v2545 = vsub.f32 %v2485, %v2539
        %v2546 = vsub.f32 %v2525, %v2542
        %v2547 = vmul.f32 %v2543, 1.442695
        %v2548 = vpow.pop %v2547
        %v2549 = vmul.f32 %v2544, 1.442695
        %v2550 = vpow.pop %v2549
        %v2551 = vmul.f32 %v2545, 1.442695
        %v2552 = vpow.pop %v2551
        %v2553 = vmul.f32 %v2546, 1.442695
        %v2554 = vpow.pop %v2553
        %v2555 = vsel %vm2530, %v2548, 0.0
        %2556 = vadd.xlane.f32.xlu0 %v2555
        %v2557 = vpop.xlane.xlu0 %2556
        %v2558 = vsel %vm2530, %v2550, 0.0
        %2559 = vadd.xlane.f32.xlu0 %v2558
        %v2560 = vpop.xlane.xlu0 %2559
        %v2561 = vsel %vm2530, %v2552, 0.0
        %2562 = vadd.xlane.f32.xlu0 %v2561
        %v2563 = vpop.xlane.xlu0 %2562
        %v2564 = vsel %vm2530, %v2554, 0.0
        %2565 = vadd.xlane.f32.xlu0 %v2564
        %v2566 = vpop.xlane.xlu0 %2565
        %v2567 = vrcp.pop %v2557
        %v2568 = vrcp.pop %v2560
        %v2569 = vrcp.pop %v2563
        %v2570 = vrcp.pop %v2566
        %v2571 = vmul.f32 %v2548, %v2567
        %v2572 = vmul.f32 %v2550, %v2568
        %v2573 = vmul.f32 %v2552, %v2569
        %v2574 = vmul.f32 %v2554, %v2570
        %v2575 = vpack.c.bf16 %v2571, %v2571
        %v2576 = vpack.c.bf16 %v2572, %v2572
        %v2577 = vpack.c.bf16 %v2573, %v2573
        %v2578 = vpack.c.bf16 %v2574, %v2574
        %v2580 = vsel %vm2530, %v2575, 0
        %vm2582 = vcmask 1043456
        %v2584 = vsel %vm2582, %v2362, 0
        %2586 = vmatprep.subr.bf16.mxu0 0
        %2587 = vmatpush1.bf16.msra.mxu0 %v2584
        %2588 = vmatprep.subr.bf16.mxu0 0
        %2589 = vmatpush1.bf16.msra.mxu0 0
        %2590 = vmatprep.subr.bf16.mxu0 0
        %2591 = vmatpush1.bf16.msra.mxu0 0
        %2592 = vmatprep.subr.bf16.mxu0 0
        %2593 = vmatpush1.bf16.msra.mxu0 0
        %2594 = vmatprep.subr.bf16.mxu0 0
        %2595 = vmatpush1.bf16.msra.mxu0 0
        %2596 = vmatprep.subr.bf16.mxu0 0
        %2597 = vmatpush1.bf16.msra.mxu0 0
        %2598 = vmatprep.subr.bf16.mxu0 0
        %2599 = vmatpush1.bf16.msra.mxu0 0
        %2600 = vmatprep.subr.bf16.mxu0 0
        %2601 = vmatpush1.bf16.msra.mxu0 0
        %2602 = vmatprep.subr.bf16.mxu0 0
        %2603 = vmatpush1.bf16.msra.mxu0 0
        %2604 = vmatprep.subr.bf16.mxu0 0
        %2605 = vmatpush1.bf16.msra.mxu0 0
        %2606 = vmatprep.subr.bf16.mxu0 0
        %2607 = vmatpush1.bf16.msra.mxu0 0
        %2608 = vmatprep.subr.bf16.mxu0 0
        %2609 = vmatpush1.bf16.msra.mxu0 0
        %2610 = vmatprep.subr.bf16.mxu0 0
        %2611 = vmatpush1.bf16.msra.mxu0 0
        %2612 = vmatprep.subr.bf16.mxu0 0
        %2613 = vmatpush1.bf16.msra.mxu0 0
        %2614 = vmatprep.subr.bf16.mxu0 0
        %2615 = vmatpush1.bf16.msra.mxu0 0
        %2616 = vmatprep.subr.bf16.mxu0 0
        %2617 = vmatpush1.bf16.msra.mxu0 0
        %2618 = vmatprep.mubr.bf16.mxu0 0
        %2619 = vmatmul.mubr.bf16.gmra.mrb[0].mxu0 %v2580
        %v2620 = vpop.f32.mrb[0].mxu0
        %v2621 = vadd.f32 0.0, %v2620
        %v2622 = vpop.f32.mrb[0].mxu0
        %v2623 = vpop.f32.mrb[0].mxu0
        %v2624 = vpop.f32.mrb[0].mxu0
        %2625 = vdwg.mxu0
        %v2627 = vsel %vm2530, %v2576, 0
        %v2630 = vsel %vm2582, %v2363, 0
        %2632 = vmatprep.subr.bf16.mxu0 0
        %2633 = vmatpush1.bf16.msra.mxu0 %v2630
        %2634 = vmatprep.subr.bf16.mxu0 0
        %2635 = vmatpush1.bf16.msra.mxu0 0
        %2636 = vmatprep.subr.bf16.mxu0 0
        %2637 = vmatpush1.bf16.msra.mxu0 0
        %2638 = vmatprep.subr.bf16.mxu0 0
        %2639 = vmatpush1.bf16.msra.mxu0 0
        %2640 = vmatprep.subr.bf16.mxu0 0
        %2641 = vmatpush1.bf16.msra.mxu0 0
        %2642 = vmatprep.subr.bf16.mxu0 0
        %2643 = vmatpush1.bf16.msra.mxu0 0
        %2644 = vmatprep.subr.bf16.mxu0 0
        %2645 = vmatpush1.bf16.msra.mxu0 0
        %2646 = vmatprep.subr.bf16.mxu0 0
        %2647 = vmatpush1.bf16.msra.mxu0 0
        %2648 = vmatprep.subr.bf16.mxu0 0
        %2649 = vmatpush1.bf16.msra.mxu0 0
        %2650 = vmatprep.subr.bf16.mxu0 0
        %2651 = vmatpush1.bf16.msra.mxu0 0
        %2652 = vmatprep.subr.bf16.mxu0 0
        %2653 = vmatpush1.bf16.msra.mxu0 0
        %2654 = vmatprep.subr.bf16.mxu0 0
        %2655 = vmatpush1.bf16.msra.mxu0 0
        %2656 = vmatprep.subr.bf16.mxu0 0
        %2657 = vmatpush1.bf16.msra.mxu0 0
        %2658 = vmatprep.subr.bf16.mxu0 0
        %2659 = vmatpush1.bf16.msra.mxu0 0
        %2660 = vmatprep.subr.bf16.mxu0 0
        %2661 = vmatpush1.bf16.msra.mxu0 0
        %2662 = vmatprep.subr.bf16.mxu0 0
        %2663 = vmatpush1.bf16.msra.mxu0 0
        %2664 = vmatprep.mubr.bf16.mxu0 0
        %2665 = vmatmul.mubr.bf16.gmra.mrb[0].mxu0 %v2627
        %v2666 = vpop.f32.mrb[0].mxu0
        %v2667 = vadd.f32 0.0, %v2666
        %v2668 = vpop.f32.mrb[0].mxu0
        %v2669 = vpop.f32.mrb[0].mxu0
        %v2670 = vpop.f32.mrb[0].mxu0
        %2671 = vdwg.mxu0
        %v2673 = vsel %vm2530, %v2577, 0
        %v2676 = vsel %vm2582, %v2364, 0
        %2678 = vmatprep.subr.bf16.mxu0 0
        %2679 = vmatpush1.bf16.msra.mxu0 %v2676
        %2680 = vmatprep.subr.bf16.mxu0 0
        %2681 = vmatpush1.bf16.msra.mxu0 0
        %2682 = vmatprep.subr.bf16.mxu0 0
        %2683 = vmatpush1.bf16.msra.mxu0 0
        %2684 = vmatprep.subr.bf16.mxu0 0
        %2685 = vmatpush1.bf16.msra.mxu0 0
        %2686 = vmatprep.subr.bf16.mxu0 0
        %2687 = vmatpush1.bf16.msra.mxu0 0
        %2688 = vmatprep.subr.bf16.mxu0 0
        %2689 = vmatpush1.bf16.msra.mxu0 0
        %2690 = vmatprep.subr.bf16.mxu0 0
        %2691 = vmatpush1.bf16.msra.mxu0 0
        %2692 = vmatprep.subr.bf16.mxu0 0
        %2693 = vmatpush1.bf16.msra.mxu0 0
        %2694 = vmatprep.subr.bf16.mxu0 0
        %2695 = vmatpush1.bf16.msra.mxu0 0
        %2696 = vmatprep.subr.bf16.mxu0 0
        %2697 = vmatpush1.bf16.msra.mxu0 0
        %2698 = vmatprep.subr.bf16.mxu0 0
        %2699 = vmatpush1.bf16.msra.mxu0 0
        %2700 = vmatprep.subr.bf16.mxu0 0
        %2701 = vmatpush1.bf16.msra.mxu0 0
        %2702 = vmatprep.subr.bf16.mxu0 0
        %2703 = vmatpush1.bf16.msra.mxu0 0
        %2704 = vmatprep.subr.bf16.mxu0 0
        %2705 = vmatpush1.bf16.msra.mxu0 0
        %2706 = vmatprep.subr.bf16.mxu0 0
        %2707 = vmatpush1.bf16.msra.mxu0 0
        %2708 = vmatprep.subr.bf16.mxu0 0
        %2709 = vmatpush1.bf16.msra.mxu0 0
        %2710 = vmatprep.mubr.bf16.mxu0 0
        %2711 = vmatmul.mubr.bf16.gmra.mrb[0].mxu0 %v2673
        %v2712 = vpop.f32.mrb[0].mxu0
        %v2713 = vadd.f32 0.0, %v2712
        %v2714 = vpop.f32.mrb[0].mxu0
        %v2715 = vpop.f32.mrb[0].mxu0
        %v2716 = vpop.f32.mrb[0].mxu0
        %2717 = vdwg.mxu0
        %v2719 = vsel %vm2530, %v2578, 0
        %v2722 = vsel %vm2582, %v2365, 0
        %2724 = vmatprep.subr.bf16.mxu0 0
        %2725 = vmatpush1.bf16.msra.mxu0 %v2722
        %2726 = vmatprep.subr.bf16.mxu0 0
        %2727 = vmatpush1.bf16.msra.mxu0 0
        %2728 = vmatprep.subr.bf16.mxu0 0
        %2729 = vmatpush1.bf16.msra.mxu0 0
        %2730 = vmatprep.subr.bf16.mxu0 0
        %2731 = vmatpush1.bf16.msra.mxu0 0
        %2732 = vmatprep.subr.bf16.mxu0 0
        %2733 = vmatpush1.bf16.msra.mxu0 0
        %2734 = vmatprep.subr.bf16.mxu0 0
        %2735 = vmatpush1.bf16.msra.mxu0 0
        %2736 = vmatprep.subr.bf16.mxu0 0
        %2737 = vmatpush1.bf16.msra.mxu0 0
        %2738 = vmatprep.subr.bf16.mxu0 0
        %2739 = vmatpush1.bf16.msra.mxu0 0
        %2740 = vmatprep.subr.bf16.mxu0 0
        %2741 = vmatpush1.bf16.msra.mxu0 0
        %2742 = vmatprep.subr.bf16.mxu0 0
        %2743 = vmatpush1.bf16.msra.mxu0 0
        %2744 = vmatprep.subr.bf16.mxu0 0
        %2745 = vmatpush1.bf16.msra.mxu0 0
        %2746 = vmatprep.subr.bf16.mxu0 0
        %2747 = vmatpush1.bf16.msra.mxu0 0
        %2748 = vmatprep.subr.bf16.mxu0 0
        %2749 = vmatpush1.bf16.msra.mxu0 0
        %2750 = vmatprep.subr.bf16.mxu0 0
        %2751 = vmatpush1.bf16.msra.mxu0 0
        %2752 = vmatprep.subr.bf16.mxu0 0
        %2753 = vmatpush1.bf16.msra.mxu0 0
        %2754 = vmatprep.subr.bf16.mxu0 0
        %2755 = vmatpush1.bf16.msra.mxu0 0
        %2756 = vmatprep.mubr.bf16.mxu0 0
        %2757 = vmatmul.mubr.bf16.gmra.mrb[0].mxu0 %v2719
        %v2758 = vpop.f32.mrb[0].mxu0
        %v2759 = vadd.f32 0.0, %v2758
        %v2760 = vpop.f32.mrb[0].mxu0
        %v2761 = vpop.f32.mrb[0].mxu0
        %v2762 = vpop.f32.mrb[0].mxu0
        %2763 = vdwg.mxu0
        %v2764 = vpack.c.bf16 %v2667, %v2621
        %v2765 = vpack.c.bf16 %v2759, %v2713
        %v2766 = vld [vmem:[%s767] sm:$0xff]
        %v2767 = vld [vmem:[%s767 + $0x8] sm:$0xff]
        %v2768 = vld [vmem:[%s767 + $0x10] sm:$0xff]
        %v2769 = vld [vmem:[%s767 + $0x18] sm:$0xff]
        %v2770 = vld [vmem:[%s767 + $0x20] sm:$0xff]
        %v2771 = vld [vmem:[%s767 + $0x28] sm:$0xff]
        %v2772 = vld [vmem:[%s767 + $0x30] sm:$0xff]
        %v2773 = vld [vmem:[%s767 + $0x38] sm:$0xff]
        %v2774 = vld [vmem:[%s767 + $0x40] sm:$0xff]
        %v2775 = vld [vmem:[%s767 + $0x48] sm:$0xff]
        %v2776 = vld [vmem:[%s767 + $0x50] sm:$0xff]
        %v2777 = vld [vmem:[%s767 + $0x58] sm:$0xff]
        %v2778 = vld [vmem:[%s767 + $0x60] sm:$0xff]
        %v2779 = vld [vmem:[%s767 + $0x68] sm:$0xff]
        %v2780 = vld [vmem:[%s767 + $0x70] sm:$0xff]
        %v2781 = vld [vmem:[%s767 + $0x78] sm:$0xff]
        %v2782 = vld [vmem:[%s767 + $0x80] sm:$0xff]
        %v2783 = vld [vmem:[%s767 + $0x88] sm:$0xff]
        %v2784 = vld [vmem:[%s767 + $0x90] sm:$0xff]
        %v2785 = vld [vmem:[%s767 + $0x98] sm:$0xff]
        %v2786 = vld [vmem:[%s767 + $0xa0] sm:$0xff]
        %v2787 = vld [vmem:[%s767 + $0xa8] sm:$0xff]
        %v2788 = vld [vmem:[%s767 + $0xb0] sm:$0xff]
        %v2789 = vld [vmem:[%s767 + $0xb8] sm:$0xff]
        %v2790 = vld [vmem:[%s767 + $0xc0] sm:$0xff]
        %v2791 = vld [vmem:[%s767 + $0xc8] sm:$0xff]
        %v2792 = vld [vmem:[%s767 + $0xd0] sm:$0xff]
        %v2793 = vld [vmem:[%s767 + $0xd8] sm:$0xff]
        %v2794 = vld [vmem:[%s767 + $0xe0] sm:$0xff]
        %v2795 = vld [vmem:[%s767 + $0xe8] sm:$0xff]
        %v2796 = vld [vmem:[%s767 + $0xf0] sm:$0xff]
        %v2797 = vld [vmem:[%s767 + $0xf8] sm:$0xff]
        %v2798 = vld [vmem:[%s771] sm:$0x3]
        %v2800 = vlaneseq
        %v2801 = vshrl.u32 %v2800, 7
        %v2802 = vsub.s32 0, %v2801
        %v2803 = vrot.slane %v2798, %v2802
        %v2804 = vlaneseq
        %v2805 = vshrl.u32 %v2804, 7
        %v2806 = vsub.s32 1, %v2805
        %v2807 = vrot.slane %v2798, %v2806
        %v2842 = vunpack.c.l.b16 %v2766
        %v2843 = vunpack.c.h.b16 %v2766
        %v2844 = vunpack.c.l.b16 %v2767
        %v2845 = vunpack.c.h.b16 %v2767
        %v2846 = vunpack.c.l.b16 %v2768
        %v2847 = vunpack.c.h.b16 %v2768
        %v2848 = vunpack.c.l.b16 %v2769
        %v2849 = vunpack.c.h.b16 %v2769
        %v2850 = vunpack.c.l.b16 %v2770
        %v2851 = vunpack.c.h.b16 %v2770
        %v2852 = vunpack.c.l.b16 %v2771
        %v2853 = vunpack.c.h.b16 %v2771
        %v2854 = vunpack.c.l.b16 %v2772
        %v2855 = vunpack.c.h.b16 %v2772
        %v2856 = vunpack.c.l.b16 %v2773
        %v2857 = vunpack.c.h.b16 %v2773
        %v2858 = vunpack.c.l.b16 %v2774
        %v2859 = vunpack.c.h.b16 %v2774
        %v2860 = vunpack.c.l.b16 %v2775
        %v2861 = vunpack.c.h.b16 %v2775
        %v2862 = vunpack.c.l.b16 %v2776
        %v2863 = vunpack.c.h.b16 %v2776
        %v2864 = vunpack.c.l.b16 %v2777
        %v2865 = vunpack.c.h.b16 %v2777
        %v2866 = vunpack.c.l.b16 %v2778
        %v2867 = vunpack.c.h.b16 %v2778
        %v2868 = vunpack.c.l.b16 %v2779
        %v2869 = vunpack.c.h.b16 %v2779
        %v2870 = vunpack.c.l.b16 %v2780
        %v2871 = vunpack.c.h.b16 %v2780
        %v2872 = vunpack.c.l.b16 %v2781
        %v2873 = vunpack.c.h.b16 %v2781
        %v2874 = vunpack.c.l.b16 %v2782
        %v2875 = vunpack.c.h.b16 %v2782
        %v2876 = vunpack.c.l.b16 %v2783
        %v2877 = vunpack.c.h.b16 %v2783
        %v2878 = vunpack.c.l.b16 %v2784
        %v2879 = vunpack.c.h.b16 %v2784
        %v2880 = vunpack.c.l.b16 %v2785
        %v2881 = vunpack.c.h.b16 %v2785
        %v2882 = vunpack.c.l.b16 %v2786
        %v2883 = vunpack.c.h.b16 %v2786
        %v2884 = vunpack.c.l.b16 %v2787
        %v2885 = vunpack.c.h.b16 %v2787
        %v2886 = vunpack.c.l.b16 %v2788
        %v2887 = vunpack.c.h.b16 %v2788
        %v2888 = vunpack.c.l.b16 %v2789
        %v2889 = vunpack.c.h.b16 %v2789
        %v2890 = vunpack.c.l.b16 %v2790
        %v2891 = vunpack.c.h.b16 %v2790
        %v2892 = vunpack.c.l.b16 %v2791
        %v2893 = vunpack.c.h.b16 %v2791
        %v2894 = vunpack.c.l.b16 %v2792
        %v2895 = vunpack.c.h.b16 %v2792
        %v2896 = vunpack.c.l.b16 %v2793
        %v2897 = vunpack.c.h.b16 %v2793
        %v2898 = vunpack.c.l.b16 %v2794
        %v2899 = vunpack.c.h.b16 %v2794
        %v2900 = vunpack.c.l.b16 %v2795
        %v2901 = vunpack.c.h.b16 %v2795
        %v2902 = vunpack.c.l.b16 %v2796
        %v2903 = vunpack.c.h.b16 %v2796
        %v2904 = vunpack.c.l.b16 %v2797
        %v2905 = vunpack.c.h.b16 %v2797
        %v2906 = vpack.c.b16 %v2844, %v2842
        %v2907 = vpack.c.b16 %v2845, %v2843
        %v2908 = vpack.c.b16 %v2848, %v2846
        %v2909 = vpack.c.b16 %v2849, %v2847
        %v2910 = vpack.c.b16 %v2852, %v2850
        %v2911 = vpack.c.b16 %v2853, %v2851
        %v2912 = vpack.c.b16 %v2856, %v2854
        %v2913 = vpack.c.b16 %v2857, %v2855
        %v2914 = vpack.c.b16 %v2860, %v2858
        %v2915 = vpack.c.b16 %v2861, %v2859
        %v2916 = vpack.c.b16 %v2864, %v2862
        %v2917 = vpack.c.b16 %v2865, %v2863
        %v2918 = vpack.c.b16 %v2868, %v2866
        %v2919 = vpack.c.b16 %v2869, %v2867
        %v2920 = vpack.c.b16 %v2872, %v2870
        %v2921 = vpack.c.b16 %v2873, %v2871
        %v2922 = vpack.c.b16 %v2876, %v2874
        %v2923 = vpack.c.b16 %v2877, %v2875
        %v2924 = vpack.c.b16 %v2880, %v2878
        %v2925 = vpack.c.b16 %v2881, %v2879
        %v2926 = vpack.c.b16 %v2884, %v2882
        %v2927 = vpack.c.b16 %v2885, %v2883
        %v2928 = vpack.c.b16 %v2888, %v2886
        %v2929 = vpack.c.b16 %v2889, %v2887
        %v2930 = vpack.c.b16 %v2892, %v2890
        %v2931 = vpack.c.b16 %v2893, %v2891
        %v2932 = vpack.c.b16 %v2896, %v2894
        %v2933 = vpack.c.b16 %v2897, %v2895
        %v2934 = vpack.c.b16 %v2900, %v2898
        %v2935 = vpack.c.b16 %v2901, %v2899
        %v2936 = vpack.c.b16 %v2904, %v2902
        %v2937 = vpack.c.b16 %v2905, %v2903
        %2970 = vmatprep.subr.bf16.mxu0 %v2907
        %2971 = vmatpush1.bf16.msra.mxu0 %v2906
        %2972 = vmatprep.subr.bf16.mxu0 %v2909
        %2973 = vmatpush1.bf16.msra.mxu0 %v2908
        %2974 = vmatprep.subr.bf16.mxu0 %v2911
        %2975 = vmatpush1.bf16.msra.mxu0 %v2910
        %2976 = vmatprep.subr.bf16.mxu0 %v2913
        %2977 = vmatpush1.bf16.msra.mxu0 %v2912
        %2978 = vmatprep.subr.bf16.mxu0 %v2915
        %2979 = vmatpush1.bf16.msra.mxu0 %v2914
        %2980 = vmatprep.subr.bf16.mxu0 %v2917
        %2981 = vmatpush1.bf16.msra.mxu0 %v2916
        %2982 = vmatprep.subr.bf16.mxu0 %v2919
        %2983 = vmatpush1.bf16.msra.mxu0 %v2918
        %2984 = vmatprep.subr.bf16.mxu0 %v2921
        %2985 = vmatpush1.bf16.msra.mxu0 %v2920
        %2986 = vmatprep.subr.bf16.mxu0 %v2923
        %2987 = vmatpush1.bf16.msra.mxu0 %v2922
        %2988 = vmatprep.subr.bf16.mxu0 %v2925
        %2989 = vmatpush1.bf16.msra.mxu0 %v2924
        %2990 = vmatprep.subr.bf16.mxu0 %v2927
        %2991 = vmatpush1.bf16.msra.mxu0 %v2926
        %2992 = vmatprep.subr.bf16.mxu0 %v2929
        %2993 = vmatpush1.bf16.msra.mxu0 %v2928
        %2994 = vmatprep.subr.bf16.mxu0 %v2931
        %2995 = vmatpush1.bf16.msra.mxu0 %v2930
        %2996 = vmatprep.subr.bf16.mxu0 %v2933
        %2997 = vmatpush1.bf16.msra.mxu0 %v2932
        %2998 = vmatprep.subr.bf16.mxu0 %v2935
        %2999 = vmatpush1.bf16.msra.mxu0 %v2934
        %3000 = vmatprep.subr.bf16.mxu0 %v2937
        %3001 = vmatpush1.bf16.msra.mxu0 %v2936
        %3002 = vmatprep.mubr.bf16.mxu0 %v2765
        %3003 = vmatmul.mubr.bf16.gmra.mrb[0].mxu0 %v2764
        %v3004 = vpop.f32.mrb[0].mxu0
        %v3005 = vadd.f32 %v2803, %v3004
        %v3006 = vpop.f32.mrb[0].mxu0
        %v3007 = vadd.f32 %v2807, %v3006
        %v3008 = vpop.f32.mrb[0].mxu0
        %v3009 = vadd.f32 %v2803, %v3008
        %v3010 = vpop.f32.mrb[0].mxu0
        %v3011 = vadd.f32 %v2807, %v3010
        %3012 = vdwg.mxu0
        %v3013 = vadd.f32 %v1546, %v3005
        %v3014 = vadd.f32 %v1547, %v3007
        %v3015 = vadd.f32 %v1548, %v3009
        %v3016 = vadd.f32 %v1549, %v3011
        %v3017 = vld [vmem:[%s775] sm:$0x3]
        %v3018 = vld [vmem:[%s779] sm:$0x3]
        %v3019 = vadd.f32 %v3013, %v3014
        %3020 = vadd.xlane.f32.xlu0 %v3019
        %v3021 = vpop.xlane.xlu0 %3020
        %v3022 = vadd.f32 %v3015, %v3016
        %3023 = vadd.xlane.f32.xlu0 %v3022
        %v3024 = vpop.xlane.xlu0 %3023
        %v3025 = vmul.f32 %v3021, %v1558
        %v3026 = vmul.f32 %v3024, %v1558
        %v3027 = vsub.f32 %v3013, %v3025
        %v3028 = vsub.f32 %v3014, %v3025
        %v3029 = vsub.f32 %v3015, %v3026
        %v3030 = vsub.f32 %v3016, %v3026
        %v3031 = vmul.f32 %v3027, %v3027
        %v3032 = vmul.f32 %v3028, %v3028
        %v3033 = vmul.f32 %v3029, %v3029
        %v3034 = vmul.f32 %v3030, %v3030
        %v3035 = vadd.f32 %v3031, %v3032
        %3036 = vadd.xlane.f32.xlu0 %v3035
        %v3037 = vpop.xlane.xlu0 %3036
        %v3038 = vadd.f32 %v3033, %v3034
        %3039 = vadd.xlane.f32.xlu0 %v3038
        %v3040 = vpop.xlane.xlu0 %3039
        %v3041 = vmul.f32 %v3037, %v1558
        %v3042 = vmul.f32 %v3040, %v1558
        %v3043 = vadd.f32 %v3041, 1e-06
        %v3044 = vadd.f32 %v3042, 1e-06
        %v3045 = vrsqrt.pop %v3043
        %v3046 = vrsqrt.pop %v3044
        %v3047 = vmul.f32 %v3027, %v3045
        %v3048 = vmul.f32 %v3028, %v3045
        %v3049 = vmul.f32 %v3029, %v3046
        %v3050 = vmul.f32 %v3030, %v3046
        %v3052 = vlaneseq
        %v3053 = vshrl.u32 %v3052, 7
        %v3054 = vsub.s32 0, %v3053
        %v3055 = vrot.slane %v3017, %v3054
        %v3056 = vlaneseq
        %v3057 = vshrl.u32 %v3056, 7
        %v3058 = vsub.s32 1, %v3057
        %v3059 = vrot.slane %v3017, %v3058
        %v3062 = vmul.f32 %v3047, %v3055
        %v3063 = vmul.f32 %v3048, %v3059
        %v3064 = vmul.f32 %v3049, %v3055
        %v3065 = vmul.f32 %v3050, %v3059
        %v3067 = vlaneseq
        %v3068 = vshrl.u32 %v3067, 7
        %v3069 = vsub.s32 0, %v3068
        %v3070 = vrot.slane %v3018, %v3069
        %v3071 = vlaneseq
        %v3072 = vshrl.u32 %v3071, 7
        %v3073 = vsub.s32 1, %v3072
        %v3074 = vrot.slane %v3018, %v3073
        %v3077 = vadd.f32 %v3062, %v3070
        %v3078 = vadd.f32 %v3063, %v3074
        %v3079 = vadd.f32 %v3064, %v3070
        %v3080 = vadd.f32 %v3065, %v3074
        %v3081 = vpack.c.bf16 %v3079, %v3077
        %v3082 = vpack.c.bf16 %v3080, %v3078
        %v3083 = vld [vmem:[%s649] sm:$0xff]
        %v3084 = vld [vmem:[%s649 + $0x8] sm:$0xff]
        %v3085 = vld [vmem:[%s649 + $0x10] sm:$0xff]
        %v3086 = vld [vmem:[%s649 + $0x18] sm:$0xff]
        %v3087 = vld [vmem:[%s649 + $0x20] sm:$0xff]
        %v3088 = vld [vmem:[%s649 + $0x28] sm:$0xff]
        %v3089 = vld [vmem:[%s649 + $0x30] sm:$0xff]
        %v3090 = vld [vmem:[%s649 + $0x38] sm:$0xff]
        %v3091 = vld [vmem:[%s649 + $0x40] sm:$0xff]
        %v3092 = vld [vmem:[%s649 + $0x48] sm:$0xff]
        %v3093 = vld [vmem:[%s649 + $0x50] sm:$0xff]
        %v3094 = vld [vmem:[%s649 + $0x58] sm:$0xff]
        %v3095 = vld [vmem:[%s649 + $0x60] sm:$0xff]
        %v3096 = vld [vmem:[%s649 + $0x68] sm:$0xff]
        %v3097 = vld [vmem:[%s649 + $0x70] sm:$0xff]
        %v3098 = vld [vmem:[%s649 + $0x78] sm:$0xff]
        %v3099 = vld [vmem:[%s649 + $0x80] sm:$0xff]
        %v3100 = vld [vmem:[%s649 + $0x88] sm:$0xff]
        %v3101 = vld [vmem:[%s649 + $0x90] sm:$0xff]
        %v3102 = vld [vmem:[%s649 + $0x98] sm:$0xff]
        %v3103 = vld [vmem:[%s649 + $0xa0] sm:$0xff]
        %v3104 = vld [vmem:[%s649 + $0xa8] sm:$0xff]
        %v3105 = vld [vmem:[%s649 + $0xb0] sm:$0xff]
        %v3106 = vld [vmem:[%s649 + $0xb8] sm:$0xff]
        %v3107 = vld [vmem:[%s649 + $0xc0] sm:$0xff]
        %v3108 = vld [vmem:[%s649 + $0xc8] sm:$0xff]
        %v3109 = vld [vmem:[%s649 + $0xd0] sm:$0xff]
        %v3110 = vld [vmem:[%s649 + $0xd8] sm:$0xff]
        %v3111 = vld [vmem:[%s649 + $0xe0] sm:$0xff]
        %v3112 = vld [vmem:[%s649 + $0xe8] sm:$0xff]
        %v3113 = vld [vmem:[%s649 + $0xf0] sm:$0xff]
        %v3114 = vld [vmem:[%s649 + $0xf8] sm:$0xff]
        %v3115 = vld [vmem:[%s649 + $0x100] sm:$0xff]
        %v3116 = vld [vmem:[%s649 + $0x108] sm:$0xff]
        %v3117 = vld [vmem:[%s649 + $0x110] sm:$0xff]
        %v3118 = vld [vmem:[%s649 + $0x118] sm:$0xff]
        %v3119 = vld [vmem:[%s649 + $0x120] sm:$0xff]
        %v3120 = vld [vmem:[%s649 + $0x128] sm:$0xff]
        %v3121 = vld [vmem:[%s649 + $0x130] sm:$0xff]
        %v3122 = vld [vmem:[%s649 + $0x138] sm:$0xff]
        %v3123 = vld [vmem:[%s649 + $0x140] sm:$0xff]
        %v3124 = vld [vmem:[%s649 + $0x148] sm:$0xff]
        %v3125 = vld [vmem:[%s649 + $0x150] sm:$0xff]
        %v3126 = vld [vmem:[%s649 + $0x158] sm:$0xff]
        %v3127 = vld [vmem:[%s649 + $0x160] sm:$0xff]
        %v3128 = vld [vmem:[%s649 + $0x168] sm:$0xff]
        %v3129 = vld [vmem:[%s649 + $0x170] sm:$0xff]
        %v3130 = vld [vmem:[%s649 + $0x178] sm:$0xff]
        %v3131 = vld [vmem:[%s649 + $0x180] sm:$0xff]
        %v3132 = vld [vmem:[%s649 + $0x188] sm:$0xff]
        %v3133 = vld [vmem:[%s649 + $0x190] sm:$0xff]
        %v3134 = vld [vmem:[%s649 + $0x198] sm:$0xff]
        %v3135 = vld [vmem:[%s649 + $0x1a0] sm:$0xff]
        %v3136 = vld [vmem:[%s649 + $0x1a8] sm:$0xff]
        %v3137 = vld [vmem:[%s649 + $0x1b0] sm:$0xff]
        %v3138 = vld [vmem:[%s649 + $0x1b8] sm:$0xff]
        %v3139 = vld [vmem:[%s649 + $0x1c0] sm:$0xff]
        %v3140 = vld [vmem:[%s649 + $0x1c8] sm:$0xff]
        %v3141 = vld [vmem:[%s649 + $0x1d0] sm:$0xff]
        %v3142 = vld [vmem:[%s649 + $0x1d8] sm:$0xff]
        %v3143 = vld [vmem:[%s649 + $0x1e0] sm:$0xff]
        %v3144 = vld [vmem:[%s649 + $0x1e8] sm:$0xff]
        %v3145 = vld [vmem:[%s649 + $0x1f0] sm:$0xff]
        %v3146 = vld [vmem:[%s649 + $0x1f8] sm:$0xff]
        %v3147 = vld [vmem:[%s649 + $0x200] sm:$0xff]
        %v3148 = vld [vmem:[%s649 + $0x208] sm:$0xff]
        %v3149 = vld [vmem:[%s649 + $0x210] sm:$0xff]
        %v3150 = vld [vmem:[%s649 + $0x218] sm:$0xff]
        %v3151 = vld [vmem:[%s649 + $0x220] sm:$0xff]
        %v3152 = vld [vmem:[%s649 + $0x228] sm:$0xff]
        %v3153 = vld [vmem:[%s649 + $0x230] sm:$0xff]
        %v3154 = vld [vmem:[%s649 + $0x238] sm:$0xff]
        %v3155 = vld [vmem:[%s649 + $0x240] sm:$0xff]
        %v3156 = vld [vmem:[%s649 + $0x248] sm:$0xff]
        %v3157 = vld [vmem:[%s649 + $0x250] sm:$0xff]
        %v3158 = vld [vmem:[%s649 + $0x258] sm:$0xff]
        %v3159 = vld [vmem:[%s649 + $0x260] sm:$0xff]
        %v3160 = vld [vmem:[%s649 + $0x268] sm:$0xff]
        %v3161 = vld [vmem:[%s649 + $0x270] sm:$0xff]
        %v3162 = vld [vmem:[%s649 + $0x278] sm:$0xff]
        %v3163 = vld [vmem:[%s649 + $0x280] sm:$0xff]
        %v3164 = vld [vmem:[%s649 + $0x288] sm:$0xff]
        %v3165 = vld [vmem:[%s649 + $0x290] sm:$0xff]
        %v3166 = vld [vmem:[%s649 + $0x298] sm:$0xff]
        %v3167 = vld [vmem:[%s649 + $0x2a0] sm:$0xff]
        %v3168 = vld [vmem:[%s649 + $0x2a8] sm:$0xff]
        %v3169 = vld [vmem:[%s649 + $0x2b0] sm:$0xff]
        %v3170 = vld [vmem:[%s649 + $0x2b8] sm:$0xff]
        %v3171 = vld [vmem:[%s649 + $0x2c0] sm:$0xff]
        %v3172 = vld [vmem:[%s649 + $0x2c8] sm:$0xff]
        %v3173 = vld [vmem:[%s649 + $0x2d0] sm:$0xff]
        %v3174 = vld [vmem:[%s649 + $0x2d8] sm:$0xff]
        %v3175 = vld [vmem:[%s649 + $0x2e0] sm:$0xff]
        %v3176 = vld [vmem:[%s649 + $0x2e8] sm:$0xff]
        %v3177 = vld [vmem:[%s649 + $0x2f0] sm:$0xff]
        %v3178 = vld [vmem:[%s649 + $0x2f8] sm:$0xff]
        %v3179 = vld [vmem:[%s649 + $0x300] sm:$0xff]
        %v3180 = vld [vmem:[%s649 + $0x308] sm:$0xff]
        %v3181 = vld [vmem:[%s649 + $0x310] sm:$0xff]
        %v3182 = vld [vmem:[%s649 + $0x318] sm:$0xff]
        %v3183 = vld [vmem:[%s649 + $0x320] sm:$0xff]
        %v3184 = vld [vmem:[%s649 + $0x328] sm:$0xff]
        %v3185 = vld [vmem:[%s649 + $0x330] sm:$0xff]
        %v3186 = vld [vmem:[%s649 + $0x338] sm:$0xff]
        %v3187 = vld [vmem:[%s649 + $0x340] sm:$0xff]
        %v3188 = vld [vmem:[%s649 + $0x348] sm:$0xff]
        %v3189 = vld [vmem:[%s649 + $0x350] sm:$0xff]
        %v3190 = vld [vmem:[%s649 + $0x358] sm:$0xff]
        %v3191 = vld [vmem:[%s649 + $0x360] sm:$0xff]
        %v3192 = vld [vmem:[%s649 + $0x368] sm:$0xff]
        %v3193 = vld [vmem:[%s649 + $0x370] sm:$0xff]
        %v3194 = vld [vmem:[%s649 + $0x378] sm:$0xff]
        %v3195 = vld [vmem:[%s649 + $0x380] sm:$0xff]
        %v3196 = vld [vmem:[%s649 + $0x388] sm:$0xff]
        %v3197 = vld [vmem:[%s649 + $0x390] sm:$0xff]
        %v3198 = vld [vmem:[%s649 + $0x398] sm:$0xff]
        %v3199 = vld [vmem:[%s649 + $0x3a0] sm:$0xff]
        %v3200 = vld [vmem:[%s649 + $0x3a8] sm:$0xff]
        %v3201 = vld [vmem:[%s649 + $0x3b0] sm:$0xff]
        %v3202 = vld [vmem:[%s649 + $0x3b8] sm:$0xff]
        %v3203 = vld [vmem:[%s649 + $0x3c0] sm:$0xff]
        %v3204 = vld [vmem:[%s649 + $0x3c8] sm:$0xff]
        %v3205 = vld [vmem:[%s649 + $0x3d0] sm:$0xff]
        %v3206 = vld [vmem:[%s649 + $0x3d8] sm:$0xff]
        %v3207 = vld [vmem:[%s649 + $0x3e0] sm:$0xff]
        %v3208 = vld [vmem:[%s649 + $0x3e8] sm:$0xff]
        %v3209 = vld [vmem:[%s649 + $0x3f0] sm:$0xff]
        %v3210 = vld [vmem:[%s649 + $0x3f8] sm:$0xff]
        %v3211 = vld [vmem:[%s783] sm:$0xff]
        %v3213 = vlaneseq
        %v3214 = vshrl.u32 %v3213, 7
        %v3215 = vsub.s32 0, %v3214
        %v3216 = vrot.slane %v3211, %v3215
        %v3217 = vlaneseq
        %v3218 = vshrl.u32 %v3217, 7
        %v3219 = vsub.s32 1, %v3218
        %v3220 = vrot.slane %v3211, %v3219
        %v3221 = vlaneseq
        %v3222 = vshrl.u32 %v3221, 7
        %v3223 = vsub.s32 2, %v3222
        %v3224 = vrot.slane %v3211, %v3223
        %v3225 = vlaneseq
        %v3226 = vshrl.u32 %v3225, 7
        %v3227 = vsub.s32 3, %v3226
        %v3228 = vrot.slane %v3211, %v3227
        %v3229 = vlaneseq
        %v3230 = vshrl.u32 %v3229, 7
        %v3231 = vsub.s32 4, %v3230
        %v3232 = vrot.slane %v3211, %v3231
        %v3233 = vlaneseq
        %v3234 = vshrl.u32 %v3233, 7
        %v3235 = vsub.s32 5, %v3234
        %v3236 = vrot.slane %v3211, %v3235
        %v3237 = vlaneseq
        %v3238 = vshrl.u32 %v3237, 7
        %v3239 = vsub.s32 6, %v3238
        %v3240 = vrot.slane %v3211, %v3239
        %v3241 = vlaneseq
        %v3242 = vshrl.u32 %v3241, 7
        %v3243 = vsub.s32 7, %v3242
        %v3244 = vrot.slane %v3211, %v3243
        %v3381 = vunpack.c.l.b16 %v3083
        %v3382 = vunpack.c.h.b16 %v3083
        %v3383 = vunpack.c.l.b16 %v3084
        %v3384 = vunpack.c.h.b16 %v3084
        %v3385 = vunpack.c.l.b16 %v3085
        %v3386 = vunpack.c.h.b16 %v3085
        %v3387 = vunpack.c.l.b16 %v3086
        %v3388 = vunpack.c.h.b16 %v3086
        %v3389 = vunpack.c.l.b16 %v3087
        %v3390 = vunpack.c.h.b16 %v3087
        %v3391 = vunpack.c.l.b16 %v3088
        %v3392 = vunpack.c.h.b16 %v3088
        %v3393 = vunpack.c.l.b16 %v3089
        %v3394 = vunpack.c.h.b16 %v3089
        %v3395 = vunpack.c.l.b16 %v3090
        %v3396 = vunpack.c.h.b16 %v3090
        %v3397 = vunpack.c.l.b16 %v3091
        %v3398 = vunpack.c.h.b16 %v3091
        %v3399 = vunpack.c.l.b16 %v3092
        %v3400 = vunpack.c.h.b16 %v3092
        %v3401 = vunpack.c.l.b16 %v3093
        %v3402 = vunpack.c.h.b16 %v3093
        %v3403 = vunpack.c.l.b16 %v3094
        %v3404 = vunpack.c.h.b16 %v3094
        %v3405 = vunpack.c.l.b16 %v3095
        %v3406 = vunpack.c.h.b16 %v3095
        %v3407 = vunpack.c.l.b16 %v3096
        %v3408 = vunpack.c.h.b16 %v3096
        %v3409 = vunpack.c.l.b16 %v3097
        %v3410 = vunpack.c.h.b16 %v3097
        %v3411 = vunpack.c.l.b16 %v3098
        %v3412 = vunpack.c.h.b16 %v3098
        %v3413 = vunpack.c.l.b16 %v3099
        %v3414 = vunpack.c.h.b16 %v3099
        %v3415 = vunpack.c.l.b16 %v3100
        %v3416 = vunpack.c.h.b16 %v3100
        %v3417 = vunpack.c.l.b16 %v3101
        %v3418 = vunpack.c.h.b16 %v3101
        %v3419 = vunpack.c.l.b16 %v3102
        %v3420 = vunpack.c.h.b16 %v3102
        %v3421 = vunpack.c.l.b16 %v3103
        %v3422 = vunpack.c.h.b16 %v3103
        %v3423 = vunpack.c.l.b16 %v3104
        %v3424 = vunpack.c.h.b16 %v3104
        %v3425 = vunpack.c.l.b16 %v3105
        %v3426 = vunpack.c.h.b16 %v3105
        %v3427 = vunpack.c.l.b16 %v3106
        %v3428 = vunpack.c.h.b16 %v3106
        %v3429 = vunpack.c.l.b16 %v3107
        %v3430 = vunpack.c.h.b16 %v3107
        %v3431 = vunpack.c.l.b16 %v3108
        %v3432 = vunpack.c.h.b16 %v3108
        %v3433 = vunpack.c.l.b16 %v3109
        %v3434 = vunpack.c.h.b16 %v3109
        %v3435 = vunpack.c.l.b16 %v3110
        %v3436 = vunpack.c.h.b16 %v3110
        %v3437 = vunpack.c.l.b16 %v3111
        %v3438 = vunpack.c.h.b16 %v3111
        %v3439 = vunpack.c.l.b16 %v3112
        %v3440 = vunpack.c.h.b16 %v3112
        %v3441 = vunpack.c.l.b16 %v3113
        %v3442 = vunpack.c.h.b16 %v3113
        %v3443 = vunpack.c.l.b16 %v3114
        %v3444 = vunpack.c.h.b16 %v3114
        %v3445 = vunpack.c.l.b16 %v3115
        %v3446 = vunpack.c.h.b16 %v3115
        %v3447 = vunpack.c.l.b16 %v3116
        %v3448 = vunpack.c.h.b16 %v3116
        %v3449 = vunpack.c.l.b16 %v3117
        %v3450 = vunpack.c.h.b16 %v3117
        %v3451 = vunpack.c.l.b16 %v3118
        %v3452 = vunpack.c.h.b16 %v3118
        %v3453 = vunpack.c.l.b16 %v3119
        %v3454 = vunpack.c.h.b16 %v3119
        %v3455 = vunpack.c.l.b16 %v3120
        %v3456 = vunpack.c.h.b16 %v3120
        %v3457 = vunpack.c.l.b16 %v3121
        %v3458 = vunpack.c.h.b16 %v3121
        %v3459 = vunpack.c.l.b16 %v3122
        %v3460 = vunpack.c.h.b16 %v3122
        %v3461 = vunpack.c.l.b16 %v3123
        %v3462 = vunpack.c.h.b16 %v3123
        %v3463 = vunpack.c.l.b16 %v3124
        %v3464 = vunpack.c.h.b16 %v3124
        %v3465 = vunpack.c.l.b16 %v3125
        %v3466 = vunpack.c.h.b16 %v3125
        %v3467 = vunpack.c.l.b16 %v3126
        %v3468 = vunpack.c.h.b16 %v3126
        %v3469 = vunpack.c.l.b16 %v3127
        %v3470 = vunpack.c.h.b16 %v3127
        %v3471 = vunpack.c.l.b16 %v3128
        %v3472 = vunpack.c.h.b16 %v3128
        %v3473 = vunpack.c.l.b16 %v3129
        %v3474 = vunpack.c.h.b16 %v3129
        %v3475 = vunpack.c.l.b16 %v3130
        %v3476 = vunpack.c.h.b16 %v3130
        %v3477 = vunpack.c.l.b16 %v3131
        %v3478 = vunpack.c.h.b16 %v3131
        %v3479 = vunpack.c.l.b16 %v3132
        %v3480 = vunpack.c.h.b16 %v3132
        %v3481 = vunpack.c.l.b16 %v3133
        %v3482 = vunpack.c.h.b16 %v3133
        %v3483 = vunpack.c.l.b16 %v3134
        %v3484 = vunpack.c.h.b16 %v3134
        %v3485 = vunpack.c.l.b16 %v3135
        %v3486 = vunpack.c.h.b16 %v3135
        %v3487 = vunpack.c.l.b16 %v3136
        %v3488 = vunpack.c.h.b16 %v3136
        %v3489 = vunpack.c.l.b16 %v3137
        %v3490 = vunpack.c.h.b16 %v3137
        %v3491 = vunpack.c.l.b16 %v3138
        %v3492 = vunpack.c.h.b16 %v3138
        %v3493 = vunpack.c.l.b16 %v3139
        %v3494 = vunpack.c.h.b16 %v3139
        %v3495 = vunpack.c.l.b16 %v3140
        %v3496 = vunpack.c.h.b16 %v3140
        %v3497 = vunpack.c.l.b16 %v3141
        %v3498 = vunpack.c.h.b16 %v3141
        %v3499 = vunpack.c.l.b16 %v3142
        %v3500 = vunpack.c.h.b16 %v3142
        %v3501 = vunpack.c.l.b16 %v3143
        %v3502 = vunpack.c.h.b16 %v3143
        %v3503 = vunpack.c.l.b16 %v3144
        %v3504 = vunpack.c.h.b16 %v3144
        %v3505 = vunpack.c.l.b16 %v3145
        %v3506 = vunpack.c.h.b16 %v3145
        %v3507 = vunpack.c.l.b16 %v3146
        %v3508 = vunpack.c.h.b16 %v3146
        %v3509 = vunpack.c.l.b16 %v3147
        %v3510 = vunpack.c.h.b16 %v3147
        %v3511 = vunpack.c.l.b16 %v3148
        %v3512 = vunpack.c.h.b16 %v3148
        %v3513 = vunpack.c.l.b16 %v3149
        %v3514 = vunpack.c.h.b16 %v3149
        %v3515 = vunpack.c.l.b16 %v3150
        %v3516 = vunpack.c.h.b16 %v3150
        %v3517 = vunpack.c.l.b16 %v3151
        %v3518 = vunpack.c.h.b16 %v3151
        %v3519 = vunpack.c.l.b16 %v3152
        %v3520 = vunpack.c.h.b16 %v3152
        %v3521 = vunpack.c.l.b16 %v3153
        %v3522 = vunpack.c.h.b16 %v3153
        %v3523 = vunpack.c.l.b16 %v3154
        %v3524 = vunpack.c.h.b16 %v3154
        %v3525 = vunpack.c.l.b16 %v3155
        %v3526 = vunpack.c.h.b16 %v3155
        %v3527 = vunpack.c.l.b16 %v3156
        %v3528 = vunpack.c.h.b16 %v3156
        %v3529 = vunpack.c.l.b16 %v3157
        %v3530 = vunpack.c.h.b16 %v3157
        %v3531 = vunpack.c.l.b16 %v3158
        %v3532 = vunpack.c.h.b16 %v3158
        %v3533 = vunpack.c.l.b16 %v3159
        %v3534 = vunpack.c.h.b16 %v3159
        %v3535 = vunpack.c.l.b16 %v3160
        %v3536 = vunpack.c.h.b16 %v3160
        %v3537 = vunpack.c.l.b16 %v3161
        %v3538 = vunpack.c.h.b16 %v3161
        %v3539 = vunpack.c.l.b16 %v3162
        %v3540 = vunpack.c.h.b16 %v3162
        %v3541 = vunpack.c.l.b16 %v3163
        %v3542 = vunpack.c.h.b16 %v3163
        %v3543 = vunpack.c.l.b16 %v3164
        %v3544 = vunpack.c.h.b16 %v3164
        %v3545 = vunpack.c.l.b16 %v3165
        %v3546 = vunpack.c.h.b16 %v3165
        %v3547 = vunpack.c.l.b16 %v3166
        %v3548 = vunpack.c.h.b16 %v3166
        %v3549 = vunpack.c.l.b16 %v3167
        %v3550 = vunpack.c.h.b16 %v3167
        %v3551 = vunpack.c.l.b16 %v3168
        %v3552 = vunpack.c.h.b16 %v3168
        %v3553 = vunpack.c.l.b16 %v3169
        %v3554 = vunpack.c.h.b16 %v3169
        %v3555 = vunpack.c.l.b16 %v3170
        %v3556 = vunpack.c.h.b16 %v3170
        %v3557 = vunpack.c.l.b16 %v3171
        %v3558 = vunpack.c.h.b16 %v3171
        %v3559 = vunpack.c.l.b16 %v3172
        %v3560 = vunpack.c.h.b16 %v3172
        %v3561 = vunpack.c.l.b16 %v3173
        %v3562 = vunpack.c.h.b16 %v3173
        %v3563 = vunpack.c.l.b16 %v3174
        %v3564 = vunpack.c.h.b16 %v3174
        %v3565 = vunpack.c.l.b16 %v3175
        %v3566 = vunpack.c.h.b16 %v3175
        %v3567 = vunpack.c.l.b16 %v3176
        %v3568 = vunpack.c.h.b16 %v3176
        %v3569 = vunpack.c.l.b16 %v3177
        %v3570 = vunpack.c.h.b16 %v3177
        %v3571 = vunpack.c.l.b16 %v3178
        %v3572 = vunpack.c.h.b16 %v3178
        %v3573 = vunpack.c.l.b16 %v3179
        %v3574 = vunpack.c.h.b16 %v3179
        %v3575 = vunpack.c.l.b16 %v3180
        %v3576 = vunpack.c.h.b16 %v3180
        %v3577 = vunpack.c.l.b16 %v3181
        %v3578 = vunpack.c.h.b16 %v3181
        %v3579 = vunpack.c.l.b16 %v3182
        %v3580 = vunpack.c.h.b16 %v3182
        %v3581 = vunpack.c.l.b16 %v3183
        %v3582 = vunpack.c.h.b16 %v3183
        %v3583 = vunpack.c.l.b16 %v3184
        %v3584 = vunpack.c.h.b16 %v3184
        %v3585 = vunpack.c.l.b16 %v3185
        %v3586 = vunpack.c.h.b16 %v3185
        %v3587 = vunpack.c.l.b16 %v3186
        %v3588 = vunpack.c.h.b16 %v3186
        %v3589 = vunpack.c.l.b16 %v3187
        %v3590 = vunpack.c.h.b16 %v3187
        %v3591 = vunpack.c.l.b16 %v3188
        %v3592 = vunpack.c.h.b16 %v3188
        %v3593 = vunpack.c.l.b16 %v3189
        %v3594 = vunpack.c.h.b16 %v3189
        %v3595 = vunpack.c.l.b16 %v3190
        %v3596 = vunpack.c.h.b16 %v3190
        %v3597 = vunpack.c.l.b16 %v3191
        %v3598 = vunpack.c.h.b16 %v3191
        %v3599 = vunpack.c.l.b16 %v3192
        %v3600 = vunpack.c.h.b16 %v3192
        %v3601 = vunpack.c.l.b16 %v3193
        %v3602 = vunpack.c.h.b16 %v3193
        %v3603 = vunpack.c.l.b16 %v3194
        %v3604 = vunpack.c.h.b16 %v3194
        %v3605 = vunpack.c.l.b16 %v3195
        %v3606 = vunpack.c.h.b16 %v3195
        %v3607 = vunpack.c.l.b16 %v3196
        %v3608 = vunpack.c.h.b16 %v3196
        %v3609 = vunpack.c.l.b16 %v3197
        %v3610 = vunpack.c.h.b16 %v3197
        %v3611 = vunpack.c.l.b16 %v3198
        %v3612 = vunpack.c.h.b16 %v3198
        %v3613 = vunpack.c.l.b16 %v3199
        %v3614 = vunpack.c.h.b16 %v3199
        %v3615 = vunpack.c.l.b16 %v3200
        %v3616 = vunpack.c.h.b16 %v3200
        %v3617 = vunpack.c.l.b16 %v3201
        %v3618 = vunpack.c.h.b16 %v3201
        %v3619 = vunpack.c.l.b16 %v3202
        %v3620 = vunpack.c.h.b16 %v3202
        %v3621 = vunpack.c.l.b16 %v3203
        %v3622 = vunpack.c.h.b16 %v3203
        %v3623 = vunpack.c.l.b16 %v3204
        %v3624 = vunpack.c.h.b16 %v3204
        %v3625 = vunpack.c.l.b16 %v3205
        %v3626 = vunpack.c.h.b16 %v3205
        %v3627 = vunpack.c.l.b16 %v3206
        %v3628 = vunpack.c.h.b16 %v3206
        %v3629 = vunpack.c.l.b16 %v3207
        %v3630 = vunpack.c.h.b16 %v3207
        %v3631 = vunpack.c.l.b16 %v3208
        %v3632 = vunpack.c.h.b16 %v3208
        %v3633 = vunpack.c.l.b16 %v3209
        %v3634 = vunpack.c.h.b16 %v3209
        %v3635 = vunpack.c.l.b16 %v3210
        %v3636 = vunpack.c.h.b16 %v3210
        %v3637 = vpack.c.b16 %v3389, %v3381
        %v3638 = vpack.c.b16 %v3390, %v3382
        %v3639 = vpack.c.b16 %v3391, %v3383
        %v3640 = vpack.c.b16 %v3392, %v3384
        %v3641 = vpack.c.b16 %v3393, %v3385
        %v3642 = vpack.c.b16 %v3394, %v3386
        %v3643 = vpack.c.b16 %v3395, %v3387
        %v3644 = vpack.c.b16 %v3396, %v3388
        %v3645 = vpack.c.b16 %v3405, %v3397
        %v3646 = vpack.c.b16 %v3406, %v3398
        %v3647 = vpack.c.b16 %v3407, %v3399
        %v3648 = vpack.c.b16 %v3408, %v3400
        %v3649 = vpack.c.b16 %v3409, %v3401
        %v3650 = vpack.c.b16 %v3410, %v3402
        %v3651 = vpack.c.b16 %v3411, %v3403
        %v3652 = vpack.c.b16 %v3412, %v3404
        %v3653 = vpack.c.b16 %v3421, %v3413
        %v3654 = vpack.c.b16 %v3422, %v3414
        %v3655 = vpack.c.b16 %v3423, %v3415
        %v3656 = vpack.c.b16 %v3424, %v3416
        %v3657 = vpack.c.b16 %v3425, %v3417
        %v3658 = vpack.c.b16 %v3426, %v3418
        %v3659 = vpack.c.b16 %v3427, %v3419
        %v3660 = vpack.c.b16 %v3428, %v3420
        %v3661 = vpack.c.b16 %v3437, %v3429
        %v3662 = vpack.c.b16 %v3438, %v3430
        %v3663 = vpack.c.b16 %v3439, %v3431
        %v3664 = vpack.c.b16 %v3440, %v3432
        %v3665 = vpack.c.b16 %v3441, %v3433
        %v3666 = vpack.c.b16 %v3442, %v3434
        %v3667 = vpack.c.b16 %v3443, %v3435
        %v3668 = vpack.c.b16 %v3444, %v3436
        %v3669 = vpack.c.b16 %v3453, %v3445
        %v3670 = vpack.c.b16 %v3454, %v3446
        %v3671 = vpack.c.b16 %v3455, %v3447
        %v3672 = vpack.c.b16 %v3456, %v3448
        %v3673 = vpack.c.b16 %v3457, %v3449
        %v3674 = vpack.c.b16 %v3458, %v3450
        %v3675 = vpack.c.b16 %v3459, %v3451
        %v3676 = vpack.c.b16 %v3460, %v3452
        %v3677 = vpack.c.b16 %v3469, %v3461
        %v3678 = vpack.c.b16 %v3470, %v3462
        %v3679 = vpack.c.b16 %v3471, %v3463
        %v3680 = vpack.c.b16 %v3472, %v3464
        %v3681 = vpack.c.b16 %v3473, %v3465
        %v3682 = vpack.c.b16 %v3474, %v3466
        %v3683 = vpack.c.b16 %v3475, %v3467
        %v3684 = vpack.c.b16 %v3476, %v3468
        %v3685 = vpack.c.b16 %v3485, %v3477
        %v3686 = vpack.c.b16 %v3486, %v3478
        %v3687 = vpack.c.b16 %v3487, %v3479
        %v3688 = vpack.c.b16 %v3488, %v3480
        %v3689 = vpack.c.b16 %v3489, %v3481
        %v3690 = vpack.c.b16 %v3490, %v3482
        %v3691 = vpack.c.b16 %v3491, %v3483
        %v3692 = vpack.c.b16 %v3492, %v3484
        %v3693 = vpack.c.b16 %v3501, %v3493
        %v3694 = vpack.c.b16 %v3502, %v3494
        %v3695 = vpack.c.b16 %v3503, %v3495
        %v3696 = vpack.c.b16 %v3504, %v3496
        %v3697 = vpack.c.b16 %v3505, %v3497
        %v3698 = vpack.c.b16 %v3506, %v3498
        %v3699 = vpack.c.b16 %v3507, %v3499
        %v3700 = vpack.c.b16 %v3508, %v3500
        %v3701 = vpack.c.b16 %v3517, %v3509
        %v3702 = vpack.c.b16 %v3518, %v3510
        %v3703 = vpack.c.b16 %v3519, %v3511
        %v3704 = vpack.c.b16 %v3520, %v3512
        %v3705 = vpack.c.b16 %v3521, %v3513
        %v3706 = vpack.c.b16 %v3522, %v3514
        %v3707 = vpack.c.b16 %v3523, %v3515
        %v3708 = vpack.c.b16 %v3524, %v3516
        %v3709 = vpack.c.b16 %v3533, %v3525
        %v3710 = vpack.c.b16 %v3534, %v3526
        %v3711 = vpack.c.b16 %v3535, %v3527
        %v3712 = vpack.c.b16 %v3536, %v3528
        %v3713 = vpack.c.b16 %v3537, %v3529
        %v3714 = vpack.c.b16 %v3538, %v3530
        %v3715 = vpack.c.b16 %v3539, %v3531
        %v3716 = vpack.c.b16 %v3540, %v3532
        %v3717 = vpack.c.b16 %v3549, %v3541
        %v3718 = vpack.c.b16 %v3550, %v3542
        %v3719 = vpack.c.b16 %v3551, %v3543
        %v3720 = vpack.c.b16 %v3552, %v3544
        %v3721 = vpack.c.b16 %v3553, %v3545
        %v3722 = vpack.c.b16 %v3554, %v3546
        %v3723 = vpack.c.b16 %v3555, %v3547
        %v3724 = vpack.c.b16 %v3556, %v3548
        %v3725 = vpack.c.b16 %v3565, %v3557
        %v3726 = vpack.c.b16 %v3566, %v3558
        %v3727 = vpack.c.b16 %v3567, %v3559
        %v3728 = vpack.c.b16 %v3568, %v3560
        %v3729 = vpack.c.b16 %v3569, %v3561
        %v3730 = vpack.c.b16 %v3570, %v3562
        %v3731 = vpack.c.b16 %v3571, %v3563
        %v3732 = vpack.c.b16 %v3572, %v3564
        %v3733 = vpack.c.b16 %v3581, %v3573
        %v3734 = vpack.c.b16 %v3582, %v3574
        %v3735 = vpack.c.b16 %v3583, %v3575
        %v3736 = vpack.c.b16 %v3584, %v3576
        %v3737 = vpack.c.b16 %v3585, %v3577
        %v3738 = vpack.c.b16 %v3586, %v3578
        %v3739 = vpack.c.b16 %v3587, %v3579
        %v3740 = vpack.c.b16 %v3588, %v3580
        %v3741 = vpack.c.b16 %v3597, %v3589
        %v3742 = vpack.c.b16 %v3598, %v3590
        %v3743 = vpack.c.b16 %v3599, %v3591
        %v3744 = vpack.c.b16 %v3600, %v3592
        %v3745 = vpack.c.b16 %v3601, %v3593
        %v3746 = vpack.c.b16 %v3602, %v3594
        %v3747 = vpack.c.b16 %v3603, %v3595
        %v3748 = vpack.c.b16 %v3604, %v3596
        %v3749 = vpack.c.b16 %v3613, %v3605
        %v3750 = vpack.c.b16 %v3614, %v3606
        %v3751 = vpack.c.b16 %v3615, %v3607
        %v3752 = vpack.c.b16 %v3616, %v3608
        %v3753 = vpack.c.b16 %v3617, %v3609
        %v3754 = vpack.c.b16 %v3618, %v3610
        %v3755 = vpack.c.b16 %v3619, %v3611
        %v3756 = vpack.c.b16 %v3620, %v3612
        %v3757 = vpack.c.b16 %v3629, %v3621
        %v3758 = vpack.c.b16 %v3630, %v3622
        %v3759 = vpack.c.b16 %v3631, %v3623
        %v3760 = vpack.c.b16 %v3632, %v3624
        %v3761 = vpack.c.b16 %v3633, %v3625
        %v3762 = vpack.c.b16 %v3634, %v3626
        %v3763 = vpack.c.b16 %v3635, %v3627
        %v3764 = vpack.c.b16 %v3636, %v3628
        %3893 = vmatprep.subr.bf16.mxu0 %v3638
        %3894 = vmatpush1.bf16.msra.mxu0 %v3637
        %3895 = vmatprep.subr.bf16.mxu0 %v3646
        %3896 = vmatpush1.bf16.msra.mxu0 %v3645
        %3897 = vmatprep.subr.bf16.mxu0 %v3654
        %3898 = vmatpush1.bf16.msra.mxu0 %v3653
        %3899 = vmatprep.subr.bf16.mxu0 %v3662
        %3900 = vmatpush1.bf16.msra.mxu0 %v3661
        %3901 = vmatprep.subr.bf16.mxu0 %v3670
        %3902 = vmatpush1.bf16.msra.mxu0 %v3669
        %3903 = vmatprep.subr.bf16.mxu0 %v3678
        %3904 = vmatpush1.bf16.msra.mxu0 %v3677
        %3905 = vmatprep.subr.bf16.mxu0 %v3686
        %3906 = vmatpush1.bf16.msra.mxu0 %v3685
        %3907 = vmatprep.subr.bf16.mxu0 %v3694
        %3908 = vmatpush1.bf16.msra.mxu0 %v3693
        %3909 = vmatprep.subr.bf16.mxu0 %v3702
        %3910 = vmatpush1.bf16.msra.mxu0 %v3701
        %3911 = vmatprep.subr.bf16.mxu0 %v3710
        %3912 = vmatpush1.bf16.msra.mxu0 %v3709
        %3913 = vmatprep.subr.bf16.mxu0 %v3718
        %3914 = vmatpush1.bf16.msra.mxu0 %v3717
        %3915 = vmatprep.subr.bf16.mxu0 %v3726
        %3916 = vmatpush1.bf16.msra.mxu0 %v3725
        %3917 = vmatprep.subr.bf16.mxu0 %v3734
        %3918 = vmatpush1.bf16.msra.mxu0 %v3733
        %3919 = vmatprep.subr.bf16.mxu0 %v3742
        %3920 = vmatpush1.bf16.msra.mxu0 %v3741
        %3921 = vmatprep.subr.bf16.mxu0 %v3750
        %3922 = vmatpush1.bf16.msra.mxu0 %v3749
        %3923 = vmatprep.subr.bf16.mxu0 %v3758
        %3924 = vmatpush1.bf16.msra.mxu0 %v3757
        %3925 = vmatprep.mubr.bf16.mxu0 %v3082
        %3926 = vmatmul.mubr.bf16.gmra.mrb[0].mxu0 %v3081
        %v3927 = vpop.f32.mrb[0].mxu0
        %v3928 = vadd.f32 %v3216, %v3927
        %v3929 = vpop.f32.mrb[0].mxu0
        %v3930 = vadd.f32 %v3220, %v3929
        %v3931 = vpop.f32.mrb[0].mxu0
        %v3932 = vadd.f32 %v3216, %v3931
        %v3933 = vpop.f32.mrb[0].mxu0
        %v3934 = vadd.f32 %v3220, %v3933
        %3935 = vdwg.mxu0
        %3936 = vmatprep.subr.bf16.mxu0 %v3640
        %3937 = vmatpush1.bf16.msra.mxu0 %v3639
        %3938 = vmatprep.subr.bf16.mxu0 %v3648
        %3939 = vmatpush1.bf16.msra.mxu0 %v3647
        %3940 = vmatprep.subr.bf16.mxu0 %v3656
        %3941 = vmatpush1.bf16.msra.mxu0 %v3655
        %3942 = vmatprep.subr.bf16.mxu0 %v3664
        %3943 = vmatpush1.bf16.msra.mxu0 %v3663
        %3944 = vmatprep.subr.bf16.mxu0 %v3672
        %3945 = vmatpush1.bf16.msra.mxu0 %v3671
        %3946 = vmatprep.subr.bf16.mxu0 %v3680
        %3947 = vmatpush1.bf16.msra.mxu0 %v3679
        %3948 = vmatprep.subr.bf16.mxu0 %v3688
        %3949 = vmatpush1.bf16.msra.mxu0 %v3687
        %3950 = vmatprep.subr.bf16.mxu0 %v3696
        %3951 = vmatpush1.bf16.msra.mxu0 %v3695
        %3952 = vmatprep.subr.bf16.mxu0 %v3704
        %3953 = vmatpush1.bf16.msra.mxu0 %v3703
        %3954 = vmatprep.subr.bf16.mxu0 %v3712
        %3955 = vmatpush1.bf16.msra.mxu0 %v3711
        %3956 = vmatprep.subr.bf16.mxu0 %v3720
        %3957 = vmatpush1.bf16.msra.mxu0 %v3719
        %3958 = vmatprep.subr.bf16.mxu0 %v3728
        %3959 = vmatpush1.bf16.msra.mxu0 %v3727
        %3960 = vmatprep.subr.bf16.mxu0 %v3736
        %3961 = vmatpush1.bf16.msra.mxu0 %v3735
        %3962 = vmatprep.subr.bf16.mxu0 %v3744
        %3963 = vmatpush1.bf16.msra.mxu0 %v3743
        %3964 = vmatprep.subr.bf16.mxu0 %v3752
        %3965 = vmatpush1.bf16.msra.mxu0 %v3751
        %3966 = vmatprep.subr.bf16.mxu0 %v3760
        %3967 = vmatpush1.bf16.msra.mxu0 %v3759
        %3968 = vmatprep.mubr.bf16.mxu0 %v3082
        %3969 = vmatmul.mubr.bf16.gmra.mrb[0].mxu0 %v3081
        %v3970 = vpop.f32.mrb[0].mxu0
        %v3971 = vadd.f32 %v3224, %v3970
        %v3972 = vpop.f32.mrb[0].mxu0
        %v3973 = vadd.f32 %v3228, %v3972
        %v3974 = vpop.f32.mrb[0].mxu0
        %v3975 = vadd.f32 %v3224, %v3974
        %v3976 = vpop.f32.mrb[0].mxu0
        %v3977 = vadd.f32 %v3228, %v3976
        %3978 = vdwg.mxu0
        %3979 = vmatprep.subr.bf16.mxu0 %v3642
        %3980 = vmatpush1.bf16.msra.mxu0 %v3641
        %3981 = vmatprep.subr.bf16.mxu0 %v3650
        %3982 = vmatpush1.bf16.msra.mxu0 %v3649
        %3983 = vmatprep.subr.bf16.mxu0 %v3658
        %3984 = vmatpush1.bf16.msra.mxu0 %v3657
        %3985 = vmatprep.subr.bf16.mxu0 %v3666
        %3986 = vmatpush1.bf16.msra.mxu0 %v3665
        %3987 = vmatprep.subr.bf16.mxu0 %v3674
        %3988 = vmatpush1.bf16.msra.mxu0 %v3673
        %3989 = vmatprep.subr.bf16.mxu0 %v3682
        %3990 = vmatpush1.bf16.msra.mxu0 %v3681
        %3991 = vmatprep.subr.bf16.mxu0 %v3690
        %3992 = vmatpush1.bf16.msra.mxu0 %v3689
        %3993 = vmatprep.subr.bf16.mxu0 %v3698
        %3994 = vmatpush1.bf16.msra.mxu0 %v3697
        %3995 = vmatprep.subr.bf16.mxu0 %v3706
        %3996 = vmatpush1.bf16.msra.mxu0 %v3705
        %3997 = vmatprep.subr.bf16.mxu0 %v3714
        %3998 = vmatpush1.bf16.msra.mxu0 %v3713
        %3999 = vmatprep.subr.bf16.mxu0 %v3722
        %4000 = vmatpush1.bf16.msra.mxu0 %v3721
        %4001 = vmatprep.subr.bf16.mxu0 %v3730
        %4002 = vmatpush1.bf16.msra.mxu0 %v3729
        %4003 = vmatprep.subr.bf16.mxu0 %v3738
        %4004 = vmatpush1.bf16.msra.mxu0 %v3737
        %4005 = vmatprep.subr.bf16.mxu0 %v3746
        %4006 = vmatpush1.bf16.msra.mxu0 %v3745
        %4007 = vmatprep.subr.bf16.mxu0 %v3754
        %4008 = vmatpush1.bf16.msra.mxu0 %v3753
        %4009 = vmatprep.subr.bf16.mxu0 %v3762
        %4010 = vmatpush1.bf16.msra.mxu0 %v3761
        %4011 = vmatprep.mubr.bf16.mxu0 %v3082
        %4012 = vmatmul.mubr.bf16.gmra.mrb[0].mxu0 %v3081
        %v4013 = vpop.f32.mrb[0].mxu0
        %v4014 = vadd.f32 %v3232, %v4013
        %v4015 = vpop.f32.mrb[0].mxu0
        %v4016 = vadd.f32 %v3236, %v4015
        %v4017 = vpop.f32.mrb[0].mxu0
        %v4018 = vadd.f32 %v3232, %v4017
        %v4019 = vpop.f32.mrb[0].mxu0
        %v4020 = vadd.f32 %v3236, %v4019
        %4021 = vdwg.mxu0
        %4022 = vmatprep.subr.bf16.mxu0 %v3644
        %4023 = vmatpush1.bf16.msra.mxu0 %v3643
        %4024 = vmatprep.subr.bf16.mxu0 %v3652
        %4025 = vmatpush1.bf16.msra.mxu0 %v3651
        %4026 = vmatprep.subr.bf16.mxu0 %v3660
        %4027 = vmatpush1.bf16.msra.mxu0 %v3659
        %4028 = vmatprep.subr.bf16.mxu0 %v3668
        %4029 = vmatpush1.bf16.msra.mxu0 %v3667
        %4030 = vmatprep.subr.bf16.mxu0 %v3676
        %4031 = vmatpush1.bf16.msra.mxu0 %v3675
        %4032 = vmatprep.subr.bf16.mxu0 %v3684
        %4033 = vmatpush1.bf16.msra.mxu0 %v3683
        %4034 = vmatprep.subr.bf16.mxu0 %v3692
        %4035 = vmatpush1.bf16.msra.mxu0 %v3691
        %4036 = vmatprep.subr.bf16.mxu0 %v3700
        %4037 = vmatpush1.bf16.msra.mxu0 %v3699
        %4038 = vmatprep.subr.bf16.mxu0 %v3708
        %4039 = vmatpush1.bf16.msra.mxu0 %v3707
        %4040 = vmatprep.subr.bf16.mxu0 %v3716
        %4041 = vmatpush1.bf16.msra.mxu0 %v3715
        %4042 = vmatprep.subr.bf16.mxu0 %v3724
        %4043 = vmatpush1.bf16.msra.mxu0 %v3723
        %4044 = vmatprep.subr.bf16.mxu0 %v3732
        %4045 = vmatpush1.bf16.msra.mxu0 %v3731
        %4046 = vmatprep.subr.bf16.mxu0 %v3740
        %4047 = vmatpush1.bf16.msra.mxu0 %v3739
        %4048 = vmatprep.subr.bf16.mxu0 %v3748
        %4049 = vmatpush1.bf16.msra.mxu0 %v3747
        %4050 = vmatprep.subr.bf16.mxu0 %v3756
        %4051 = vmatpush1.bf16.msra.mxu0 %v3755
        %4052 = vmatprep.subr.bf16.mxu0 %v3764
        %4053 = vmatpush1.bf16.msra.mxu0 %v3763
        %4054 = vmatprep.mubr.bf16.mxu0 %v3082
        %4055 = vmatmul.mubr.bf16.gmra.mrb[0].mxu0 %v3081
        %v4056 = vpop.f32.mrb[0].mxu0
        %v4057 = vadd.f32 %v3240, %v4056
        %v4058 = vpop.f32.mrb[0].mxu0
        %v4059 = vadd.f32 %v3244, %v4058
        %v4060 = vpop.f32.mrb[0].mxu0
        %v4061 = vadd.f32 %v3240, %v4060
        %v4062 = vpop.f32.mrb[0].mxu0
        %v4063 = vadd.f32 %v3244, %v4062
        %4064 = vdwg.mxu0
        %v4065 = vpack.c.bf16 %v3932, %v3928
        %v4066 = vpack.c.bf16 %v3934, %v3930
        %v4067 = vpack.c.bf16 %v3975, %v3971
        %v4068 = vpack.c.bf16 %v3977, %v3973
        %v4069 = vpack.c.bf16 %v4018, %v4014
        %v4070 = vpack.c.bf16 %v4020, %v4016
        %v4071 = vpack.c.bf16 %v4061, %v4057
        %v4072 = vpack.c.bf16 %v4063, %v4059
        %v4073 = vmul.bf16 %v4065, 1056980736
        %v4074 = vmul.bf16 %v4066, 1056980736
        %v4075 = vmul.bf16 %v4067, 1056980736
        %v4076 = vmul.bf16 %v4068, 1056980736
        %v4077 = vmul.bf16 %v4069, 1056980736
        %v4078 = vmul.bf16 %v4070, 1056980736
        %v4079 = vmul.bf16 %v4071, 1056980736
        %v4080 = vmul.bf16 %v4072, 1056980736
        %v4081 = vmul.bf16 %v4065, 1027030327
        %v4082 = vmul.bf16 %v4066, 1027030327
        %v4083 = vmul.bf16 %v4067, 1027030327
        %v4084 = vmul.bf16 %v4068, 1027030327
        %v4085 = vmul.bf16 %v4069, 1027030327
        %v4086 = vmul.bf16 %v4070, 1027030327
        %v4087 = vmul.bf16 %v4071, 1027030327
        %v4088 = vmul.bf16 %v4072, 1027030327
        %v4089 = vmul.bf16 %v4081, %v4065
        %v4090 = vmul.bf16 %v4082, %v4066
        %v4091 = vmul.bf16 %v4083, %v4067
        %v4092 = vmul.bf16 %v4084, %v4068
        %v4093 = vmul.bf16 %v4085, %v4069
        %v4094 = vmul.bf16 %v4086, %v4070
        %v4095 = vmul.bf16 %v4087, %v4071
        %v4096 = vmul.bf16 %v4088, %v4072
        %v4097 = vmul.bf16 %v4089, %v4065
        %v4098 = vmul.bf16 %v4090, %v4066
        %v4099 = vmul.bf16 %v4091, %v4067
        %v4100 = vmul.bf16 %v4092, %v4068
        %v4101 = vmul.bf16 %v4093, %v4069
        %v4102 = vmul.bf16 %v4094, %v4070
        %v4103 = vmul.bf16 %v4095, %v4071
        %v4104 = vmul.bf16 %v4096, %v4072
        %v4105 = vadd.bf16 %v4065, %v4097
        %v4106 = vadd.bf16 %v4066, %v4098
        %v4107 = vadd.bf16 %v4067, %v4099
        %v4108 = vadd.bf16 %v4068, %v4100
        %v4109 = vadd.bf16 %v4069, %v4101
        %v4110 = vadd.bf16 %v4070, %v4102
        %v4111 = vadd.bf16 %v4071, %v4103
        %v4112 = vadd.bf16 %v4072, %v4104
        %v4113 = vmul.bf16 %v4105, 1061961548
        %v4114 = vmul.bf16 %v4106, 1061961548
        %v4115 = vmul.bf16 %v4107, 1061961548
        %v4116 = vmul.bf16 %v4108, 1061961548
        %v4117 = vmul.bf16 %v4109, 1061961548
        %v4118 = vmul.bf16 %v4110, 1061961548
        %v4119 = vmul.bf16 %v4111, 1061961548
        %v4120 = vmul.bf16 %v4112, 1061961548
        %v4121 = vtanh.bf16.pop %v4113
        %v4122 = vtanh.bf16.pop %v4114
        %v4123 = vtanh.bf16.pop %v4115
        %v4124 = vtanh.bf16.pop %v4116
        %v4125 = vtanh.bf16.pop %v4117
        %v4126 = vtanh.bf16.pop %v4118
        %v4127 = vtanh.bf16.pop %v4119
        %v4128 = vtanh.bf16.pop %v4120
        %v4129 = vadd.bf16 %v4121, 1065369472
        %v4130 = vadd.bf16 %v4122, 1065369472
        %v4131 = vadd.bf16 %v4123, 1065369472
        %v4132 = vadd.bf16 %v4124, 1065369472
        %v4133 = vadd.bf16 %v4125, 1065369472
        %v4134 = vadd.bf16 %v4126, 1065369472
        %v4135 = vadd.bf16 %v4127, 1065369472
        %v4136 = vadd.bf16 %v4128, 1065369472
        %v4137 = vmul.bf16 %v4073, %v4129
        %v4138 = vmul.bf16 %v4074, %v4130
        %v4139 = vmul.bf16 %v4075, %v4131
        %v4140 = vmul.bf16 %v4076, %v4132
        %v4141 = vmul.bf16 %v4077, %v4133
        %v4142 = vmul.bf16 %v4078, %v4134
        %v4143 = vmul.bf16 %v4079, %v4135
        %v4144 = vmul.bf16 %v4080, %v4136
        %v4145 = vld [vmem:[%s658] sm:$0xff]
        %v4146 = vld [vmem:[%s658 + $0x8] sm:$0xff]
        %v4147 = vld [vmem:[%s658 + $0x10] sm:$0xff]
        %v4148 = vld [vmem:[%s658 + $0x18] sm:$0xff]
        %v4149 = vld [vmem:[%s658 + $0x20] sm:$0xff]
        %v4150 = vld [vmem:[%s658 + $0x28] sm:$0xff]
        %v4151 = vld [vmem:[%s658 + $0x30] sm:$0xff]
        %v4152 = vld [vmem:[%s658 + $0x38] sm:$0xff]
        %v4153 = vld [vmem:[%s658 + $0x40] sm:$0xff]
        %v4154 = vld [vmem:[%s658 + $0x48] sm:$0xff]
        %v4155 = vld [vmem:[%s658 + $0x50] sm:$0xff]
        %v4156 = vld [vmem:[%s658 + $0x58] sm:$0xff]
        %v4157 = vld [vmem:[%s658 + $0x60] sm:$0xff]
        %v4158 = vld [vmem:[%s658 + $0x68] sm:$0xff]
        %v4159 = vld [vmem:[%s658 + $0x70] sm:$0xff]
        %v4160 = vld [vmem:[%s658 + $0x78] sm:$0xff]
        %v4161 = vld [vmem:[%s658 + $0x80] sm:$0xff]
        %v4162 = vld [vmem:[%s658 + $0x88] sm:$0xff]
        %v4163 = vld [vmem:[%s658 + $0x90] sm:$0xff]
        %v4164 = vld [vmem:[%s658 + $0x98] sm:$0xff]
        %v4165 = vld [vmem:[%s658 + $0xa0] sm:$0xff]
        %v4166 = vld [vmem:[%s658 + $0xa8] sm:$0xff]
        %v4167 = vld [vmem:[%s658 + $0xb0] sm:$0xff]
        %v4168 = vld [vmem:[%s658 + $0xb8] sm:$0xff]
        %v4169 = vld [vmem:[%s658 + $0xc0] sm:$0xff]
        %v4170 = vld [vmem:[%s658 + $0xc8] sm:$0xff]
        %v4171 = vld [vmem:[%s658 + $0xd0] sm:$0xff]
        %v4172 = vld [vmem:[%s658 + $0xd8] sm:$0xff]
        %v4173 = vld [vmem:[%s658 + $0xe0] sm:$0xff]
        %v4174 = vld [vmem:[%s658 + $0xe8] sm:$0xff]
        %v4175 = vld [vmem:[%s658 + $0xf0] sm:$0xff]
        %v4176 = vld [vmem:[%s658 + $0xf8] sm:$0xff]
        %v4177 = vld [vmem:[%s658 + $0x100] sm:$0xff]
        %v4178 = vld [vmem:[%s658 + $0x108] sm:$0xff]
        %v4179 = vld [vmem:[%s658 + $0x110] sm:$0xff]
        %v4180 = vld [vmem:[%s658 + $0x118] sm:$0xff]
        %v4181 = vld [vmem:[%s658 + $0x120] sm:$0xff]
        %v4182 = vld [vmem:[%s658 + $0x128] sm:$0xff]
        %v4183 = vld [vmem:[%s658 + $0x130] sm:$0xff]
        %v4184 = vld [vmem:[%s658 + $0x138] sm:$0xff]
        %v4185 = vld [vmem:[%s658 + $0x140] sm:$0xff]
        %v4186 = vld [vmem:[%s658 + $0x148] sm:$0xff]
        %v4187 = vld [vmem:[%s658 + $0x150] sm:$0xff]
        %v4188 = vld [vmem:[%s658 + $0x158] sm:$0xff]
        %v4189 = vld [vmem:[%s658 + $0x160] sm:$0xff]
        %v4190 = vld [vmem:[%s658 + $0x168] sm:$0xff]
        %v4191 = vld [vmem:[%s658 + $0x170] sm:$0xff]
        %v4192 = vld [vmem:[%s658 + $0x178] sm:$0xff]
        %v4193 = vld [vmem:[%s658 + $0x180] sm:$0xff]
        %v4194 = vld [vmem:[%s658 + $0x188] sm:$0xff]
        %v4195 = vld [vmem:[%s658 + $0x190] sm:$0xff]
        %v4196 = vld [vmem:[%s658 + $0x198] sm:$0xff]
        %v4197 = vld [vmem:[%s658 + $0x1a0] sm:$0xff]
        %v4198 = vld [vmem:[%s658 + $0x1a8] sm:$0xff]
        %v4199 = vld [vmem:[%s658 + $0x1b0] sm:$0xff]
        %v4200 = vld [vmem:[%s658 + $0x1b8] sm:$0xff]
        %v4201 = vld [vmem:[%s658 + $0x1c0] sm:$0xff]
        %v4202 = vld [vmem:[%s658 + $0x1c8] sm:$0xff]
        %v4203 = vld [vmem:[%s658 + $0x1d0] sm:$0xff]
        %v4204 = vld [vmem:[%s658 + $0x1d8] sm:$0xff]
        %v4205 = vld [vmem:[%s658 + $0x1e0] sm:$0xff]
        %v4206 = vld [vmem:[%s658 + $0x1e8] sm:$0xff]
        %v4207 = vld [vmem:[%s658 + $0x1f0] sm:$0xff]
        %v4208 = vld [vmem:[%s658 + $0x1f8] sm:$0xff]
        %v4209 = vld [vmem:[%s658 + $0x200] sm:$0xff]
        %v4210 = vld [vmem:[%s658 + $0x208] sm:$0xff]
        %v4211 = vld [vmem:[%s658 + $0x210] sm:$0xff]
        %v4212 = vld [vmem:[%s658 + $0x218] sm:$0xff]
        %v4213 = vld [vmem:[%s658 + $0x220] sm:$0xff]
        %v4214 = vld [vmem:[%s658 + $0x228] sm:$0xff]
        %v4215 = vld [vmem:[%s658 + $0x230] sm:$0xff]
        %v4216 = vld [vmem:[%s658 + $0x238] sm:$0xff]
        %v4217 = vld [vmem:[%s658 + $0x240] sm:$0xff]
        %v4218 = vld [vmem:[%s658 + $0x248] sm:$0xff]
        %v4219 = vld [vmem:[%s658 + $0x250] sm:$0xff]
        %v4220 = vld [vmem:[%s658 + $0x258] sm:$0xff]
        %v4221 = vld [vmem:[%s658 + $0x260] sm:$0xff]
        %v4222 = vld [vmem:[%s658 + $0x268] sm:$0xff]
        %v4223 = vld [vmem:[%s658 + $0x270] sm:$0xff]
        %v4224 = vld [vmem:[%s658 + $0x278] sm:$0xff]
        %v4225 = vld [vmem:[%s658 + $0x280] sm:$0xff]
        %v4226 = vld [vmem:[%s658 + $0x288] sm:$0xff]
        %v4227 = vld [vmem:[%s658 + $0x290] sm:$0xff]
        %v4228 = vld [vmem:[%s658 + $0x298] sm:$0xff]
        %v4229 = vld [vmem:[%s658 + $0x2a0] sm:$0xff]
        %v4230 = vld [vmem:[%s658 + $0x2a8] sm:$0xff]
        %v4231 = vld [vmem:[%s658 + $0x2b0] sm:$0xff]
        %v4232 = vld [vmem:[%s658 + $0x2b8] sm:$0xff]
        %v4233 = vld [vmem:[%s658 + $0x2c0] sm:$0xff]
        %v4234 = vld [vmem:[%s658 + $0x2c8] sm:$0xff]
        %v4235 = vld [vmem:[%s658 + $0x2d0] sm:$0xff]
        %v4236 = vld [vmem:[%s658 + $0x2d8] sm:$0xff]
        %v4237 = vld [vmem:[%s658 + $0x2e0] sm:$0xff]
        %v4238 = vld [vmem:[%s658 + $0x2e8] sm:$0xff]
        %v4239 = vld [vmem:[%s658 + $0x2f0] sm:$0xff]
        %v4240 = vld [vmem:[%s658 + $0x2f8] sm:$0xff]
        %v4241 = vld [vmem:[%s658 + $0x300] sm:$0xff]
        %v4242 = vld [vmem:[%s658 + $0x308] sm:$0xff]
        %v4243 = vld [vmem:[%s658 + $0x310] sm:$0xff]
        %v4244 = vld [vmem:[%s658 + $0x318] sm:$0xff]
        %v4245 = vld [vmem:[%s658 + $0x320] sm:$0xff]
        %v4246 = vld [vmem:[%s658 + $0x328] sm:$0xff]
        %v4247 = vld [vmem:[%s658 + $0x330] sm:$0xff]
        %v4248 = vld [vmem:[%s658 + $0x338] sm:$0xff]
        %v4249 = vld [vmem:[%s658 + $0x340] sm:$0xff]
        %v4250 = vld [vmem:[%s658 + $0x348] sm:$0xff]
        %v4251 = vld [vmem:[%s658 + $0x350] sm:$0xff]
        %v4252 = vld [vmem:[%s658 + $0x358] sm:$0xff]
        %v4253 = vld [vmem:[%s658 + $0x360] sm:$0xff]
        %v4254 = vld [vmem:[%s658 + $0x368] sm:$0xff]
        %v4255 = vld [vmem:[%s658 + $0x370] sm:$0xff]
        %v4256 = vld [vmem:[%s658 + $0x378] sm:$0xff]
        %v4257 = vld [vmem:[%s658 + $0x380] sm:$0xff]
        %v4258 = vld [vmem:[%s658 + $0x388] sm:$0xff]
        %v4259 = vld [vmem:[%s658 + $0x390] sm:$0xff]
        %v4260 = vld [vmem:[%s658 + $0x398] sm:$0xff]
        %v4261 = vld [vmem:[%s658 + $0x3a0] sm:$0xff]
        %v4262 = vld [vmem:[%s658 + $0x3a8] sm:$0xff]
        %v4263 = vld [vmem:[%s658 + $0x3b0] sm:$0xff]
        %v4264 = vld [vmem:[%s658 + $0x3b8] sm:$0xff]
        %v4265 = vld [vmem:[%s658 + $0x3c0] sm:$0xff]
        %v4266 = vld [vmem:[%s658 + $0x3c8] sm:$0xff]
        %v4267 = vld [vmem:[%s658 + $0x3d0] sm:$0xff]
        %v4268 = vld [vmem:[%s658 + $0x3d8] sm:$0xff]
        %v4269 = vld [vmem:[%s658 + $0x3e0] sm:$0xff]
        %v4270 = vld [vmem:[%s658 + $0x3e8] sm:$0xff]
        %v4271 = vld [vmem:[%s658 + $0x3f0] sm:$0xff]
        %v4272 = vld [vmem:[%s658 + $0x3f8] sm:$0xff]
        %v4273 = vld [vmem:[%s787] sm:$0x3]
        %v4275 = vlaneseq
        %v4276 = vshrl.u32 %v4275, 7
        %v4277 = vsub.s32 0, %v4276
        %v4278 = vrot.slane %v4273, %v4277
        %v4279 = vlaneseq
        %v4280 = vshrl.u32 %v4279, 7
        %v4281 = vsub.s32 1, %v4280
        %v4282 = vrot.slane %v4273, %v4281
        %v4413 = vunpack.c.l.b16 %v4145
        %v4414 = vunpack.c.h.b16 %v4145
        %v4415 = vunpack.c.l.b16 %v4146
        %v4416 = vunpack.c.h.b16 %v4146
        %v4417 = vunpack.c.l.b16 %v4147
        %v4418 = vunpack.c.h.b16 %v4147
        %v4419 = vunpack.c.l.b16 %v4148
        %v4420 = vunpack.c.h.b16 %v4148
        %v4421 = vunpack.c.l.b16 %v4149
        %v4422 = vunpack.c.h.b16 %v4149
        %v4423 = vunpack.c.l.b16 %v4150
        %v4424 = vunpack.c.h.b16 %v4150
        %v4425 = vunpack.c.l.b16 %v4151
        %v4426 = vunpack.c.h.b16 %v4151
        %v4427 = vunpack.c.l.b16 %v4152
        %v4428 = vunpack.c.h.b16 %v4152
        %v4429 = vunpack.c.l.b16 %v4153
        %v4430 = vunpack.c.h.b16 %v4153
        %v4431 = vunpack.c.l.b16 %v4154
        %v4432 = vunpack.c.h.b16 %v4154
        %v4433 = vunpack.c.l.b16 %v4155
        %v4434 = vunpack.c.h.b16 %v4155
        %v4435 = vunpack.c.l.b16 %v4156
        %v4436 = vunpack.c.h.b16 %v4156
        %v4437 = vunpack.c.l.b16 %v4157
        %v4438 = vunpack.c.h.b16 %v4157
        %v4439 = vunpack.c.l.b16 %v4158
        %v4440 = vunpack.c.h.b16 %v4158
        %v4441 = vunpack.c.l.b16 %v4159
        %v4442 = vunpack.c.h.b16 %v4159
        %v4443 = vunpack.c.l.b16 %v4160
        %v4444 = vunpack.c.h.b16 %v4160
        %v4445 = vunpack.c.l.b16 %v4161
        %v4446 = vunpack.c.h.b16 %v4161
        %v4447 = vunpack.c.l.b16 %v4162
        %v4448 = vunpack.c.h.b16 %v4162
        %v4449 = vunpack.c.l.b16 %v4163
        %v4450 = vunpack.c.h.b16 %v4163
        %v4451 = vunpack.c.l.b16 %v4164
        %v4452 = vunpack.c.h.b16 %v4164
        %v4453 = vunpack.c.l.b16 %v4165
        %v4454 = vunpack.c.h.b16 %v4165
        %v4455 = vunpack.c.l.b16 %v4166
        %v4456 = vunpack.c.h.b16 %v4166
        %v4457 = vunpack.c.l.b16 %v4167
        %v4458 = vunpack.c.h.b16 %v4167
        %v4459 = vunpack.c.l.b16 %v4168
        %v4460 = vunpack.c.h.b16 %v4168
        %v4461 = vunpack.c.l.b16 %v4169
        %v4462 = vunpack.c.h.b16 %v4169
        %v4463 = vunpack.c.l.b16 %v4170
        %v4464 = vunpack.c.h.b16 %v4170
        %v4465 = vunpack.c.l.b16 %v4171
        %v4466 = vunpack.c.h.b16 %v4171
        %v4467 = vunpack.c.l.b16 %v4172
        %v4468 = vunpack.c.h.b16 %v4172
        %v4469 = vunpack.c.l.b16 %v4173
        %v4470 = vunpack.c.h.b16 %v4173
        %v4471 = vunpack.c.l.b16 %v4174
        %v4472 = vunpack.c.h.b16 %v4174
        %v4473 = vunpack.c.l.b16 %v4175
        %v4474 = vunpack.c.h.b16 %v4175
        %v4475 = vunpack.c.l.b16 %v4176
        %v4476 = vunpack.c.h.b16 %v4176
        %v4477 = vunpack.c.l.b16 %v4177
        %v4478 = vunpack.c.h.b16 %v4177
        %v4479 = vunpack.c.l.b16 %v4178
        %v4480 = vunpack.c.h.b16 %v4178
        %v4481 = vunpack.c.l.b16 %v4179
        %v4482 = vunpack.c.h.b16 %v4179
        %v4483 = vunpack.c.l.b16 %v4180
        %v4484 = vunpack.c.h.b16 %v4180
        %v4485 = vunpack.c.l.b16 %v4181
        %v4486 = vunpack.c.h.b16 %v4181
        %v4487 = vunpack.c.l.b16 %v4182
        %v4488 = vunpack.c.h.b16 %v4182
        %v4489 = vunpack.c.l.b16 %v4183
        %v4490 = vunpack.c.h.b16 %v4183
        %v4491 = vunpack.c.l.b16 %v4184
        %v4492 = vunpack.c.h.b16 %v4184
        %v4493 = vunpack.c.l.b16 %v4185
        %v4494 = vunpack.c.h.b16 %v4185
        %v4495 = vunpack.c.l.b16 %v4186
        %v4496 = vunpack.c.h.b16 %v4186
        %v4497 = vunpack.c.l.b16 %v4187
        %v4498 = vunpack.c.h.b16 %v4187
        %v4499 = vunpack.c.l.b16 %v4188
        %v4500 = vunpack.c.h.b16 %v4188
        %v4501 = vunpack.c.l.b16 %v4189
        %v4502 = vunpack.c.h.b16 %v4189
        %v4503 = vunpack.c.l.b16 %v4190
        %v4504 = vunpack.c.h.b16 %v4190
        %v4505 = vunpack.c.l.b16 %v4191
        %v4506 = vunpack.c.h.b16 %v4191
        %v4507 = vunpack.c.l.b16 %v4192
        %v4508 = vunpack.c.h.b16 %v4192
        %v4509 = vunpack.c.l.b16 %v4193
        %v4510 = vunpack.c.h.b16 %v4193
        %v4511 = vunpack.c.l.b16 %v4194
        %v4512 = vunpack.c.h.b16 %v4194
        %v4513 = vunpack.c.l.b16 %v4195
        %v4514 = vunpack.c.h.b16 %v4195
        %v4515 = vunpack.c.l.b16 %v4196
        %v4516 = vunpack.c.h.b16 %v4196
        %v4517 = vunpack.c.l.b16 %v4197
        %v4518 = vunpack.c.h.b16 %v4197
        %v4519 = vunpack.c.l.b16 %v4198
        %v4520 = vunpack.c.h.b16 %v4198
        %v4521 = vunpack.c.l.b16 %v4199
        %v4522 = vunpack.c.h.b16 %v4199
        %v4523 = vunpack.c.l.b16 %v4200
        %v4524 = vunpack.c.h.b16 %v4200
        %v4525 = vunpack.c.l.b16 %v4201
        %v4526 = vunpack.c.h.b16 %v4201
        %v4527 = vunpack.c.l.b16 %v4202
        %v4528 = vunpack.c.h.b16 %v4202
        %v4529 = vunpack.c.l.b16 %v4203
        %v4530 = vunpack.c.h.b16 %v4203
        %v4531 = vunpack.c.l.b16 %v4204
        %v4532 = vunpack.c.h.b16 %v4204
        %v4533 = vunpack.c.l.b16 %v4205
        %v4534 = vunpack.c.h.b16 %v4205
        %v4535 = vunpack.c.l.b16 %v4206
        %v4536 = vunpack.c.h.b16 %v4206
        %v4537 = vunpack.c.l.b16 %v4207
        %v4538 = vunpack.c.h.b16 %v4207
        %v4539 = vunpack.c.l.b16 %v4208
        %v4540 = vunpack.c.h.b16 %v4208
        %v4541 = vunpack.c.l.b16 %v4209
        %v4542 = vunpack.c.h.b16 %v4209
        %v4543 = vunpack.c.l.b16 %v4210
        %v4544 = vunpack.c.h.b16 %v4210
        %v4545 = vunpack.c.l.b16 %v4211
        %v4546 = vunpack.c.h.b16 %v4211
        %v4547 = vunpack.c.l.b16 %v4212
        %v4548 = vunpack.c.h.b16 %v4212
        %v4549 = vunpack.c.l.b16 %v4213
        %v4550 = vunpack.c.h.b16 %v4213
        %v4551 = vunpack.c.l.b16 %v4214
        %v4552 = vunpack.c.h.b16 %v4214
        %v4553 = vunpack.c.l.b16 %v4215
        %v4554 = vunpack.c.h.b16 %v4215
        %v4555 = vunpack.c.l.b16 %v4216
        %v4556 = vunpack.c.h.b16 %v4216
        %v4557 = vunpack.c.l.b16 %v4217
        %v4558 = vunpack.c.h.b16 %v4217
        %v4559 = vunpack.c.l.b16 %v4218
        %v4560 = vunpack.c.h.b16 %v4218
        %v4561 = vunpack.c.l.b16 %v4219
        %v4562 = vunpack.c.h.b16 %v4219
        %v4563 = vunpack.c.l.b16 %v4220
        %v4564 = vunpack.c.h.b16 %v4220
        %v4565 = vunpack.c.l.b16 %v4221
        %v4566 = vunpack.c.h.b16 %v4221
        %v4567 = vunpack.c.l.b16 %v4222
        %v4568 = vunpack.c.h.b16 %v4222
        %v4569 = vunpack.c.l.b16 %v4223
        %v4570 = vunpack.c.h.b16 %v4223
        %v4571 = vunpack.c.l.b16 %v4224
        %v4572 = vunpack.c.h.b16 %v4224
        %v4573 = vunpack.c.l.b16 %v4225
        %v4574 = vunpack.c.h.b16 %v4225
        %v4575 = vunpack.c.l.b16 %v4226
        %v4576 = vunpack.c.h.b16 %v4226
        %v4577 = vunpack.c.l.b16 %v4227
        %v4578 = vunpack.c.h.b16 %v4227
        %v4579 = vunpack.c.l.b16 %v4228
        %v4580 = vunpack.c.h.b16 %v4228
        %v4581 = vunpack.c.l.b16 %v4229
        %v4582 = vunpack.c.h.b16 %v4229
        %v4583 = vunpack.c.l.b16 %v4230
        %v4584 = vunpack.c.h.b16 %v4230
        %v4585 = vunpack.c.l.b16 %v4231
        %v4586 = vunpack.c.h.b16 %v4231
        %v4587 = vunpack.c.l.b16 %v4232
        %v4588 = vunpack.c.h.b16 %v4232
        %v4589 = vunpack.c.l.b16 %v4233
        %v4590 = vunpack.c.h.b16 %v4233
        %v4591 = vunpack.c.l.b16 %v4234
        %v4592 = vunpack.c.h.b16 %v4234
        %v4593 = vunpack.c.l.b16 %v4235
        %v4594 = vunpack.c.h.b16 %v4235
        %v4595 = vunpack.c.l.b16 %v4236
        %v4596 = vunpack.c.h.b16 %v4236
        %v4597 = vunpack.c.l.b16 %v4237
        %v4598 = vunpack.c.h.b16 %v4237
        %v4599 = vunpack.c.l.b16 %v4238
        %v4600 = vunpack.c.h.b16 %v4238
        %v4601 = vunpack.c.l.b16 %v4239
        %v4602 = vunpack.c.h.b16 %v4239
        %v4603 = vunpack.c.l.b16 %v4240
        %v4604 = vunpack.c.h.b16 %v4240
        %v4605 = vunpack.c.l.b16 %v4241
        %v4606 = vunpack.c.h.b16 %v4241
        %v4607 = vunpack.c.l.b16 %v4242
        %v4608 = vunpack.c.h.b16 %v4242
        %v4609 = vunpack.c.l.b16 %v4243
        %v4610 = vunpack.c.h.b16 %v4243
        %v4611 = vunpack.c.l.b16 %v4244
        %v4612 = vunpack.c.h.b16 %v4244
        %v4613 = vunpack.c.l.b16 %v4245
        %v4614 = vunpack.c.h.b16 %v4245
        %v4615 = vunpack.c.l.b16 %v4246
        %v4616 = vunpack.c.h.b16 %v4246
        %v4617 = vunpack.c.l.b16 %v4247
        %v4618 = vunpack.c.h.b16 %v4247
        %v4619 = vunpack.c.l.b16 %v4248
        %v4620 = vunpack.c.h.b16 %v4248
        %v4621 = vunpack.c.l.b16 %v4249
        %v4622 = vunpack.c.h.b16 %v4249
        %v4623 = vunpack.c.l.b16 %v4250
        %v4624 = vunpack.c.h.b16 %v4250
        %v4625 = vunpack.c.l.b16 %v4251
        %v4626 = vunpack.c.h.b16 %v4251
        %v4627 = vunpack.c.l.b16 %v4252
        %v4628 = vunpack.c.h.b16 %v4252
        %v4629 = vunpack.c.l.b16 %v4253
        %v4630 = vunpack.c.h.b16 %v4253
        %v4631 = vunpack.c.l.b16 %v4254
        %v4632 = vunpack.c.h.b16 %v4254
        %v4633 = vunpack.c.l.b16 %v4255
        %v4634 = vunpack.c.h.b16 %v4255
        %v4635 = vunpack.c.l.b16 %v4256
        %v4636 = vunpack.c.h.b16 %v4256
        %v4637 = vunpack.c.l.b16 %v4257
        %v4638 = vunpack.c.h.b16 %v4257
        %v4639 = vunpack.c.l.b16 %v4258
        %v4640 = vunpack.c.h.b16 %v4258
        %v4641 = vunpack.c.l.b16 %v4259
        %v4642 = vunpack.c.h.b16 %v4259
        %v4643 = vunpack.c.l.b16 %v4260
        %v4644 = vunpack.c.h.b16 %v4260
        %v4645 = vunpack.c.l.b16 %v4261
        %v4646 = vunpack.c.h.b16 %v4261
        %v4647 = vunpack.c.l.b16 %v4262
        %v4648 = vunpack.c.h.b16 %v4262
        %v4649 = vunpack.c.l.b16 %v4263
        %v4650 = vunpack.c.h.b16 %v4263
        %v4651 = vunpack.c.l.b16 %v4264
        %v4652 = vunpack.c.h.b16 %v4264
        %v4653 = vunpack.c.l.b16 %v4265
        %v4654 = vunpack.c.h.b16 %v4265
        %v4655 = vunpack.c.l.b16 %v4266
        %v4656 = vunpack.c.h.b16 %v4266
        %v4657 = vunpack.c.l.b16 %v4267
        %v4658 = vunpack.c.h.b16 %v4267
        %v4659 = vunpack.c.l.b16 %v4268
        %v4660 = vunpack.c.h.b16 %v4268
        %v4661 = vunpack.c.l.b16 %v4269
        %v4662 = vunpack.c.h.b16 %v4269
        %v4663 = vunpack.c.l.b16 %v4270
        %v4664 = vunpack.c.h.b16 %v4270
        %v4665 = vunpack.c.l.b16 %v4271
        %v4666 = vunpack.c.h.b16 %v4271
        %v4667 = vunpack.c.l.b16 %v4272
        %v4668 = vunpack.c.h.b16 %v4272
        %v4669 = vpack.c.b16 %v4415, %v4413
        %v4670 = vpack.c.b16 %v4416, %v4414
        %v4671 = vpack.c.b16 %v4419, %v4417
        %v4672 = vpack.c.b16 %v4420, %v4418
        %v4673 = vpack.c.b16 %v4423, %v4421
        %v4674 = vpack.c.b16 %v4424, %v4422
        %v4675 = vpack.c.b16 %v4427, %v4425
        %v4676 = vpack.c.b16 %v4428, %v4426
        %v4677 = vpack.c.b16 %v4431, %v4429
        %v4678 = vpack.c.b16 %v4432, %v4430
        %v4679 = vpack.c.b16 %v4435, %v4433
        %v4680 = vpack.c.b16 %v4436, %v4434
        %v4681 = vpack.c.b16 %v4439, %v4437
        %v4682 = vpack.c.b16 %v4440, %v4438
        %v4683 = vpack.c.b16 %v4443, %v4441
        %v4684 = vpack.c.b16 %v4444, %v4442
        %v4685 = vpack.c.b16 %v4447, %v4445
        %v4686 = vpack.c.b16 %v4448, %v4446
        %v4687 = vpack.c.b16 %v4451, %v4449
        %v4688 = vpack.c.b16 %v4452, %v4450
        %v4689 = vpack.c.b16 %v4455, %v4453
        %v4690 = vpack.c.b16 %v4456, %v4454
        %v4691 = vpack.c.b16 %v4459, %v4457
        %v4692 = vpack.c.b16 %v4460, %v4458
        %v4693 = vpack.c.b16 %v4463, %v4461
        %v4694 = vpack.c.b16 %v4464, %v4462
        %v4695 = vpack.c.b16 %v4467, %v4465
        %v4696 = vpack.c.b16 %v4468, %v4466
        %v4697 = vpack.c.b16 %v4471, %v4469
        %v4698 = vpack.c.b16 %v4472, %v4470
        %v4699 = vpack.c.b16 %v4475, %v4473
        %v4700 = vpack.c.b16 %v4476, %v4474
        %v4701 = vpack.c.b16 %v4479, %v4477
        %v4702 = vpack.c.b16 %v4480, %v4478
        %v4703 = vpack.c.b16 %v4483, %v4481
        %v4704 = vpack.c.b16 %v4484, %v4482
        %v4705 = vpack.c.b16 %v4487, %v4485
        %v4706 = vpack.c.b16 %v4488, %v4486
        %v4707 = vpack.c.b16 %v4491, %v4489
        %v4708 = vpack.c.b16 %v4492, %v4490
        %v4709 = vpack.c.b16 %v4495, %v4493
        %v4710 = vpack.c.b16 %v4496, %v4494
        %v4711 = vpack.c.b16 %v4499, %v4497
        %v4712 = vpack.c.b16 %v4500, %v4498
        %v4713 = vpack.c.b16 %v4503, %v4501
        %v4714 = vpack.c.b16 %v4504, %v4502
        %v4715 = vpack.c.b16 %v4507, %v4505
        %v4716 = vpack.c.b16 %v4508, %v4506
        %v4717 = vpack.c.b16 %v4511, %v4509
        %v4718 = vpack.c.b16 %v4512, %v4510
        %v4719 = vpack.c.b16 %v4515, %v4513
        %v4720 = vpack.c.b16 %v4516, %v4514
        %v4721 = vpack.c.b16 %v4519, %v4517
        %v4722 = vpack.c.b16 %v4520, %v4518
        %v4723 = vpack.c.b16 %v4523, %v4521
        %v4724 = vpack.c.b16 %v4524, %v4522
        %v4725 = vpack.c.b16 %v4527, %v4525
        %v4726 = vpack.c.b16 %v4528, %v4526
        %v4727 = vpack.c.b16 %v4531, %v4529
        %v4728 = vpack.c.b16 %v4532, %v4530
        %v4729 = vpack.c.b16 %v4535, %v4533
        %v4730 = vpack.c.b16 %v4536, %v4534
        %v4731 = vpack.c.b16 %v4539, %v4537
        %v4732 = vpack.c.b16 %v4540, %v4538
        %v4733 = vpack.c.b16 %v4543, %v4541
        %v4734 = vpack.c.b16 %v4544, %v4542
        %v4735 = vpack.c.b16 %v4547, %v4545
        %v4736 = vpack.c.b16 %v4548, %v4546
        %v4737 = vpack.c.b16 %v4551, %v4549
        %v4738 = vpack.c.b16 %v4552, %v4550
        %v4739 = vpack.c.b16 %v4555, %v4553
        %v4740 = vpack.c.b16 %v4556, %v4554
        %v4741 = vpack.c.b16 %v4559, %v4557
        %v4742 = vpack.c.b16 %v4560, %v4558
        %v4743 = vpack.c.b16 %v4563, %v4561
        %v4744 = vpack.c.b16 %v4564, %v4562
        %v4745 = vpack.c.b16 %v4567, %v4565
        %v4746 = vpack.c.b16 %v4568, %v4566
        %v4747 = vpack.c.b16 %v4571, %v4569
        %v4748 = vpack.c.b16 %v4572, %v4570
        %v4749 = vpack.c.b16 %v4575, %v4573
        %v4750 = vpack.c.b16 %v4576, %v4574
        %v4751 = vpack.c.b16 %v4579, %v4577
        %v4752 = vpack.c.b16 %v4580, %v4578
        %v4753 = vpack.c.b16 %v4583, %v4581
        %v4754 = vpack.c.b16 %v4584, %v4582
        %v4755 = vpack.c.b16 %v4587, %v4585
        %v4756 = vpack.c.b16 %v4588, %v4586
        %v4757 = vpack.c.b16 %v4591, %v4589
        %v4758 = vpack.c.b16 %v4592, %v4590
        %v4759 = vpack.c.b16 %v4595, %v4593
        %v4760 = vpack.c.b16 %v4596, %v4594
        %v4761 = vpack.c.b16 %v4599, %v4597
        %v4762 = vpack.c.b16 %v4600, %v4598
        %v4763 = vpack.c.b16 %v4603, %v4601
        %v4764 = vpack.c.b16 %v4604, %v4602
        %v4765 = vpack.c.b16 %v4607, %v4605
        %v4766 = vpack.c.b16 %v4608, %v4606
        %v4767 = vpack.c.b16 %v4611, %v4609
        %v4768 = vpack.c.b16 %v4612, %v4610
        %v4769 = vpack.c.b16 %v4615, %v4613
        %v4770 = vpack.c.b16 %v4616, %v4614
        %v4771 = vpack.c.b16 %v4619, %v4617
        %v4772 = vpack.c.b16 %v4620, %v4618
        %v4773 = vpack.c.b16 %v4623, %v4621
        %v4774 = vpack.c.b16 %v4624, %v4622
        %v4775 = vpack.c.b16 %v4627, %v4625
        %v4776 = vpack.c.b16 %v4628, %v4626
        %v4777 = vpack.c.b16 %v4631, %v4629
        %v4778 = vpack.c.b16 %v4632, %v4630
        %v4779 = vpack.c.b16 %v4635, %v4633
        %v4780 = vpack.c.b16 %v4636, %v4634
        %v4781 = vpack.c.b16 %v4639, %v4637
        %v4782 = vpack.c.b16 %v4640, %v4638
        %v4783 = vpack.c.b16 %v4643, %v4641
        %v4784 = vpack.c.b16 %v4644, %v4642
        %v4785 = vpack.c.b16 %v4647, %v4645
        %v4786 = vpack.c.b16 %v4648, %v4646
        %v4787 = vpack.c.b16 %v4651, %v4649
        %v4788 = vpack.c.b16 %v4652, %v4650
        %v4789 = vpack.c.b16 %v4655, %v4653
        %v4790 = vpack.c.b16 %v4656, %v4654
        %v4791 = vpack.c.b16 %v4659, %v4657
        %v4792 = vpack.c.b16 %v4660, %v4658
        %v4793 = vpack.c.b16 %v4663, %v4661
        %v4794 = vpack.c.b16 %v4664, %v4662
        %v4795 = vpack.c.b16 %v4667, %v4665
        %v4796 = vpack.c.b16 %v4668, %v4666
        %4925 = vmatprep.subr.bf16.mxu0 %v4670
        %4926 = vmatpush1.bf16.msra.mxu0 %v4669
        %4927 = vmatprep.subr.bf16.mxu0 %v4672
        %4928 = vmatpush1.bf16.msra.mxu0 %v4671
        %4929 = vmatprep.subr.bf16.mxu0 %v4674
        %4930 = vmatpush1.bf16.msra.mxu0 %v4673
        %4931 = vmatprep.subr.bf16.mxu0 %v4676
        %4932 = vmatpush1.bf16.msra.mxu0 %v4675
        %4933 = vmatprep.subr.bf16.mxu0 %v4678
        %4934 = vmatpush1.bf16.msra.mxu0 %v4677
        %4935 = vmatprep.subr.bf16.mxu0 %v4680
        %4936 = vmatpush1.bf16.msra.mxu0 %v4679
        %4937 = vmatprep.subr.bf16.mxu0 %v4682
        %4938 = vmatpush1.bf16.msra.mxu0 %v4681
        %4939 = vmatprep.subr.bf16.mxu0 %v4684
        %4940 = vmatpush1.bf16.msra.mxu0 %v4683
        %4941 = vmatprep.subr.bf16.mxu0 %v4686
        %4942 = vmatpush1.bf16.msra.mxu0 %v4685
        %4943 = vmatprep.subr.bf16.mxu0 %v4688
        %4944 = vmatpush1.bf16.msra.mxu0 %v4687
        %4945 = vmatprep.subr.bf16.mxu0 %v4690
        %4946 = vmatpush1.bf16.msra.mxu0 %v4689
        %4947 = vmatprep.subr.bf16.mxu0 %v4692
        %4948 = vmatpush1.bf16.msra.mxu0 %v4691
        %4949 = vmatprep.subr.bf16.mxu0 %v4694
        %4950 = vmatpush1.bf16.msra.mxu0 %v4693
        %4951 = vmatprep.subr.bf16.mxu0 %v4696
        %4952 = vmatpush1.bf16.msra.mxu0 %v4695
        %4953 = vmatprep.subr.bf16.mxu0 %v4698
        %4954 = vmatpush1.bf16.msra.mxu0 %v4697
        %4955 = vmatprep.subr.bf16.mxu0 %v4700
        %4956 = vmatpush1.bf16.msra.mxu0 %v4699
        %4957 = vmatprep.mubr.bf16.mxu0 %v4138
        %4958 = vmatmul.mubr.bf16.gmra.mrb[0].mxu0 %v4137
        %v4959 = vpop.f32.mrb[0].mxu0
        %v4960 = vadd.f32 %v4278, %v4959
        %v4961 = vpop.f32.mrb[0].mxu0
        %v4962 = vadd.f32 %v4282, %v4961
        %v4963 = vpop.f32.mrb[0].mxu0
        %v4964 = vadd.f32 %v4278, %v4963
        %v4965 = vpop.f32.mrb[0].mxu0
        %v4966 = vadd.f32 %v4282, %v4965
        %4967 = vdwg.mxu0
        %4968 = vmatprep.subr.bf16.mxu0 %v4702
        %4969 = vmatpush1.bf16.msra.mxu0 %v4701
        %4970 = vmatprep.subr.bf16.mxu0 %v4704
        %4971 = vmatpush1.bf16.msra.mxu0 %v4703
        %4972 = vmatprep.subr.bf16.mxu0 %v4706
        %4973 = vmatpush1.bf16.msra.mxu0 %v4705
        %4974 = vmatprep.subr.bf16.mxu0 %v4708
        %4975 = vmatpush1.bf16.msra.mxu0 %v4707
        %4976 = vmatprep.subr.bf16.mxu0 %v4710
        %4977 = vmatpush1.bf16.msra.mxu0 %v4709
        %4978 = vmatprep.subr.bf16.mxu0 %v4712
        %4979 = vmatpush1.bf16.msra.mxu0 %v4711
        %4980 = vmatprep.subr.bf16.mxu0 %v4714
        %4981 = vmatpush1.bf16.msra.mxu0 %v4713
        %4982 = vmatprep.subr.bf16.mxu0 %v4716
        %4983 = vmatpush1.bf16.msra.mxu0 %v4715
        %4984 = vmatprep.subr.bf16.mxu0 %v4718
        %4985 = vmatpush1.bf16.msra.mxu0 %v4717
        %4986 = vmatprep.subr.bf16.mxu0 %v4720
        %4987 = vmatpush1.bf16.msra.mxu0 %v4719
        %4988 = vmatprep.subr.bf16.mxu0 %v4722
        %4989 = vmatpush1.bf16.msra.mxu0 %v4721
        %4990 = vmatprep.subr.bf16.mxu0 %v4724
        %4991 = vmatpush1.bf16.msra.mxu0 %v4723
        %4992 = vmatprep.subr.bf16.mxu0 %v4726
        %4993 = vmatpush1.bf16.msra.mxu0 %v4725
        %4994 = vmatprep.subr.bf16.mxu0 %v4728
        %4995 = vmatpush1.bf16.msra.mxu0 %v4727
        %4996 = vmatprep.subr.bf16.mxu0 %v4730
        %4997 = vmatpush1.bf16.msra.mxu0 %v4729
        %4998 = vmatprep.subr.bf16.mxu0 %v4732
        %4999 = vmatpush1.bf16.msra.mxu0 %v4731
        %5000 = vmatprep.mubr.bf16.mxu0 %v4140
        %5001 = vmatmul.mubr.bf16.gmra.mrb[0].mxu0 %v4139
        %v5002 = vpop.f32.mrb[0].mxu0
        %v5003 = vadd.f32 %v4960, %v5002
        %v5004 = vpop.f32.mrb[0].mxu0
        %v5005 = vadd.f32 %v4962, %v5004
        %v5006 = vpop.f32.mrb[0].mxu0
        %v5007 = vadd.f32 %v4964, %v5006
        %v5008 = vpop.f32.mrb[0].mxu0
        %v5009 = vadd.f32 %v4966, %v5008
        %5010 = vdwg.mxu0
        %5011 = vmatprep.subr.bf16.mxu0 %v4734
        %5012 = vmatpush1.bf16.msra.mxu0 %v4733
        %5013 = vmatprep.subr.bf16.mxu0 %v4736
        %5014 = vmatpush1.bf16.msra.mxu0 %v4735
        %5015 = vmatprep.subr.bf16.mxu0 %v4738
        %5016 = vmatpush1.bf16.msra.mxu0 %v4737
        %5017 = vmatprep.subr.bf16.mxu0 %v4740
        %5018 = vmatpush1.bf16.msra.mxu0 %v4739
        %5019 = vmatprep.subr.bf16.mxu0 %v4742
        %5020 = vmatpush1.bf16.msra.mxu0 %v4741
        %5021 = vmatprep.subr.bf16.mxu0 %v4744
        %5022 = vmatpush1.bf16.msra.mxu0 %v4743
        %5023 = vmatprep.subr.bf16.mxu0 %v4746
        %5024 = vmatpush1.bf16.msra.mxu0 %v4745
        %5025 = vmatprep.subr.bf16.mxu0 %v4748
        %5026 = vmatpush1.bf16.msra.mxu0 %v4747
        %5027 = vmatprep.subr.bf16.mxu0 %v4750
        %5028 = vmatpush1.bf16.msra.mxu0 %v4749
        %5029 = vmatprep.subr.bf16.mxu0 %v4752
        %5030 = vmatpush1.bf16.msra.mxu0 %v4751
        %5031 = vmatprep.subr.bf16.mxu0 %v4754
        %5032 = vmatpush1.bf16.msra.mxu0 %v4753
        %5033 = vmatprep.subr.bf16.mxu0 %v4756
        %5034 = vmatpush1.bf16.msra.mxu0 %v4755
        %5035 = vmatprep.subr.bf16.mxu0 %v4758
        %5036 = vmatpush1.bf16.msra.mxu0 %v4757
        %5037 = vmatprep.subr.bf16.mxu0 %v4760
        %5038 = vmatpush1.bf16.msra.mxu0 %v4759
        %5039 = vmatprep.subr.bf16.mxu0 %v4762
        %5040 = vmatpush1.bf16.msra.mxu0 %v4761
        %5041 = vmatprep.subr.bf16.mxu0 %v4764
        %5042 = vmatpush1.bf16.msra.mxu0 %v4763
        %5043 = vmatprep.mubr.bf16.mxu0 %v4142
        %5044 = vmatmul.mubr.bf16.gmra.mrb[0].mxu0 %v4141
        %v5045 = vpop.f32.mrb[0].mxu0
        %v5046 = vadd.f32 %v5003, %v5045
        %v5047 = vpop.f32.mrb[0].mxu0
        %v5048 = vadd.f32 %v5005, %v5047
        %v5049 = vpop.f32.mrb[0].mxu0
        %v5050 = vadd.f32 %v5007, %v5049
        %v5051 = vpop.f32.mrb[0].mxu0
        %v5052 = vadd.f32 %v5009, %v5051
        %5053 = vdwg.mxu0
        %5054 = vmatprep.subr.bf16.mxu0 %v4766
        %5055 = vmatpush1.bf16.msra.mxu0 %v4765
        %5056 = vmatprep.subr.bf16.mxu0 %v4768
        %5057 = vmatpush1.bf16.msra.mxu0 %v4767
        %5058 = vmatprep.subr.bf16.mxu0 %v4770
        %5059 = vmatpush1.bf16.msra.mxu0 %v4769
        %5060 = vmatprep.subr.bf16.mxu0 %v4772
        %5061 = vmatpush1.bf16.msra.mxu0 %v4771
        %5062 = vmatprep.subr.bf16.mxu0 %v4774
        %5063 = vmatpush1.bf16.msra.mxu0 %v4773
        %5064 = vmatprep.subr.bf16.mxu0 %v4776
        %5065 = vmatpush1.bf16.msra.mxu0 %v4775
        %5066 = vmatprep.subr.bf16.mxu0 %v4778
        %5067 = vmatpush1.bf16.msra.mxu0 %v4777
        %5068 = vmatprep.subr.bf16.mxu0 %v4780
        %5069 = vmatpush1.bf16.msra.mxu0 %v4779
        %5070 = vmatprep.subr.bf16.mxu0 %v4782
        %5071 = vmatpush1.bf16.msra.mxu0 %v4781
        %5072 = vmatprep.subr.bf16.mxu0 %v4784
        %5073 = vmatpush1.bf16.msra.mxu0 %v4783
        %5074 = vmatprep.subr.bf16.mxu0 %v4786
        %5075 = vmatpush1.bf16.msra.mxu0 %v4785
        %5076 = vmatprep.subr.bf16.mxu0 %v4788
        %5077 = vmatpush1.bf16.msra.mxu0 %v4787
        %5078 = vmatprep.subr.bf16.mxu0 %v4790
        %5079 = vmatpush1.bf16.msra.mxu0 %v4789
        %5080 = vmatprep.subr.bf16.mxu0 %v4792
        %5081 = vmatpush1.bf16.msra.mxu0 %v4791
        %5082 = vmatprep.subr.bf16.mxu0 %v4794
        %5083 = vmatpush1.bf16.msra.mxu0 %v4793
        %5084 = vmatprep.subr.bf16.mxu0 %v4796
        %5085 = vmatpush1.bf16.msra.mxu0 %v4795
        %5086 = vmatprep.mubr.bf16.mxu0 %v4144
        %5087 = vmatmul.mubr.bf16.gmra.mrb[0].mxu0 %v4143
        %v5088 = vpop.f32.mrb[0].mxu0
        %v5089 = vadd.f32 %v5046, %v5088
        %v5090 = vpop.f32.mrb[0].mxu0
        %v5091 = vadd.f32 %v5048, %v5090
        %v5092 = vpop.f32.mrb[0].mxu0
        %v5093 = vadd.f32 %v5050, %v5092
        %v5094 = vpop.f32.mrb[0].mxu0
        %v5095 = vadd.f32 %v5052, %v5094
        %5096 = vdwg.mxu0
        %v5097 = vadd.f32 %v3013, %v5089
        %v5098 = vadd.f32 %v3014, %v5091
        %v5099 = vadd.f32 %v3015, %v5093
        %v5100 = vadd.f32 %v3016, %v5095
        %5101 = vst [vmem:[#allocation2] sm:$0xff] %v5097
        %5102 = vst [vmem:[#allocation2 + $0x8] sm:$0xff] %v5098
        %5103 = vst [vmem:[#allocation2 + $0x10] sm:$0xff] %v5099
        %5104 = vst [vmem:[#allocation2 + $0x18] sm:$0xff] %v5100
        %p5105 = scmp.eq.s32.totalorder %s35, 1
        // Predicated region
        $region105: #{vit_image_encoder.1} parent=87 // pred_check
          %p5106 = pneg %p5105
        $region106: #{vit_image_encoder.1} parent=87 // pred_check_branch
          %5108 = sbr.rel (%p5106) target = $region108
        $region107: #{vit_image_encoder.1} parent=87 // pred_region
          %v5109 = vld [vmem:[%s15] sm:$0x3]
          %v5110 = vld [vmem:[%s16] sm:$0x3]
          %v5115 = vrot.slane %v5099, 7
          %vm5116 = vcmask 1041409
          %v5117 = vsel %vm5116, %v5115, %v5097
          %v5118 = vrot.slane %v5100, 7
          %v5119 = vsel %vm5116, %v5118, %v5098
          %vm5122 = vcmask 1041408
          %v5123 = vsel %vm5122, %v5117, 0.0
          %v5124 = vsel %vm5122, %v5119, 0.0
          %v5125 = vadd.f32 %v5123, %v5124
          %5126 = vadd.xlane.f32.xlu0 %v5125
          %v5127 = vpop.xlane.xlu0 %5126
          %v5128 = vmul.f32 %v5127, %v1558
          %v5130 = vrot.slane %v5128, 1
          %v5133 = vsub.f32 %v5097, %v5128
          %v5134 = vsub.f32 %v5098, %v5128
          %v5135 = vsub.f32 %v5099, %v5130
          %v5136 = vsub.f32 %v5100, %v5130
          %v5137 = vmul.f32 %v5133, %v5133
          %v5138 = vmul.f32 %v5134, %v5134
          %v5139 = vmul.f32 %v5135, %v5135
          %v5140 = vmul.f32 %v5136, %v5136
          %v5145 = vrot.slane %v5139, 7
          %v5146 = vsel %vm5116, %v5145, %v5137
          %v5147 = vrot.slane %v5140, 7
          %v5148 = vsel %vm5116, %v5147, %v5138
          %v5151 = vsel %vm5122, %v5146, 0.0
          %v5152 = vsel %vm5122, %v5148, 0.0
          %v5153 = vadd.f32 %v5151, %v5152
          %5154 = vadd.xlane.f32.xlu0 %v5153
          %v5155 = vpop.xlane.xlu0 %5154
          %v5156 = vmul.f32 %v5155, %v1558
          %v5157 = vadd.f32 %v5156, 1e-06
          %v5158 = vrsqrt.pop %v5157
          %v5160 = vrot.slane %v5158, 1
          %v5163 = vmul.f32 %v5133, %v5158
          %v5164 = vmul.f32 %v5134, %v5158
          %v5165 = vmul.f32 %v5135, %v5160
          %v5166 = vmul.f32 %v5136, %v5160
          %v5168 = vlaneseq
          %v5169 = vshrl.u32 %v5168, 7
          %v5170 = vsub.s32 0, %v5169
          %v5171 = vrot.slane %v5109, %v5170
          %v5172 = vlaneseq
          %v5173 = vshrl.u32 %v5172, 7
          %v5174 = vsub.s32 1, %v5173
          %v5175 = vrot.slane %v5109, %v5174
          %v5178 = vmul.f32 %v5163, %v5171
          %v5179 = vmul.f32 %v5164, %v5175
          %v5180 = vmul.f32 %v5165, %v5171
          %v5181 = vmul.f32 %v5166, %v5175
          %v5183 = vlaneseq
          %v5184 = vshrl.u32 %v5183, 7
          %v5185 = vsub.s32 0, %v5184
          %v5186 = vrot.slane %v5110, %v5185
          %v5187 = vlaneseq
          %v5188 = vshrl.u32 %v5187, 7
          %v5189 = vsub.s32 1, %v5188
          %v5190 = vrot.slane %v5110, %v5189
          %v5193 = vadd.f32 %v5178, %v5186
          %v5194 = vadd.f32 %v5179, %v5190
          %v5195 = vadd.f32 %v5180, %v5186
          %v5196 = vadd.f32 %v5181, %v5190
          %v5201 = vcombine.low %v5193, %v5194
          %v5203 = vunpack.c.l.s4 1983009808
          %v5204 = vunpack.c.0.s8 %v5203
          %v5205 = vlaneseq
          %v5206 = vshrl.u32 %v5205, 7
          %v5207 = vsub.s32 %v5204, %v5206
          %v5208 = vrot.slane %v5201, %v5207
          %v5209 = vcombine.low %v5195, %v5196
          %v5211 = vunpack.c.l.s4 1983009808
          %v5212 = vunpack.c.0.s8 %v5211
          %v5213 = vlaneseq
          %v5214 = vshrl.u32 %v5213, 7
          %v5215 = vsub.s32 %v5212, %v5214
          %v5216 = vrot.slane %v5209, %v5215
          %vm5217 = vcmask 1044484
          %v5218 = vsel %vm5217, %v5208, %v5208
          %vm5219 = vcmask 1046534
          %v5220 = vsel %vm5219, %v5208, %v5218
          %v5221 = vrot.slane %v5216, 7
          %v5222 = vsel %vm5116, %v5221, %v5220
          %vm5223 = vcmask 1043459
          %v5224 = vsel %vm5223, %v5221, %v5222
          %vm5225 = vcmask 1045509
          %v5226 = vsel %vm5225, %v5221, %v5224
          %vm5227 = vcmask 1047559
          %v5228 = vsel %vm5227, %v5221, %v5226
          %5230 = vst [vmem:[#allocation9] sm:$0xf] %v5228
        $region108: #{vit_image_encoder.1} parent=87 // pred_fallthru
          _
        // Predicated region
        $region109: #{vit_image_encoder.1} parent=87 // pred_check
          %p5231 = pneg %p465
        $region110: #{vit_image_encoder.1} parent=87 // pred_check_branch
          %5233 = sbr.rel (%p5231) target = $region112
        $region111: #{vit_image_encoder.1} parent=87 // pred_region
          %s5235 = ssub.s32 64, 64
          %5236 = vsyncadd [#allocation5], %s5235
          %s5238 = sshll.u32 [#allocation9], 4
          %s5239 = int_to_ptr.vmem [resolvable:$true] %s5238
          %5241 = dma.vmem_to_hbm [thread:$0]  %s5239, 64, %s17, [#allocation5]
        $region112: #{vit_image_encoder.1} parent=87 // pred_fallthru
          _
        // Predicated region
        $region113: #{vit_image_encoder.1} parent=87 // pred_check
          %p5242 = pneg %p465
        $region114: #{vit_image_encoder.1} parent=87 // pred_check_branch
          %5244 = sbr.rel (%p5242) target = $region116
        $region115: #{vit_image_encoder.1} parent=87 // pred_region
          %5245 = dma.done [#allocation5], 64
        $region116: #{vit_image_encoder.1} parent=87 // pred_fallthru
          _
      $region88: #{vit_image_encoder.1} parent=5 // pred_fallthru
        _
      %p5246 = scmp.le.s32.totalorder 2, %s30
      // Predicated region
      $region117: #{vit_image_encoder.1} parent=5 // pred_check
        %p5247 = pneg %p5246
      $region118: #{vit_image_encoder.1} parent=5 // pred_check_branch
        %5249 = sbr.rel (%p5247) target = $region120
      $region119: #{vit_image_encoder.1} parent=5 // pred_region
        %s5250 = ssub.s32 %s30, 2
      $region120: #{vit_image_encoder.1} parent=5 // pred_fallthru
        _
    $region6: #{vit_image_encoder.1} parent=1 // loop_footer
      %s34 = sadd.s32 1, %s30
    $region7: #{vit_image_encoder.1} parent=1 // loop_footer_branch
      %29 = sbr.rel target = $region3
    $region8: #{vit_image_encoder.1} parent=1 // loop_exit
      _
    %5251 = vsyncpa [#allocation4], 1
    %s5252 = scalar_lea.sflag [#allocation4], 1
    %5253 = vsyncpa %s5252, 1
    %5254 = vsyncpa [#allocation7], 1
    %s5255 = scalar_lea.sflag [#allocation7], 1
    %5256 = vsyncpa %s5255, 1
    %5257 = vsyncpa [#allocation5], 1
    %s5258 = scalar_lea.sflag [#allocation5], 1
    %5259 = vsyncpa %s5258, 1

</llo_original>
